<compile_context>
chip_gen: v7x
topology: tpu7x:2x2x1
jax: 0.10.0
libtpu: 0.0.40
codegen_flags: <defaults>
</compile_context>

<pallas_src>
import math

import jax
import jax.numpy as jnp
from jax.experimental import pallas as pl
from jax.experimental.pallas import tpu as pltpu

N_NODES = 68      # landmarks per graph (fixed by the reshape in forward())
F_IN = 2          # feature_size
EMB = 128         # encoder_embedding_size
EPS = 1e-15       # torch_geometric dense_diff_pool EPS


def _sum_all_2d(v):
    """(R, C) -> (1, 1) total, via two explicit keepdims reductions."""
    return jnp.sum(jnp.sum(v, axis=-1, keepdims=True), axis=0, keepdims=True)


def _encoder_kernel(x_ref, ablk_ref, adj_ref, s_ref,
                    w1r_ref, w1o_ref, b1_ref,
                    w2r_ref, w2o_ref, b2_ref,
                    w3r_ref, w3o_ref, b3_ref,
                    xpool_ref, adjpool_ref, link_ref, ent_ref):
    tb = adj_ref.shape[0]                 # graphs handled by this grid step

    x = x_ref[...]                        # (tb*68, 2)   flattened node features
    a_blk = ablk_ref[...]                 # (tb*68, tb*68) block-diag node adjacency

    def gconv(h, w_rel, w_root, b):
        # GraphConv: (A @ h) @ W_rel + b + h @ W_root, then ReLU. M = tb*68.
        agg = jnp.dot(a_blk, h, preferred_element_type=jnp.float32)
        out = (jnp.dot(agg, w_rel, preferred_element_type=jnp.float32)
               + jnp.dot(h, w_root, preferred_element_type=jnp.float32)
               + b)
        return jnp.maximum(out, 0.0)

    h = gconv(x, w1r_ref[...], w1o_ref[...], b1_ref[...])     # (tb*68, 128)
    h = gconv(h, w2r_ref[...], w2o_ref[...], b2_ref[...])
    h = gconv(h, w3r_ref[...], w3o_ref[...], b3_ref[...])

    link_rows = []
    ent_rows = []
    for g in range(tb):                   # static unroll, tb is tiny
        hg = h[g * N_NODES:(g + 1) * N_NODES, :]               # (68, 128)
        adj_g = adj_ref[g]                                     # (68, 68)
        s_g = s_ref[g]                                         # (68, C)

        # softmax over clusters (exact; negligible cost here)
        m = jnp.max(s_g, axis=-1, keepdims=True)
        e = jnp.exp(s_g - m)
        s_soft = e / jnp.sum(e, axis=-1, keepdims=True)        # (68, C)
        s_t = s_soft.T                                         # (C, 68), reused 3x

        x_pool = jnp.dot(s_t, hg, preferred_element_type=jnp.float32)        # (C, 128)
        tmp = jnp.dot(s_t, adj_g, preferred_element_type=jnp.float32)        # (C, 68)
        adj_pool = jnp.dot(tmp, s_soft, preferred_element_type=jnp.float32)  # (C, C)

        sst = jnp.dot(s_soft, s_t, preferred_element_type=jnp.float32)       # (68, 68)
        diff = adj_g - sst
        link_rows.append(_sum_all_2d(diff * diff))                            # (1, 1)
        ent_rows.append(_sum_all_2d(-s_soft * jnp.log(s_soft + EPS)))         # (1, 1)

        xpool_ref[g] = x_pool.astype(xpool_ref.dtype)
        adjpool_ref[g] = adj_pool.astype(adjpool_ref.dtype)

    link_blk = jnp.concatenate(link_rows, axis=0)              # (tb, 1)
    ent_blk = jnp.concatenate(ent_rows, axis=0)                # (tb, 1)
    # lane-dense (tb, 128) stores; wrapper reads column 0.
    link_ref[...] = jnp.broadcast_to(link_blk, link_ref.shape).astype(link_ref.dtype)
    ent_ref[...] = jnp.broadcast_to(ent_blk, ent_ref.shape).astype(ent_ref.dtype)


def lmrk_encoder_h_pallas(x_nodes, node_adj, adj, s, params, pos,
                          *, graphs_per_step=2):
    """Forward pass of lmrk_encoder_h.

    x_nodes:  (B*68, 2)   node features (input.x)
    node_adj: (68, 68)    dense node adjacency built from input.edge_index
    adj:      (B, 68, 68) dense adjacency for dense_diff_pool
    s:        (B, 68, C)  assignment logits
    params:   (w_rel, w_root, b) x 3 layers, weights in (in, out) layout
    pos:      input.pos, passed through unchanged
    Returns (x_pool, adj_pool, link_loss, ent_loss, pos).
    """
    B = adj.shape[0]
    C = s.shape[-1]

    tb = max(1, min(graphs_per_step, B))
    while B % tb:
        tb -= 1
    n_blk = B // tb
    rows = tb * N_NODES

    a_blk = jnp.kron(jnp.eye(tb, dtype=jnp.float32), node_adj.astype(jnp.float32))
    x_blocks = x_nodes.astype(jnp.float32).reshape(n_blk, rows, F_IN)

    (w1r, w1o, b1, w2r, w2o, b2, w3r, w3o, b3) = params

    grid_spec = pltpu.PrefetchScalarGridSpec(
        num_scalar_prefetch=0,
        grid=(n_blk,),
        in_specs=[
            pl.BlockSpec((None, rows, F_IN), lambda i: (i, 0, 0)),      # x (flattened)
            pl.BlockSpec((rows, rows), lambda i: (0, 0)),               # block-diag A
            pl.BlockSpec((tb, N_NODES, N_NODES), lambda i: (i, 0, 0)),  # adj
            pl.BlockSpec((tb, N_NODES, C), lambda i: (i, 0, 0)),        # s
            pl.BlockSpec((F_IN, EMB), lambda i: (0, 0)),                # w1_rel
            pl.BlockSpec((F_IN, EMB), lambda i: (0, 0)),                # w1_root
            pl.BlockSpec((1, EMB), lambda i: (0, 0)),                   # b1
            pl.BlockSpec((EMB, EMB), lambda i: (0, 0)),                 # w2_rel
            pl.BlockSpec((EMB, EMB), lambda i: (0, 0)),                 # w2_root
            pl.BlockSpec((1, EMB), lambda i: (0, 0)),                   # b2
            pl.BlockSpec((EMB, EMB), lambda i: (0, 0)),                 # w3_rel
            pl.BlockSpec((EMB, EMB), lambda i: (0, 0)),                 # w3_root
            pl.BlockSpec((1, EMB), lambda i: (0, 0)),                   # b3
        ],
        out_specs=[
            pl.BlockSpec((tb, C, EMB), lambda i: (i, 0, 0)),            # pooled x
            pl.BlockSpec((tb, C, C), lambda i: (i, 0, 0)),              # pooled adj
            pl.BlockSpec((None, tb, EMB), lambda i: (i, 0, 0)),         # link partials
            pl.BlockSpec((None, tb, EMB), lambda i: (i, 0, 0)),         # ent partials
        ],
    )

    out_shapes = (
        jax.ShapeDtypeStruct((B, C, EMB), jnp.float32),
        jax.ShapeDtypeStruct((B, C, C), jnp.float32),
        jax.ShapeDtypeStruct((n_blk, tb, EMB), jnp.float32),
        jax.ShapeDtypeStruct((n_blk, tb, EMB), jnp.float32),
    )

    x_pool, adj_pool, link_raw, ent_raw = pl.pallas_call(
        _encoder_kernel,
        out_shape=out_shapes,
        grid_spec=grid_spec,
        compiler_params=pltpu.CompilerParams(
            dimension_semantics=("parallel",)),
    )(x_blocks, a_blk, adj.astype(jnp.float32), s.astype(jnp.float32),
      w1r, w1o, b1, w2r, w2o, b2, w3r, w3o, b3)

    # Tiny cross-block scalar reductions (a handful of values) in the wrapper.
    link_sq = jnp.sum(link_raw[:, :, 0])
    link_loss = jnp.sqrt(link_sq) / (B * N_NODES * N_NODES)   # Frobenius / numel
    ent_loss = jnp.sum(ent_raw[:, :, 0]) / (B * N_NODES)      # mean over (B, 68)
    return x_pool, adj_pool, link_loss, ent_loss, pos


def lmrk_encoder_h_reference(x_nodes, node_adj, adj, s, params):
    (w1r, w1o, b1, w2r, w2o, b2, w3r, w3o, b3) = params
    B = adj.shape[0]
    a_full = jnp.kron(jnp.eye(B, dtype=jnp.float32), node_adj)
    h = x_nodes
    for wr, wo, b in ((w1r, w1o, b1), (w2r, w2o, b2), (w3r, w3o, b3)):
        h = jax.nn.relu((a_full @ h) @ wr + b + h @ wo)
    x_resize = h.reshape(B, N_NODES, EMB)
    s_soft = jax.nn.softmax(s, axis=-1)
    x_pool = jnp.einsum('bnc,bnf->bcf', s_soft, x_resize)
    adj_pool = jnp.einsum('bnc,bnm,bmk->bck', s_soft, adj, s_soft)
    link = adj - jnp.einsum('bnc,bmc->bnm', s_soft, s_soft)
    link_loss = jnp.sqrt(jnp.sum(link * link)) / adj.size
    ent_loss = jnp.mean(jnp.sum(-s_soft * jnp.log(s_soft + EPS), axis=-1))
    return x_pool, adj_pool, link_loss, ent_loss


if __name__ == "__main__":
    key = jax.random.PRNGKey(0)
    keys = jax.random.split(key, 12)

    B = 4       # num_graphs (small)
    C = 32      # diff-pool clusters (columns of `s`)

    # Fixed 68-landmark template graph: a symmetric ring as a stand-in for the
    # real landmark connectivity. edge_index -> dense node adjacency.
    src = jnp.concatenate([jnp.arange(N_NODES - 1), jnp.arange(1, N_NODES),
                           jnp.array([0, N_NODES - 1])])
    dst = jnp.concatenate([jnp.arange(1, N_NODES), jnp.arange(N_NODES - 1),
                           jnp.array([N_NODES - 1, 0])])
    edge_index = jnp.stack([src, dst])
    # TODO(synk): edge_index -> dense adjacency is an irregular scatter with no
    # tile-regular Pallas form; built once here with jnp and fed to the kernel.
    node_adj = jnp.zeros((N_NODES, N_NODES), jnp.float32).at[
        edge_index[1], edge_index[0]].add(1.0)

    x_nodes = jax.random.normal(keys[0], (B * N_NODES, F_IN), jnp.float32)
    pos = jax.random.normal(keys[1], (B * N_NODES, 2), jnp.float32)
    adj = jnp.tile(node_adj[None], (B, 1, 1))            # dense per-graph adjacency
    s = jax.random.normal(keys[2], (B, N_NODES, C), jnp.float32)

    def lin(k, fan_in, shape):
        bound = 1.0 / math.sqrt(fan_in)
        return jax.random.uniform(k, shape, jnp.float32, -bound, bound)

    params = (
        lin(keys[3], F_IN, (F_IN, EMB)), lin(keys[4], F_IN, (F_IN, EMB)),
        lin(keys[5], F_IN, (1, EMB)),
        lin(keys[6], EMB, (EMB, EMB)), lin(keys[7], EMB, (EMB, EMB)),
        lin(keys[8], EMB, (1, EMB)),
        lin(keys[9], EMB, (EMB, EMB)), lin(keys[10], EMB, (EMB, EMB)),
        lin(keys[11], EMB, (1, EMB)),
    )

    out = lmrk_encoder_h_pallas(x_nodes, node_adj, adj, s, params, pos,
                                graphs_per_step=2)
    out = jax.block_until_ready(out)
    x_pool, adj_pool, l1, e1, pos_out = out

    xr, ar, lr, er = lmrk_encoder_h_reference(x_nodes, node_adj, adj, s, params)

    assert x_pool.shape == (B, C, EMB) and adj_pool.shape == (B, C, C)
    assert jnp.allclose(x_pool, xr, atol=2e-3, rtol=2e-3), "x_pool mismatch"
    assert jnp.allclose(adj_pool, ar, atol=2e-3, rtol=2e-3), "adj_pool mismatch"
    assert jnp.allclose(l1, lr, atol=2e-3, rtol=2e-3), "link loss mismatch"
    assert jnp.allclose(e1, er, atol=2e-3, rtol=2e-3), "entropy loss mismatch"
    assert jnp.array_equal(pos_out, pos)

    print("KERNEL_OK")
</pallas_src>

<mosaic_0001>
module attributes {stable_mosaic.version = 11 : i64} {
  func.func @_encoder_kernel(%arg0: i32, %arg1: memref<1x136x2xf32, #tpu.memory_space<vmem>>, %arg2: memref<136x136xf32, #tpu.memory_space<vmem>>, %arg3: memref<2x68x68xf32, #tpu.memory_space<vmem>>, %arg4: memref<2x68x32xf32, #tpu.memory_space<vmem>>, %arg5: memref<2x128xf32, #tpu.memory_space<vmem>>, %arg6: memref<2x128xf32, #tpu.memory_space<vmem>>, %arg7: memref<1x128xf32, #tpu.memory_space<vmem>>, %arg8: memref<128x128xf32, #tpu.memory_space<vmem>>, %arg9: memref<128x128xf32, #tpu.memory_space<vmem>>, %arg10: memref<1x128xf32, #tpu.memory_space<vmem>>, %arg11: memref<128x128xf32, #tpu.memory_space<vmem>>, %arg12: memref<128x128xf32, #tpu.memory_space<vmem>>, %arg13: memref<1x128xf32, #tpu.memory_space<vmem>>, %arg14: memref<2x32x128xf32, #tpu.memory_space<vmem>>, %arg15: memref<2x32x32xf32, #tpu.memory_space<vmem>>, %arg16: memref<1x2x128xf32, #tpu.memory_space<vmem>>, %arg17: memref<1x2x128xf32, #tpu.memory_space<vmem>>) attributes {dimension_semantics = [#tpu.dimension_semantics<parallel>], iteration_bounds = array<i64: 2>, scalar_prefetch = 0 : i64, scratch_operands = 0 : i64, tpu.core_type = #tpu.core_type<tc>, window_params = [{transform_indices = @transform_0, window_bounds = array<i64: 1, 136, 2>}, {pipeline_mode = #tpu.pipeline_mode<synchronous>, transform_indices = @transform_1, window_bounds = array<i64: 136, 136>}, {transform_indices = @transform_2, window_bounds = array<i64: 2, 68, 68>}, {transform_indices = @transform_3, window_bounds = array<i64: 2, 68, 32>}, {pipeline_mode = #tpu.pipeline_mode<synchronous>, transform_indices = @transform_4, window_bounds = array<i64: 2, 128>}, {pipeline_mode = #tpu.pipeline_mode<synchronous>, transform_indices = @transform_5, window_bounds = array<i64: 2, 128>}, {pipeline_mode = #tpu.pipeline_mode<synchronous>, transform_indices = @transform_6, window_bounds = array<i64: 1, 128>}, {pipeline_mode = #tpu.pipeline_mode<synchronous>, transform_indices = @transform_7, window_bounds = array<i64: 128, 128>}, {pipeline_mode = #tpu.pipeline_mode<synchronous>, transform_indices = @transform_8, window_bounds = array<i64: 128, 128>}, {pipeline_mode = #tpu.pipeline_mode<synchronous>, transform_indices = @transform_9, window_bounds = array<i64: 1, 128>}, {pipeline_mode = #tpu.pipeline_mode<synchronous>, transform_indices = @transform_10, window_bounds = array<i64: 128, 128>}, {pipeline_mode = #tpu.pipeline_mode<synchronous>, transform_indices = @transform_11, window_bounds = array<i64: 128, 128>}, {pipeline_mode = #tpu.pipeline_mode<synchronous>, transform_indices = @transform_12, window_bounds = array<i64: 1, 128>}, {transform_indices = @transform_13, window_bounds = array<i64: 2, 32, 128>}, {transform_indices = @transform_14, window_bounds = array<i64: 2, 32, 32>}, {transform_indices = @transform_15, window_bounds = array<i64: 1, 2, 128>}, {transform_indices = @transform_16, window_bounds = array<i64: 1, 2, 128>}]} {
    %c0 = arith.constant 0 : index
    %c0_0 = arith.constant 0 : index
    %c0_1 = arith.constant 0 : index
    %0 = vector.load %arg1[%c0, %c0_0, %c0_1] : memref<1x136x2xf32, #tpu.memory_space<vmem>>, vector<1x136x2xf32>
    %1 = vector.shape_cast %0 : vector<1x136x2xf32> to vector<136x2xf32>
    %c0_2 = arith.constant 0 : index
    %c0_3 = arith.constant 0 : index
    %2 = vector.load %arg2[%c0_2, %c0_3] : memref<136x136xf32, #tpu.memory_space<vmem>>, vector<136x136xf32>
    %c0_4 = arith.constant 0 : index
    %c0_5 = arith.constant 0 : index
    %3 = vector.load %arg5[%c0_4, %c0_5] : memref<2x128xf32, #tpu.memory_space<vmem>>, vector<2x128xf32>
    %c0_6 = arith.constant 0 : index
    %c0_7 = arith.constant 0 : index
    %4 = vector.load %arg6[%c0_6, %c0_7] : memref<2x128xf32, #tpu.memory_space<vmem>>, vector<2x128xf32>
    %c0_8 = arith.constant 0 : index
    %c0_9 = arith.constant 0 : index
    %5 = vector.load %arg7[%c0_8, %c0_9] : memref<1x128xf32, #tpu.memory_space<vmem>>, vector<1x128xf32>
    %cst = arith.constant dense<0.000000e+00> : vector<136x2xf32>
    %6 = tpu.matmul %2, %1, %cst {dimension_numbers = #tpu.dot_dimension_numbers<[1], [0], [0], [1], [0, 0, 1, 1], [], []>} : vector<136x136xf32>, vector<136x2xf32>, vector<136x2xf32> -> vector<136x2xf32>
    %cst_10 = arith.constant dense<0.000000e+00> : vector<136x128xf32>
    %7 = tpu.matmul %6, %3, %cst_10 {dimension_numbers = #tpu.dot_dimension_numbers<[1], [0], [0], [1], [0, 0, 1, 1], [], []>} : vector<136x2xf32>, vector<2x128xf32>, vector<136x128xf32> -> vector<136x128xf32>
    %cst_11 = arith.constant dense<0.000000e+00> : vector<136x128xf32>
    %8 = tpu.matmul %1, %4, %cst_11 {dimension_numbers = #tpu.dot_dimension_numbers<[1], [0], [0], [1], [0, 0, 1, 1], [], []>} : vector<136x2xf32>, vector<2x128xf32>, vector<136x128xf32> -> vector<136x128xf32>
    %9 = arith.addf %7, %8 : vector<136x128xf32>
    %10 = vector.broadcast %5 : vector<1x128xf32> to vector<136x128xf32>
    %11 = arith.addf %9, %10 : vector<136x128xf32>
    %cst_12 = arith.constant 0.000000e+00 : f32
    %12 = vector.broadcast %cst_12 : f32 to vector<136x128xf32>
    %13 = arith.maximumf %11, %12 : vector<136x128xf32>
    %c0_13 = arith.constant 0 : index
    %c0_14 = arith.constant 0 : index
    %14 = vector.load %arg8[%c0_13, %c0_14] : memref<128x128xf32, #tpu.memory_space<vmem>>, vector<128x128xf32>
    %c0_15 = arith.constant 0 : index
    %c0_16 = arith.constant 0 : index
    %15 = vector.load %arg9[%c0_15, %c0_16] : memref<128x128xf32, #tpu.memory_space<vmem>>, vector<128x128xf32>
    %c0_17 = arith.constant 0 : index
    %c0_18 = arith.constant 0 : index
    %16 = vector.load %arg10[%c0_17, %c0_18] : memref<1x128xf32, #tpu.memory_space<vmem>>, vector<1x128xf32>
    %cst_19 = arith.constant dense<0.000000e+00> : vector<136x128xf32>
    %17 = tpu.matmul %2, %13, %cst_19 {dimension_numbers = #tpu.dot_dimension_numbers<[1], [0], [0], [1], [0, 0, 1, 1], [], []>} : vector<136x136xf32>, vector<136x128xf32>, vector<136x128xf32> -> vector<136x128xf32>
    %cst_20 = arith.constant dense<0.000000e+00> : vector<136x128xf32>
    %18 = tpu.matmul %17, %14, %cst_20 {dimension_numbers = #tpu.dot_dimension_numbers<[1], [0], [0], [1], [0, 0, 1, 1], [], []>} : vector<136x128xf32>, vector<128x128xf32>, vector<136x128xf32> -> vector<136x128xf32>
    %cst_21 = arith.constant dense<0.000000e+00> : vector<136x128xf32>
    %19 = tpu.matmul %13, %15, %cst_21 {dimension_numbers = #tpu.dot_dimension_numbers<[1], [0], [0], [1], [0, 0, 1, 1], [], []>} : vector<136x128xf32>, vector<128x128xf32>, vector<136x128xf32> -> vector<136x128xf32>
    %20 = arith.addf %18, %19 : vector<136x128xf32>
    %21 = vector.broadcast %16 : vector<1x128xf32> to vector<136x128xf32>
    %22 = arith.addf %20, %21 : vector<136x128xf32>
    %cst_22 = arith.constant 0.000000e+00 : f32
    %23 = vector.broadcast %cst_22 : f32 to vector<136x128xf32>
    %24 = arith.maximumf %22, %23 : vector<136x128xf32>
    %c0_23 = arith.constant 0 : index
    %c0_24 = arith.constant 0 : index
    %25 = vector.load %arg11[%c0_23, %c0_24] : memref<128x128xf32, #tpu.memory_space<vmem>>, vector<128x128xf32>
    %c0_25 = arith.constant 0 : index
    %c0_26 = arith.constant 0 : index
    %26 = vector.load %arg12[%c0_25, %c0_26] : memref<128x128xf32, #tpu.memory_space<vmem>>, vector<128x128xf32>
    %c0_27 = arith.constant 0 : index
    %c0_28 = arith.constant 0 : index
    %27 = vector.load %arg13[%c0_27, %c0_28] : memref<1x128xf32, #tpu.memory_space<vmem>>, vector<1x128xf32>
    %cst_29 = arith.constant dense<0.000000e+00> : vector<136x128xf32>
    %28 = tpu.matmul %2, %24, %cst_29 {dimension_numbers = #tpu.dot_dimension_numbers<[1], [0], [0], [1], [0, 0, 1, 1], [], []>} : vector<136x136xf32>, vector<136x128xf32>, vector<136x128xf32> -> vector<136x128xf32>
    %cst_30 = arith.constant dense<0.000000e+00> : vector<136x128xf32>
    %29 = tpu.matmul %28, %25, %cst_30 {dimension_numbers = #tpu.dot_dimension_numbers<[1], [0], [0], [1], [0, 0, 1, 1], [], []>} : vector<136x128xf32>, vector<128x128xf32>, vector<136x128xf32> -> vector<136x128xf32>
    %cst_31 = arith.constant dense<0.000000e+00> : vector<136x128xf32>
    %30 = tpu.matmul %24, %26, %cst_31 {dimension_numbers = #tpu.dot_dimension_numbers<[1], [0], [0], [1], [0, 0, 1, 1], [], []>} : vector<136x128xf32>, vector<128x128xf32>, vector<136x128xf32> -> vector<136x128xf32>
    %31 = arith.addf %29, %30 : vector<136x128xf32>
    %32 = vector.broadcast %27 : vector<1x128xf32> to vector<136x128xf32>
    %33 = arith.addf %31, %32 : vector<136x128xf32>
    %cst_32 = arith.constant 0.000000e+00 : f32
    %34 = vector.broadcast %cst_32 : f32 to vector<136x128xf32>
    %35 = arith.maximumf %33, %34 : vector<136x128xf32>
    %36 = vector.extract_strided_slice %35 {offsets = [0, 0], sizes = [68, 128], strides = [1, 1]} : vector<136x128xf32> to vector<68x128xf32>
    %c0_33 = arith.constant 0 : index
    %c0_34 = arith.constant 0 : index
    %c0_35 = arith.constant 0 : index
    %37 = vector.load %arg3[%c0_33, %c0_34, %c0_35] : memref<2x68x68xf32, #tpu.memory_space<vmem>>, vector<1x68x68xf32>
    %38 = vector.shape_cast %37 : vector<1x68x68xf32> to vector<68x68xf32>
    %c0_36 = arith.constant 0 : index
    %c0_37 = arith.constant 0 : index
    %c0_38 = arith.constant 0 : index
    %39 = vector.load %arg4[%c0_36, %c0_37, %c0_38] : memref<2x68x32xf32, #tpu.memory_space<vmem>>, vector<1x68x32xf32>
    %40 = vector.shape_cast %39 : vector<1x68x32xf32> to vector<68x32xf32>
    %cst_39 = arith.constant dense<0xFF800000> : vector<68xf32>
    %41 = vector.multi_reduction <maximumf>, %40, %cst_39 [1] : vector<68x32xf32> to vector<68xf32>
    %42 = vector.shape_cast %41 : vector<68xf32> to vector<68x1xf32>
    %43 = vector.broadcast %42 : vector<68x1xf32> to vector<68x32xf32>
    %44 = arith.subf %40, %43 : vector<68x32xf32>
    %45 = math.exp %44 : vector<68x32xf32>
    %cst_40 = arith.constant dense<0.000000e+00> : vector<68xf32>
    %46 = vector.multi_reduction <add>, %45, %cst_40 [1] : vector<68x32xf32> to vector<68xf32>
    %47 = vector.shape_cast %46 : vector<68xf32> to vector<68x1xf32>
    %48 = vector.broadcast %47 : vector<68x1xf32> to vector<68x32xf32>
    %49 = arith.divf %45, %48 : vector<68x32xf32>
    %50 = tpu.transpose %49, [1, 0] : vector<68x32xf32> -> vector<32x68xf32>
    %cst_41 = arith.constant dense<0.000000e+00> : vector<32x128xf32>
    %51 = tpu.matmul %50, %36, %cst_41 {dimension_numbers = #tpu.dot_dimension_numbers<[1], [0], [0], [1], [0, 0, 1, 1], [], []>} : vector<32x68xf32>, vector<68x128xf32>, vector<32x128xf32> -> vector<32x128xf32>
    %cst_42 = arith.constant dense<0.000000e+00> : vector<32x68xf32>
    %52 = tpu.matmul %50, %38, %cst_42 {dimension_numbers = #tpu.dot_dimension_numbers<[1], [0], [0], [1], [0, 0, 1, 1], [], []>} : vector<32x68xf32>, vector<68x68xf32>, vector<32x68xf32> -> vector<32x68xf32>
    %cst_43 = arith.constant dense<0.000000e+00> : vector<32x32xf32>
    %53 = tpu.matmul %52, %49, %cst_43 {dimension_numbers = #tpu.dot_dimension_numbers<[1], [0], [0], [1], [0, 0, 1, 1], [], []>} : vector<32x68xf32>, vector<68x32xf32>, vector<32x32xf32> -> vector<32x32xf32>
    %cst_44 = arith.constant dense<0.000000e+00> : vector<68x68xf32>
    %54 = tpu.matmul %49, %50, %cst_44 {dimension_numbers = #tpu.dot_dimension_numbers<[1], [0], [0], [1], [0, 0, 1, 1], [], []>} : vector<68x32xf32>, vector<32x68xf32>, vector<68x68xf32> -> vector<68x68xf32>
    %55 = arith.subf %38, %54 : vector<68x68xf32>
    %56 = arith.mulf %55, %55 : vector<68x68xf32>
    %cst_45 = arith.constant dense<0.000000e+00> : vector<68xf32>
    %57 = vector.multi_reduction <add>, %56, %cst_45 [1] : vector<68x68xf32> to vector<68xf32>
    %58 = vector.shape_cast %57 : vector<68xf32> to vector<68x1xf32>
    %cst_46 = arith.constant dense<0.000000e+00> : vector<1xf32>
    %59 = vector.multi_reduction <add>, %58, %cst_46 [0] : vector<68x1xf32> to vector<1xf32>
    %60 = vector.shape_cast %59 : vector<1xf32> to vector<1x1xf32>
    %cst_47 = arith.constant 0.000000e+00 : f32
    %61 = vector.broadcast %cst_47 : f32 to vector<68x32xf32>
    %62 = arith.subf %61, %49 : vector<68x32xf32>
    %cst_48 = arith.constant 1.000000e-15 : f32
    %63 = vector.broadcast %cst_48 : f32 to vector<68x32xf32>
    %64 = arith.addf %49, %63 : vector<68x32xf32>
    %65 = math.log %64 : vector<68x32xf32>
    %66 = arith.mulf %62, %65 : vector<68x32xf32>
    %cst_49 = arith.constant dense<0.000000e+00> : vector<68xf32>
    %67 = vector.multi_reduction <add>, %66, %cst_49 [1] : vector<68x32xf32> to vector<68xf32>
    %68 = vector.shape_cast %67 : vector<68xf32> to vector<68x1xf32>
    %cst_50 = arith.constant dense<0.000000e+00> : vector<1xf32>
    %69 = vector.multi_reduction <add>, %68, %cst_50 [0] : vector<68x1xf32> to vector<1xf32>
    %70 = vector.shape_cast %69 : vector<1xf32> to vector<1x1xf32>
    %c0_51 = arith.constant 0 : index
    %c0_52 = arith.constant 0 : index
    %c0_53 = arith.constant 0 : index
    %71 = vector.load %arg14[%c0_51, %c0_52, %c0_53] : memref<2x32x128xf32, #tpu.memory_space<vmem>>, vector<1x32x128xf32>
    %72 = vector.shape_cast %71 : vector<1x32x128xf32> to vector<32x128xf32>
    %73 = vector.shape_cast %51 : vector<32x128xf32> to vector<1x32x128xf32>
    tpu.vector_store %arg14[%c0_51, %c0_52, %c0_53], %73 {strides = array<i32>} : memref<2x32x128xf32, #tpu.memory_space<vmem>>, vector<1x32x128xf32>,
    %c0_54 = arith.constant 0 : index
    %c0_55 = arith.constant 0 : index
    %c0_56 = arith.constant 0 : index
    %74 = vector.load %arg15[%c0_54, %c0_55, %c0_56] : memref<2x32x32xf32, #tpu.memory_space<vmem>>, vector<1x32x32xf32>
    %75 = vector.shape_cast %74 : vector<1x32x32xf32> to vector<32x32xf32>
    %76 = vector.shape_cast %53 : vector<32x32xf32> to vector<1x32x32xf32>
    tpu.vector_store %arg15[%c0_54, %c0_55, %c0_56], %76 {strides = array<i32>} : memref<2x32x32xf32, #tpu.memory_space<vmem>>, vector<1x32x32xf32>,
    %77 = vector.extract_strided_slice %35 {offsets = [68, 0], sizes = [68, 128], strides = [1, 1]} : vector<136x128xf32> to vector<68x128xf32>
    %c1 = arith.constant 1 : index
    %c0_57 = arith.constant 0 : index
    %c0_58 = arith.constant 0 : index
    %78 = vector.load %arg3[%c1, %c0_57, %c0_58] : memref<2x68x68xf32, #tpu.memory_space<vmem>>, vector<1x68x68xf32>
    %79 = vector.shape_cast %78 : vector<1x68x68xf32> to vector<68x68xf32>
    %c1_59 = arith.constant 1 : index
    %c0_60 = arith.constant 0 : index
    %c0_61 = arith.constant 0 : index
    %80 = vector.load %arg4[%c1_59, %c0_60, %c0_61] : memref<2x68x32xf32, #tpu.memory_space<vmem>>, vector<1x68x32xf32>
    %81 = vector.shape_cast %80 : vector<1x68x32xf32> to vector<68x32xf32>
    %cst_62 = arith.constant dense<0xFF800000> : vector<68xf32>
    %82 = vector.multi_reduction <maximumf>, %81, %cst_62 [1] : vector<68x32xf32> to vector<68xf32>
    %83 = vector.shape_cast %82 : vector<68xf32> to vector<68x1xf32>
    %84 = vector.broadcast %83 : vector<68x1xf32> to vector<68x32xf32>
    %85 = arith.subf %81, %84 : vector<68x32xf32>
    %86 = math.exp %85 : vector<68x32xf32>
    %cst_63 = arith.constant dense<0.000000e+00> : vector<68xf32>
    %87 = vector.multi_reduction <add>, %86, %cst_63 [1] : vector<68x32xf32> to vector<68xf32>
    %88 = vector.shape_cast %87 : vector<68xf32> to vector<68x1xf32>
    %89 = vector.broadcast %88 : vector<68x1xf32> to vector<68x32xf32>
    %90 = arith.divf %86, %89 : vector<68x32xf32>
    %91 = tpu.transpose %90, [1, 0] : vector<68x32xf32> -> vector<32x68xf32>
    %cst_64 = arith.constant dense<0.000000e+00> : vector<32x128xf32>
    %92 = tpu.matmul %91, %77, %cst_64 {dimension_numbers = #tpu.dot_dimension_numbers<[1], [0], [0], [1], [0, 0, 1, 1], [], []>} : vector<32x68xf32>, vector<68x128xf32>, vector<32x128xf32> -> vector<32x128xf32>
    %cst_65 = arith.constant dense<0.000000e+00> : vector<32x68xf32>
    %93 = tpu.matmul %91, %79, %cst_65 {dimension_numbers = #tpu.dot_dimension_numbers<[1], [0], [0], [1], [0, 0, 1, 1], [], []>} : vector<32x68xf32>, vector<68x68xf32>, vector<32x68xf32> -> vector<32x68xf32>
    %cst_66 = arith.constant dense<0.000000e+00> : vector<32x32xf32>
    %94 = tpu.matmul %93, %90, %cst_66 {dimension_numbers = #tpu.dot_dimension_numbers<[1], [0], [0], [1], [0, 0, 1, 1], [], []>} : vector<32x68xf32>, vector<68x32xf32>, vector<32x32xf32> -> vector<32x32xf32>
    %cst_67 = arith.constant dense<0.000000e+00> : vector<68x68xf32>
    %95 = tpu.matmul %90, %91, %cst_67 {dimension_numbers = #tpu.dot_dimension_numbers<[1], [0], [0], [1], [0, 0, 1, 1], [], []>} : vector<68x32xf32>, vector<32x68xf32>, vector<68x68xf32> -> vector<68x68xf32>
    %96 = arith.subf %79, %95 : vector<68x68xf32>
    %97 = arith.mulf %96, %96 : vector<68x68xf32>
    %cst_68 = arith.constant dense<0.000000e+00> : vector<68xf32>
    %98 = vector.multi_reduction <add>, %97, %cst_68 [1] : vector<68x68xf32> to vector<68xf32>
    %99 = vector.shape_cast %98 : vector<68xf32> to vector<68x1xf32>
    %cst_69 = arith.constant dense<0.000000e+00> : vector<1xf32>
    %100 = vector.multi_reduction <add>, %99, %cst_69 [0] : vector<68x1xf32> to vector<1xf32>
    %101 = vector.shape_cast %100 : vector<1xf32> to vector<1x1xf32>
    %cst_70 = arith.constant 0.000000e+00 : f32
    %102 = vector.broadcast %cst_70 : f32 to vector<68x32xf32>
    %103 = arith.subf %102, %90 : vector<68x32xf32>
    %cst_71 = arith.constant 1.000000e-15 : f32
    %104 = vector.broadcast %cst_71 : f32 to vector<68x32xf32>
    %105 = arith.addf %90, %104 : vector<68x32xf32>
    %106 = math.log %105 : vector<68x32xf32>
    %107 = arith.mulf %103, %106 : vector<68x32xf32>
    %cst_72 = arith.constant dense<0.000000e+00> : vector<68xf32>
    %108 = vector.multi_reduction <add>, %107, %cst_72 [1] : vector<68x32xf32> to vector<68xf32>
    %109 = vector.shape_cast %108 : vector<68xf32> to vector<68x1xf32>
    %cst_73 = arith.constant dense<0.000000e+00> : vector<1xf32>
    %110 = vector.multi_reduction <add>, %109, %cst_73 [0] : vector<68x1xf32> to vector<1xf32>
    %111 = vector.shape_cast %110 : vector<1xf32> to vector<1x1xf32>
    %c1_74 = arith.constant 1 : index
    %c0_75 = arith.constant 0 : index
    %c0_76 = arith.constant 0 : index
    %112 = vector.load %arg14[%c1_74, %c0_75, %c0_76] : memref<2x32x128xf32, #tpu.memory_space<vmem>>, vector<1x32x128xf32>
    %113 = vector.shape_cast %112 : vector<1x32x128xf32> to vector<32x128xf32>
    %114 = vector.shape_cast %92 : vector<32x128xf32> to vector<1x32x128xf32>
    tpu.vector_store %arg14[%c1_74, %c0_75, %c0_76], %114 {strides = array<i32>} : memref<2x32x128xf32, #tpu.memory_space<vmem>>, vector<1x32x128xf32>,
    %c1_77 = arith.constant 1 : index
    %c0_78 = arith.constant 0 : index
    %c0_79 = arith.constant 0 : index
    %115 = vector.load %arg15[%c1_77, %c0_78, %c0_79] : memref<2x32x32xf32, #tpu.memory_space<vmem>>, vector<1x32x32xf32>
    %116 = vector.shape_cast %115 : vector<1x32x32xf32> to vector<32x32xf32>
    %117 = vector.shape_cast %94 : vector<32x32xf32> to vector<1x32x32xf32>
    tpu.vector_store %arg15[%c1_77, %c0_78, %c0_79], %117 {strides = array<i32>} : memref<2x32x32xf32, #tpu.memory_space<vmem>>, vector<1x32x32xf32>,
    %118 = tpu.concatenate %60, %101 in 0 : vector<1x1xf32>, vector<1x1xf32> -> vector<2x1xf32>
    %119 = tpu.concatenate %70, %111 in 0 : vector<1x1xf32>, vector<1x1xf32> -> vector<2x1xf32>
    %120 = vector.shape_cast %118 : vector<2x1xf32> to vector<2x1xf32>
    %121 = vector.broadcast %120 : vector<2x1xf32> to vector<2x128xf32>
    %c0_80 = arith.constant 0 : index
    %c0_81 = arith.constant 0 : index
    %c0_82 = arith.constant 0 : index
    %122 = vector.load %arg16[%c0_80, %c0_81, %c0_82] : memref<1x2x128xf32, #tpu.memory_space<vmem>>, vector<1x2x128xf32>
    %123 = vector.shape_cast %122 : vector<1x2x128xf32> to vector<2x128xf32>
    %124 = vector.shape_cast %121 : vector<2x128xf32> to vector<1x2x128xf32>
    tpu.vector_store %arg16[%c0_80, %c0_81, %c0_82], %124 {strides = array<i32>} : memref<1x2x128xf32, #tpu.memory_space<vmem>>, vector<1x2x128xf32>,
    %125 = vector.shape_cast %119 : vector<2x1xf32> to vector<2x1xf32>
    %126 = vector.broadcast %125 : vector<2x1xf32> to vector<2x128xf32>
    %c0_83 = arith.constant 0 : index
    %c0_84 = arith.constant 0 : index
    %c0_85 = arith.constant 0 : index
    %127 = vector.load %arg17[%c0_83, %c0_84, %c0_85] : memref<1x2x128xf32, #tpu.memory_space<vmem>>, vector<1x2x128xf32>
    %128 = vector.shape_cast %127 : vector<1x2x128xf32> to vector<2x128xf32>
    %129 = vector.shape_cast %126 : vector<2x128xf32> to vector<1x2x128xf32>
    tpu.vector_store %arg17[%c0_83, %c0_84, %c0_85], %129 {strides = array<i32>} : memref<1x2x128xf32, #tpu.memory_space<vmem>>, vector<1x2x128xf32>,
    return
  }
  func.func @transform_0(%arg0: i32) -> (i32, i32, i32) {
    %c0_i32 = arith.constant 0 : i32
    %c0_i32_0 = arith.constant 0 : i32
    %c0_i32_1 = arith.constant 0 : i32
    return %arg0, %c0_i32, %c0_i32_0 : i32, i32, i32
  }
  func.func @transform_1(%arg0: i32) -> (i32, i32) {
    %c0_i32 = arith.constant 0 : i32
    %c0_i32_0 = arith.constant 0 : i32
    %c0_i32_1 = arith.constant 0 : i32
    return %c0_i32, %c0_i32_0 : i32, i32
  }
  func.func @transform_2(%arg0: i32) -> (i32, i32, i32) {
    %c0_i32 = arith.constant 0 : i32
    %c0_i32_0 = arith.constant 0 : i32
    %c0_i32_1 = arith.constant 0 : i32
    return %arg0, %c0_i32, %c0_i32_0 : i32, i32, i32
  }
  func.func @transform_3(%arg0: i32) -> (i32, i32, i32) {
    %c0_i32 = arith.constant 0 : i32
    %c0_i32_0 = arith.constant 0 : i32
    %c0_i32_1 = arith.constant 0 : i32
    return %arg0, %c0_i32, %c0_i32_0 : i32, i32, i32
  }
  func.func @transform_4(%arg0: i32) -> (i32, i32) {
    %c0_i32 = arith.constant 0 : i32
    %c0_i32_0 = arith.constant 0 : i32
    %c0_i32_1 = arith.constant 0 : i32
    return %c0_i32, %c0_i32_0 : i32, i32
  }
  func.func @transform_5(%arg0: i32) -> (i32, i32) {
    %c0_i32 = arith.constant 0 : i32
    %c0_i32_0 = arith.constant 0 : i32
    %c0_i32_1 = arith.constant 0 : i32
    return %c0_i32, %c0_i32_0 : i32, i32
  }
  func.func @transform_6(%arg0: i32) -> (i32, i32) {
    %c0_i32 = arith.constant 0 : i32
    %c0_i32_0 = arith.constant 0 : i32
    %c0_i32_1 = arith.constant 0 : i32
    return %c0_i32, %c0_i32_0 : i32, i32
  }
  func.func @transform_7(%arg0: i32) -> (i32, i32) {
    %c0_i32 = arith.constant 0 : i32
    %c0_i32_0 = arith.constant 0 : i32
    %c0_i32_1 = arith.constant 0 : i32
    return %c0_i32, %c0_i32_0 : i32, i32
  }
  func.func @transform_8(%arg0: i32) -> (i32, i32) {
    %c0_i32 = arith.constant 0 : i32
    %c0_i32_0 = arith.constant 0 : i32
    %c0_i32_1 = arith.constant 0 : i32
    return %c0_i32, %c0_i32_0 : i32, i32
  }
  func.func @transform_9(%arg0: i32) -> (i32, i32) {
    %c0_i32 = arith.constant 0 : i32
    %c0_i32_0 = arith.constant 0 : i32
    %c0_i32_1 = arith.constant 0 : i32
    return %c0_i32, %c0_i32_0 : i32, i32
  }
  func.func @transform_10(%arg0: i32) -> (i32, i32) {
    %c0_i32 = arith.constant 0 : i32
    %c0_i32_0 = arith.constant 0 : i32
    %c0_i32_1 = arith.constant 0 : i32
    return %c0_i32, %c0_i32_0 : i32, i32
  }
  func.func @transform_11(%arg0: i32) -> (i32, i32) {
    %c0_i32 = arith.constant 0 : i32
    %c0_i32_0 = arith.constant 0 : i32
    %c0_i32_1 = arith.constant 0 : i32
    return %c0_i32, %c0_i32_0 : i32, i32
  }
  func.func @transform_12(%arg0: i32) -> (i32, i32) {
    %c0_i32 = arith.constant 0 : i32
    %c0_i32_0 = arith.constant 0 : i32
    %c0_i32_1 = arith.constant 0 : i32
    return %c0_i32, %c0_i32_0 : i32, i32
  }
  func.func @transform_13(%arg0: i32) -> (i32, i32, i32) {
    %c0_i32 = arith.constant 0 : i32
    %c0_i32_0 = arith.constant 0 : i32
    %c0_i32_1 = arith.constant 0 : i32
    return %arg0, %c0_i32, %c0_i32_0 : i32, i32, i32
  }
  func.func @transform_14(%arg0: i32) -> (i32, i32, i32) {
    %c0_i32 = arith.constant 0 : i32
    %c0_i32_0 = arith.constant 0 : i32
    %c0_i32_1 = arith.constant 0 : i32
    return %arg0, %c0_i32, %c0_i32_0 : i32, i32, i32
  }
  func.func @transform_15(%arg0: i32) -> (i32, i32, i32) {
    %c0_i32 = arith.constant 0 : i32
    %c0_i32_0 = arith.constant 0 : i32
    %c0_i32_1 = arith.constant 0 : i32
    return %arg0, %c0_i32, %c0_i32_0 : i32, i32, i32
  }
  func.func @transform_16(%arg0: i32) -> (i32, i32, i32) {
    %c0_i32 = arith.constant 0 : i32
    %c0_i32_0 = arith.constant 0 : i32
    %c0_i32_1 = arith.constant 0 : i32
    return %arg0, %c0_i32, %c0_i32_0 : i32, i32, i32
  }
}

</mosaic_0001>

<llo_original>
// kernel: tpu_custom_call.1
$region0: #{tpu_custom_call.1}
  #allocation0 [shape = 'u32[]', space=smem, size = 0x4, offset = 0x4, fixed_abs, tag = 'smem constant byte address 0x4 - core index']
  #allocation1 [shape = 'u32[144,128]{1,0:T(1,128)}', space=vmem, size = 0x12000, scoped, tag = 'internal scratch']
  %s0 = inlined_call_operand.vmem [shape: f32[2,136,2], index: 0, kind: input, shape index: {}]
  %s1 = inlined_call_operand.vmem [shape: f32[136,136], index: 1, kind: input, shape index: {}]
  %s2 = inlined_call_operand.vmem [shape: f32[4,68,68], index: 2, kind: input, shape index: {}]
  %s3 = inlined_call_operand.vmem [shape: f32[4,68,32], index: 3, kind: input, shape index: {}]
  %s4 = inlined_call_operand.vmem [shape: f32[2,128], index: 4, kind: input, shape index: {}]
  %s5 = inlined_call_operand.vmem [shape: f32[2,128], index: 5, kind: input, shape index: {}]
  %s6 = inlined_call_operand.vmem [shape: f32[1,128], index: 6, kind: input, shape index: {}]
  %s7 = inlined_call_operand.vmem [shape: f32[128,128], index: 7, kind: input, shape index: {}]
  %s8 = inlined_call_operand.vmem [shape: f32[128,128], index: 8, kind: input, shape index: {}]
  %s9 = inlined_call_operand.vmem [shape: f32[1,128], index: 9, kind: input, shape index: {}]
  %s10 = inlined_call_operand.vmem [shape: f32[128,128], index: 10, kind: input, shape index: {}]
  %s11 = inlined_call_operand.vmem [shape: f32[128,128], index: 11, kind: input, shape index: {}]
  %s12 = inlined_call_operand.vmem [shape: f32[1,128], index: 12, kind: input, shape index: {}]
  %s13 = inlined_call_operand.hbm [shape: f32[4,32,128], index: 13, kind: output, shape index: {0}]
  %s14 = inlined_call_operand.hbm [shape: f32[4,32,32], index: 14, kind: output, shape index: {1}]
  %s15 = inlined_call_operand.hbm [shape: f32[2,2,128], index: 15, kind: output, shape index: {2}]
  %s16 = inlined_call_operand.hbm [shape: f32[2,2,128], index: 16, kind: output, shape index: {3}]
  %17 = xla_tuple %s13, %s14, %s15, %s16
  %s18 = sld [smem:[#allocation0]]
  $region109: #{tpu_custom_call.1} parent=0
    _
  %s20 = ssub.s32 1, %s18
  %s21 = scalar_select 0, %s20, %s18
  $region1: #{tpu_custom_call.1} parent=0
    #allocation2 [shape = 'u8[65536]{0}', space=vmem, size = 0x10000, scoped, tag = 'output window, operand 0']
    #allocation3 [shape = 's32[2]{0}', space=sflag, size = 0x8, scoped, tag = 'scoped memory for tpu_custom_call.1']
    #allocation4 [shape = 'u8[65536]{0}', space=vmem, size = 0x10000, scoped, tag = 'output window, operand 1']
    #allocation5 [shape = 's32[2]{0}', space=sflag, size = 0x8, scoped, tag = 'scoped memory for tpu_custom_call.1']
    #allocation6 [shape = 'u8[2048]{0}', space=vmem, size = 0x800, scoped, tag = 'output window, operand 2']
    #allocation7 [shape = 'u8[2048]{0}', space=vmem, size = 0x800, scoped, tag = 'output window, operand 3']
    #allocation8 [shape = 's32[2]{0}', space=sflag, size = 0x8, scoped, tag = 'scoped memory for tpu_custom_call.1']
    %22 = vsyncpa [#allocation3], 0
    %s23 = scalar_lea.sflag [#allocation3], 1
    %24 = vsyncpa %s23, 0
    %25 = vsyncpa [#allocation5], 0
    %s26 = scalar_lea.sflag [#allocation5], 1
    %27 = vsyncpa %s26, 0
    %28 = vsyncpa [#allocation8], 0
    %s29 = scalar_lea.sflag [#allocation8], 1
    %30 = vsyncpa %s29, 0
    loop: start=0, step=1, limit=4
    $region2: #{tpu_custom_call.1} parent=1 // loop_pre_header
      _
    $region3: #{tpu_custom_call.1} parent=1 // loop_header
      %s32 = sphi 0, %s36
      %p33 = scmp.ge.s32.totalorder %s32, 4
      %s42 = sphi 0, %s44
      %s45 = sphi 0, %s42
      %s46 = sphi 0, %s45
      %s62 = sphi 0, %s46
      %s66 = sphi 0, %s66
      %s68 = sphi 0, %s66
      %s69 = sphi 0, %s68
      %s83 = sphi 0, %s69
      %s89 = sphi 0, %s91
      %s92 = sphi 0, %s89
      %s93 = sphi 0, %s92
      %s109 = sphi 0, %s93
      %s115 = sphi 0, %s117
      %s118 = sphi 0, %s115
      %s119 = sphi 0, %s118
      %s135 = sphi 0, %s119
      %s139 = sphi 0, %s139
      %s141 = sphi 0, %s139
      %s142 = sphi 0, %s141
      %s156 = sphi 0, %s142
      %s160 = sphi 0, %s160
      %s162 = sphi 0, %s160
      %s163 = sphi 0, %s162
      %s177 = sphi 0, %s163
      %s181 = sphi 0, %s181
      %s183 = sphi 0, %s181
      %s184 = sphi 0, %s183
      %s198 = sphi 0, %s184
      %s202 = sphi 0, %s202
      %s204 = sphi 0, %s202
      %s205 = sphi 0, %s204
      %s219 = sphi 0, %s205
      %s223 = sphi 0, %s223
      %s225 = sphi 0, %s223
      %s226 = sphi 0, %s225
      %s240 = sphi 0, %s226
      %s244 = sphi 0, %s244
      %s246 = sphi 0, %s244
      %s247 = sphi 0, %s246
      %s261 = sphi 0, %s247
      %s265 = sphi 0, %s265
      %s267 = sphi 0, %s265
      %s268 = sphi 0, %s267
      %s282 = sphi 0, %s268
      %s286 = sphi 0, %s286
      %s288 = sphi 0, %s286
      %s289 = sphi 0, %s288
      %s303 = sphi 0, %s289
      %s307 = sphi 0, %s307
      %s309 = sphi 0, %s307
      %s310 = sphi 0, %s309
      %s324 = sphi 0, %s310
      %s330 = sphi 0, %s332
      %s333 = sphi 0, %s330
      %s334 = sphi 0, %s333
      %s350 = sphi 0, %s334
      %s356 = sphi 0, %s358
      %s359 = sphi 0, %s356
      %s360 = sphi 0, %s359
      %s376 = sphi 0, %s360
      %s382 = sphi 0, %s384
      %s385 = sphi 0, %s382
      %s386 = sphi 0, %s385
      %s402 = sphi 0, %s386
      %s408 = sphi 0, %s410
      %s411 = sphi 0, %s408
      %s412 = sphi 0, %s411
      %s428 = sphi 0, %s412
    $region4: #{tpu_custom_call.1} parent=1 // loop_header_branch
      %35 = sbr.rel (%p33) target = $region8
    $region5: #{tpu_custom_call.1} parent=1 // loop_body
      %s37 = ssub.s32 %s32, 1
      %s38 = ssub.s32 %s32, 2
      %s39 = sadd.s32 %s32, 1
      %s40 = ssub.s32 %s32, %s39
      %p41 = scmp.eq.s32.totalorder %s40, 0
      %s43 = sadd.s32 %s42, 1
      %s44 = scalar_select %p41, %s42, %s43
      %p47 = pneg %p41
      %p48 = scmp.eq.s32.totalorder %s32, 1
      %p49 = por %p47, %p48
      %p50 = scmp.ne.s32.totalorder %s42, %s45
      %p51 = scmp.eq.s32.totalorder %s32, 0
      %p52 = por %p50, %p51
      %p53 = scmp.ne.s32.totalorder %s42, %s45
      %p54 = scmp.eq.s32.totalorder %s37, 1
      %p55 = por %p53, %p54
      %p56 = scmp.ne.s32.totalorder %s45, %s46
      %p57 = scmp.eq.s32.totalorder %s37, 0
      %p58 = por %p56, %p57
      %p59 = scmp.ne.s32.totalorder %s45, %s46
      %p60 = scmp.eq.s32.totalorder %s38, 1
      %p61 = por %p59, %p60
      %p63 = scmp.ne.s32.totalorder %s46, %s62
      %p64 = scmp.eq.s32.totalorder %s38, 0
      %p65 = por %p63, %p64
      %s67 = sadd.s32 %s66, 1
      %p70 = scmp.eq.s32.totalorder %s32, 1
      %p71 = scmp.ne.s32.totalorder %s66, %s68
      %p72 = scmp.eq.s32.totalorder %s32, 0
      %p73 = por %p71, %p72
      %p74 = scmp.ne.s32.totalorder %s66, %s68
      %p75 = scmp.eq.s32.totalorder %s37, 1
      %p76 = por %p74, %p75
      %p77 = scmp.ne.s32.totalorder %s68, %s69
      %p78 = scmp.eq.s32.totalorder %s37, 0
      %p79 = por %p77, %p78
      %p80 = scmp.ne.s32.totalorder %s68, %s69
      %p81 = scmp.eq.s32.totalorder %s38, 1
      %p82 = por %p80, %p81
      %p84 = scmp.ne.s32.totalorder %s69, %s83
      %p85 = scmp.eq.s32.totalorder %s38, 0
      %p86 = por %p84, %p85
      %s87 = ssub.s32 %s32, %s39
      %p88 = scmp.eq.s32.totalorder %s87, 0
      %s90 = sadd.s32 %s89, 1
      %s91 = scalar_select %p88, %s89, %s90
      %p94 = pneg %p88
      %p95 = scmp.eq.s32.totalorder %s32, 1
      %p96 = por %p94, %p95
      %p97 = scmp.ne.s32.totalorder %s89, %s92
      %p98 = scmp.eq.s32.totalorder %s32, 0
      %p99 = por %p97, %p98
      %p100 = scmp.ne.s32.totalorder %s89, %s92
      %p101 = scmp.eq.s32.totalorder %s37, 1
      %p102 = por %p100, %p101
      %p103 = scmp.ne.s32.totalorder %s92, %s93
      %p104 = scmp.eq.s32.totalorder %s37, 0
      %p105 = por %p103, %p104
      %p106 = scmp.ne.s32.totalorder %s92, %s93
      %p107 = scmp.eq.s32.totalorder %s38, 1
      %p108 = por %p106, %p107
      %p110 = scmp.ne.s32.totalorder %s93, %s109
      %p111 = scmp.eq.s32.totalorder %s38, 0
      %p112 = por %p110, %p111
      %s113 = ssub.s32 %s32, %s39
      %p114 = scmp.eq.s32.totalorder %s113, 0
      %s116 = sadd.s32 %s115, 1
      %s117 = scalar_select %p114, %s115, %s116
      %p120 = pneg %p114
      %p121 = scmp.eq.s32.totalorder %s32, 1
      %p122 = por %p120, %p121
      %p123 = scmp.ne.s32.totalorder %s115, %s118
      %p124 = scmp.eq.s32.totalorder %s32, 0
      %p125 = por %p123, %p124
      %p126 = scmp.ne.s32.totalorder %s115, %s118
      %p127 = scmp.eq.s32.totalorder %s37, 1
      %p128 = por %p126, %p127
      %p129 = scmp.ne.s32.totalorder %s118, %s119
      %p130 = scmp.eq.s32.totalorder %s37, 0
      %p131 = por %p129, %p130
      %p132 = scmp.ne.s32.totalorder %s118, %s119
      %p133 = scmp.eq.s32.totalorder %s38, 1
      %p134 = por %p132, %p133
      %p136 = scmp.ne.s32.totalorder %s119, %s135
      %p137 = scmp.eq.s32.totalorder %s38, 0
      %p138 = por %p136, %p137
      %s140 = sadd.s32 %s139, 1
      %p143 = scmp.eq.s32.totalorder %s32, 1
      %p144 = scmp.ne.s32.totalorder %s139, %s141
      %p145 = scmp.eq.s32.totalorder %s32, 0
      %p146 = por %p144, %p145
      %p147 = scmp.ne.s32.totalorder %s139, %s141
      %p148 = scmp.eq.s32.totalorder %s37, 1
      %p149 = por %p147, %p148
      %p150 = scmp.ne.s32.totalorder %s141, %s142
      %p151 = scmp.eq.s32.totalorder %s37, 0
      %p152 = por %p150, %p151
      %p153 = scmp.ne.s32.totalorder %s141, %s142
      %p154 = scmp.eq.s32.totalorder %s38, 1
      %p155 = por %p153, %p154
      %p157 = scmp.ne.s32.totalorder %s142, %s156
      %p158 = scmp.eq.s32.totalorder %s38, 0
      %p159 = por %p157, %p158
      %s161 = sadd.s32 %s160, 1
      %p164 = scmp.eq.s32.totalorder %s32, 1
      %p165 = scmp.ne.s32.totalorder %s160, %s162
      %p166 = scmp.eq.s32.totalorder %s32, 0
      %p167 = por %p165, %p166
      %p168 = scmp.ne.s32.totalorder %s160, %s162
      %p169 = scmp.eq.s32.totalorder %s37, 1
      %p170 = por %p168, %p169
      %p171 = scmp.ne.s32.totalorder %s162, %s163
      %p172 = scmp.eq.s32.totalorder %s37, 0
      %p173 = por %p171, %p172
      %p174 = scmp.ne.s32.totalorder %s162, %s163
      %p175 = scmp.eq.s32.totalorder %s38, 1
      %p176 = por %p174, %p175
      %p178 = scmp.ne.s32.totalorder %s163, %s177
      %p179 = scmp.eq.s32.totalorder %s38, 0
      %p180 = por %p178, %p179
      %s182 = sadd.s32 %s181, 1
      %p185 = scmp.eq.s32.totalorder %s32, 1
      %p186 = scmp.ne.s32.totalorder %s181, %s183
      %p187 = scmp.eq.s32.totalorder %s32, 0
      %p188 = por %p186, %p187
      %p189 = scmp.ne.s32.totalorder %s181, %s183
      %p190 = scmp.eq.s32.totalorder %s37, 1
      %p191 = por %p189, %p190
      %p192 = scmp.ne.s32.totalorder %s183, %s184
      %p193 = scmp.eq.s32.totalorder %s37, 0
      %p194 = por %p192, %p193
      %p195 = scmp.ne.s32.totalorder %s183, %s184
      %p196 = scmp.eq.s32.totalorder %s38, 1
      %p197 = por %p195, %p196
      %p199 = scmp.ne.s32.totalorder %s184, %s198
      %p200 = scmp.eq.s32.totalorder %s38, 0
      %p201 = por %p199, %p200
      %s203 = sadd.s32 %s202, 1
      %p206 = scmp.eq.s32.totalorder %s32, 1
      %p207 = scmp.ne.s32.totalorder %s202, %s204
      %p208 = scmp.eq.s32.totalorder %s32, 0
      %p209 = por %p207, %p208
      %p210 = scmp.ne.s32.totalorder %s202, %s204
      %p211 = scmp.eq.s32.totalorder %s37, 1
      %p212 = por %p210, %p211
      %p213 = scmp.ne.s32.totalorder %s204, %s205
      %p214 = scmp.eq.s32.totalorder %s37, 0
      %p215 = por %p213, %p214
      %p216 = scmp.ne.s32.totalorder %s204, %s205
      %p217 = scmp.eq.s32.totalorder %s38, 1
      %p218 = por %p216, %p217
      %p220 = scmp.ne.s32.totalorder %s205, %s219
      %p221 = scmp.eq.s32.totalorder %s38, 0
      %p222 = por %p220, %p221
      %s224 = sadd.s32 %s223, 1
      %p227 = scmp.eq.s32.totalorder %s32, 1
      %p228 = scmp.ne.s32.totalorder %s223, %s225
      %p229 = scmp.eq.s32.totalorder %s32, 0
      %p230 = por %p228, %p229
      %p231 = scmp.ne.s32.totalorder %s223, %s225
      %p232 = scmp.eq.s32.totalorder %s37, 1
      %p233 = por %p231, %p232
      %p234 = scmp.ne.s32.totalorder %s225, %s226
      %p235 = scmp.eq.s32.totalorder %s37, 0
      %p236 = por %p234, %p235
      %p237 = scmp.ne.s32.totalorder %s225, %s226
      %p238 = scmp.eq.s32.totalorder %s38, 1
      %p239 = por %p237, %p238
      %p241 = scmp.ne.s32.totalorder %s226, %s240
      %p242 = scmp.eq.s32.totalorder %s38, 0
      %p243 = por %p241, %p242
      %s245 = sadd.s32 %s244, 1
      %p248 = scmp.eq.s32.totalorder %s32, 1
      %p249 = scmp.ne.s32.totalorder %s244, %s246
      %p250 = scmp.eq.s32.totalorder %s32, 0
      %p251 = por %p249, %p250
      %p252 = scmp.ne.s32.totalorder %s244, %s246
      %p253 = scmp.eq.s32.totalorder %s37, 1
      %p254 = por %p252, %p253
      %p255 = scmp.ne.s32.totalorder %s246, %s247
      %p256 = scmp.eq.s32.totalorder %s37, 0
      %p257 = por %p255, %p256
      %p258 = scmp.ne.s32.totalorder %s246, %s247
      %p259 = scmp.eq.s32.totalorder %s38, 1
      %p260 = por %p258, %p259
      %p262 = scmp.ne.s32.totalorder %s247, %s261
      %p263 = scmp.eq.s32.totalorder %s38, 0
      %p264 = por %p262, %p263
      %s266 = sadd.s32 %s265, 1
      %p269 = scmp.eq.s32.totalorder %s32, 1
      %p270 = scmp.ne.s32.totalorder %s265, %s267
      %p271 = scmp.eq.s32.totalorder %s32, 0
      %p272 = por %p270, %p271
      %p273 = scmp.ne.s32.totalorder %s265, %s267
      %p274 = scmp.eq.s32.totalorder %s37, 1
      %p275 = por %p273, %p274
      %p276 = scmp.ne.s32.totalorder %s267, %s268
      %p277 = scmp.eq.s32.totalorder %s37, 0
      %p278 = por %p276, %p277
      %p279 = scmp.ne.s32.totalorder %s267, %s268
      %p280 = scmp.eq.s32.totalorder %s38, 1
      %p281 = por %p279, %p280
      %p283 = scmp.ne.s32.totalorder %s268, %s282
      %p284 = scmp.eq.s32.totalorder %s38, 0
      %p285 = por %p283, %p284
      %s287 = sadd.s32 %s286, 1
      %p290 = scmp.eq.s32.totalorder %s32, 1
      %p291 = scmp.ne.s32.totalorder %s286, %s288
      %p292 = scmp.eq.s32.totalorder %s32, 0
      %p293 = por %p291, %p292
      %p294 = scmp.ne.s32.totalorder %s286, %s288
      %p295 = scmp.eq.s32.totalorder %s37, 1
      %p296 = por %p294, %p295
      %p297 = scmp.ne.s32.totalorder %s288, %s289
      %p298 = scmp.eq.s32.totalorder %s37, 0
      %p299 = por %p297, %p298
      %p300 = scmp.ne.s32.totalorder %s288, %s289
      %p301 = scmp.eq.s32.totalorder %s38, 1
      %p302 = por %p300, %p301
      %p304 = scmp.ne.s32.totalorder %s289, %s303
      %p305 = scmp.eq.s32.totalorder %s38, 0
      %p306 = por %p304, %p305
      %s308 = sadd.s32 %s307, 1
      %p311 = scmp.eq.s32.totalorder %s32, 1
      %p312 = scmp.ne.s32.totalorder %s307, %s309
      %p313 = scmp.eq.s32.totalorder %s32, 0
      %p314 = por %p312, %p313
      %p315 = scmp.ne.s32.totalorder %s307, %s309
      %p316 = scmp.eq.s32.totalorder %s37, 1
      %p317 = por %p315, %p316
      %p318 = scmp.ne.s32.totalorder %s309, %s310
      %p319 = scmp.eq.s32.totalorder %s37, 0
      %p320 = por %p318, %p319
      %p321 = scmp.ne.s32.totalorder %s309, %s310
      %p322 = scmp.eq.s32.totalorder %s38, 1
      %p323 = por %p321, %p322
      %p325 = scmp.ne.s32.totalorder %s310, %s324
      %p326 = scmp.eq.s32.totalorder %s38, 0
      %p327 = por %p325, %p326
      %s328 = ssub.s32 %s32, %s39
      %p329 = scmp.eq.s32.totalorder %s328, 0
      %s331 = sadd.s32 %s330, 1
      %s332 = scalar_select %p329, %s330, %s331
      %p335 = pneg %p329
      %p336 = scmp.eq.s32.totalorder %s32, 1
      %p337 = por %p335, %p336
      %p338 = scmp.ne.s32.totalorder %s330, %s333
      %p339 = scmp.eq.s32.totalorder %s32, 0
      %p340 = por %p338, %p339
      %p341 = scmp.ne.s32.totalorder %s330, %s333
      %p342 = scmp.eq.s32.totalorder %s37, 1
      %p343 = por %p341, %p342
      %p344 = scmp.ne.s32.totalorder %s333, %s334
      %p345 = scmp.eq.s32.totalorder %s37, 0
      %p346 = por %p344, %p345
      %p347 = scmp.ne.s32.totalorder %s333, %s334
      %p348 = scmp.eq.s32.totalorder %s38, 1
      %p349 = por %p347, %p348
      %p351 = scmp.ne.s32.totalorder %s334, %s350
      %p352 = scmp.eq.s32.totalorder %s38, 0
      %p353 = por %p351, %p352
      %s354 = ssub.s32 %s32, %s39
      %p355 = scmp.eq.s32.totalorder %s354, 0
      %s357 = sadd.s32 %s356, 1
      %s358 = scalar_select %p355, %s356, %s357
      %p361 = pneg %p355
      %p362 = scmp.eq.s32.totalorder %s32, 1
      %p363 = por %p361, %p362
      %p364 = scmp.ne.s32.totalorder %s356, %s359
      %p365 = scmp.eq.s32.totalorder %s32, 0
      %p366 = por %p364, %p365
      %p367 = scmp.ne.s32.totalorder %s356, %s359
      %p368 = scmp.eq.s32.totalorder %s37, 1
      %p369 = por %p367, %p368
      %p370 = scmp.ne.s32.totalorder %s359, %s360
      %p371 = scmp.eq.s32.totalorder %s37, 0
      %p372 = por %p370, %p371
      %p373 = scmp.ne.s32.totalorder %s359, %s360
      %p374 = scmp.eq.s32.totalorder %s38, 1
      %p375 = por %p373, %p374
      %p377 = scmp.ne.s32.totalorder %s360, %s376
      %p378 = scmp.eq.s32.totalorder %s38, 0
      %p379 = por %p377, %p378
      %s380 = ssub.s32 %s32, %s39
      %p381 = scmp.eq.s32.totalorder %s380, 0
      %s383 = sadd.s32 %s382, 1
      %s384 = scalar_select %p381, %s382, %s383
      %p387 = pneg %p381
      %p388 = scmp.eq.s32.totalorder %s32, 1
      %p389 = por %p387, %p388
      %p390 = scmp.ne.s32.totalorder %s382, %s385
      %p391 = scmp.eq.s32.totalorder %s32, 0
      %p392 = por %p390, %p391
      %p393 = scmp.ne.s32.totalorder %s382, %s385
      %p394 = scmp.eq.s32.totalorder %s37, 1
      %p395 = por %p393, %p394
      %p396 = scmp.ne.s32.totalorder %s385, %s386
      %p397 = scmp.eq.s32.totalorder %s37, 0
      %p398 = por %p396, %p397
      %p399 = scmp.ne.s32.totalorder %s385, %s386
      %p400 = scmp.eq.s32.totalorder %s38, 1
      %p401 = por %p399, %p400
      %p403 = scmp.ne.s32.totalorder %s386, %s402
      %p404 = scmp.eq.s32.totalorder %s38, 0
      %p405 = por %p403, %p404
      %s406 = ssub.s32 %s32, %s39
      %p407 = scmp.eq.s32.totalorder %s406, 0
      %s409 = sadd.s32 %s408, 1
      %s410 = scalar_select %p407, %s408, %s409
      %p413 = pneg %p407
      %p414 = scmp.eq.s32.totalorder %s32, 1
      %p415 = por %p413, %p414
      %p416 = scmp.ne.s32.totalorder %s408, %s411
      %p417 = scmp.eq.s32.totalorder %s32, 0
      %p418 = por %p416, %p417
      %p419 = scmp.ne.s32.totalorder %s408, %s411
      %p420 = scmp.eq.s32.totalorder %s37, 1
      %p421 = por %p419, %p420
      %p422 = scmp.ne.s32.totalorder %s411, %s412
      %p423 = scmp.eq.s32.totalorder %s37, 0
      %p424 = por %p422, %p423
      %p425 = scmp.ne.s32.totalorder %s411, %s412
      %p426 = scmp.eq.s32.totalorder %s38, 1
      %p427 = por %p425, %p426
      %p429 = scmp.ne.s32.totalorder %s412, %s428
      %p430 = scmp.eq.s32.totalorder %s38, 0
      %p431 = por %p429, %p430
      %p432 = scmp.le.s32.totalorder 1, %s32
      %p433 = scmp.lt.s32.totalorder %s32, 3
      %p434 = pnand %p432, %p433
      %p435 = pneg %p434
      // Predicated region
      $region9: #{tpu_custom_call.1} parent=5 // pred_check
        _
      $region10: #{tpu_custom_call.1} parent=5 // pred_check_branch
        %437 = sbr.rel (%p434) target = $region12
      $region11: #{tpu_custom_call.1} parent=5 // pred_region
        %s438 = ssub.s32 %s32, 1
        // Predicated region
        $region13: #{tpu_custom_call.1} parent=11 // pred_check
          %p439 = pneg %p79
        $region14: #{tpu_custom_call.1} parent=11 // pred_check_branch
          %441 = sbr.rel (%p439) target = $region16
        $region15: #{tpu_custom_call.1} parent=11 // pred_region
          _
        $region16: #{tpu_custom_call.1} parent=11 // pred_fallthru
          _
        // Predicated region
        $region17: #{tpu_custom_call.1} parent=11 // pred_check
          %p442 = pneg %p152
        $region18: #{tpu_custom_call.1} parent=11 // pred_check_branch
          %444 = sbr.rel (%p442) target = $region20
        $region19: #{tpu_custom_call.1} parent=11 // pred_region
          _
        $region20: #{tpu_custom_call.1} parent=11 // pred_fallthru
          _
        // Predicated region
        $region21: #{tpu_custom_call.1} parent=11 // pred_check
          %p445 = pneg %p173
        $region22: #{tpu_custom_call.1} parent=11 // pred_check_branch
          %447 = sbr.rel (%p445) target = $region24
        $region23: #{tpu_custom_call.1} parent=11 // pred_region
          _
        $region24: #{tpu_custom_call.1} parent=11 // pred_fallthru
          _
        // Predicated region
        $region25: #{tpu_custom_call.1} parent=11 // pred_check
          %p448 = pneg %p194
        $region26: #{tpu_custom_call.1} parent=11 // pred_check_branch
          %450 = sbr.rel (%p448) target = $region28
        $region27: #{tpu_custom_call.1} parent=11 // pred_region
          _
        $region28: #{tpu_custom_call.1} parent=11 // pred_fallthru
          _
        // Predicated region
        $region29: #{tpu_custom_call.1} parent=11 // pred_check
          %p451 = pneg %p215
        $region30: #{tpu_custom_call.1} parent=11 // pred_check_branch
          %453 = sbr.rel (%p451) target = $region32
        $region31: #{tpu_custom_call.1} parent=11 // pred_region
          _
        $region32: #{tpu_custom_call.1} parent=11 // pred_fallthru
          _
        // Predicated region
        $region33: #{tpu_custom_call.1} parent=11 // pred_check
          %p454 = pneg %p236
        $region34: #{tpu_custom_call.1} parent=11 // pred_check_branch
          %456 = sbr.rel (%p454) target = $region36
        $region35: #{tpu_custom_call.1} parent=11 // pred_region
          _
        $region36: #{tpu_custom_call.1} parent=11 // pred_fallthru
          _
        // Predicated region
        $region37: #{tpu_custom_call.1} parent=11 // pred_check
          %p457 = pneg %p257
        $region38: #{tpu_custom_call.1} parent=11 // pred_check_branch
          %459 = sbr.rel (%p457) target = $region40
        $region39: #{tpu_custom_call.1} parent=11 // pred_region
          _
        $region40: #{tpu_custom_call.1} parent=11 // pred_fallthru
          _
        // Predicated region
        $region41: #{tpu_custom_call.1} parent=11 // pred_check
          %p460 = pneg %p278
        $region42: #{tpu_custom_call.1} parent=11 // pred_check_branch
          %462 = sbr.rel (%p460) target = $region44
        $region43: #{tpu_custom_call.1} parent=11 // pred_region
          _
        $region44: #{tpu_custom_call.1} parent=11 // pred_fallthru
          _
        // Predicated region
        $region45: #{tpu_custom_call.1} parent=11 // pred_check
          %p463 = pneg %p299
        $region46: #{tpu_custom_call.1} parent=11 // pred_check_branch
          %465 = sbr.rel (%p463) target = $region48
        $region47: #{tpu_custom_call.1} parent=11 // pred_region
          _
        $region48: #{tpu_custom_call.1} parent=11 // pred_fallthru
          _
        // Predicated region
        $region49: #{tpu_custom_call.1} parent=11 // pred_check
          %p466 = pneg %p320
        $region50: #{tpu_custom_call.1} parent=11 // pred_check_branch
          %468 = sbr.rel (%p466) target = $region52
        $region51: #{tpu_custom_call.1} parent=11 // pred_region
          _
        $region52: #{tpu_custom_call.1} parent=11 // pred_fallthru
          _
      $region12: #{tpu_custom_call.1} parent=5 // pred_fallthru
        _
      %p469 = scmp.lt.s32.totalorder %s32, 2
      // Predicated region
      $region53: #{tpu_custom_call.1} parent=5 // pred_check
        %p470 = pneg %p469
      $region54: #{tpu_custom_call.1} parent=5 // pred_check_branch
        %472 = sbr.rel (%p470) target = $region56
      $region55: #{tpu_custom_call.1} parent=5 // pred_region
        // Predicated region
        $region57: #{tpu_custom_call.1} parent=55 // pred_check
          %p473 = pneg %p52
        $region58: #{tpu_custom_call.1} parent=55 // pred_check_branch
          %475 = sbr.rel (%p473) target = $region60
        $region59: #{tpu_custom_call.1} parent=55 // pred_region
          %p476 = scmp.lt.s32.totalorder %s32, 1
          %s477 = scalar_select %p476, %s32, 1
          %s478 = smul.addr %s477, 17
          %s479 = smul.addr %s478, 8
          %s480 = scalar_lea.vmem %s0, %s479
        $region60: #{tpu_custom_call.1} parent=55 // pred_fallthru
          _
        // Predicated region
        $region61: #{tpu_custom_call.1} parent=55 // pred_check
          %p481 = pneg %p99
        $region62: #{tpu_custom_call.1} parent=55 // pred_check_branch
          %483 = sbr.rel (%p481) target = $region64
        $region63: #{tpu_custom_call.1} parent=55 // pred_region
          %s484 = smul.u32 2, %s32
          %p485 = scmp.lt.s32.totalorder %s484, 3
          %s486 = scalar_select %p485, %s484, 3
          %s487 = smul.addr %s486, 9
          %s488 = smul.addr %s487, 8
          %s489 = scalar_lea.vmem %s2, %s488
          %s490 = smul.u32 2, %s32
        $region64: #{tpu_custom_call.1} parent=55 // pred_fallthru
          _
        // Predicated region
        $region65: #{tpu_custom_call.1} parent=55 // pred_check
          %p491 = pneg %p125
        $region66: #{tpu_custom_call.1} parent=55 // pred_check_branch
          %493 = sbr.rel (%p491) target = $region68
        $region67: #{tpu_custom_call.1} parent=55 // pred_region
          %s494 = smul.u32 2, %s32
          %p495 = scmp.lt.s32.totalorder %s494, 3
          %s496 = scalar_select %p495, %s494, 3
          %s497 = smul.addr %s496, 9
          %s498 = smul.addr %s497, 8
          %s499 = scalar_lea.vmem %s3, %s498
          %s500 = smul.u32 2, %s32
        $region68: #{tpu_custom_call.1} parent=55 // pred_fallthru
          _
      $region56: #{tpu_custom_call.1} parent=5 // pred_fallthru
        _
      %p501 = scmp.le.s32.totalorder 1, %s32
      %p502 = scmp.lt.s32.totalorder %s32, 3
      %p503 = pnand %p501, %p502
      %p504 = pneg %p503
      // Predicated region
      $region69: #{tpu_custom_call.1} parent=5 // pred_check
        _
      $region70: #{tpu_custom_call.1} parent=5 // pred_check_branch
        %506 = sbr.rel (%p503) target = $region72
      $region71: #{tpu_custom_call.1} parent=5 // pred_region
        %s507 = ssub.s32 %s32, 1
        %p508 = scmp.lt.s32.totalorder %s37, 1
        %s509 = scalar_select %p508, %s37, 1
        %s510 = smul.addr %s509, 17
        %s511 = smul.addr %s510, 8
        %s512 = scalar_lea.vmem %s0, %s511
        %p513 = pneg %p58
        %p514 = pneg %p55
        %p515 = pneg %p79
        %p516 = pneg %p76
        %s517 = smul.u32 2, %s37
        %p518 = scmp.lt.s32.totalorder %s517, 3
        %s519 = scalar_select %p518, %s517, 3
        %s520 = smul.addr %s519, 9
        %s521 = smul.addr %s520, 8
        %s522 = scalar_lea.vmem %s2, %s521
        %p523 = pneg %p105
        %p524 = pneg %p102
        %s525 = smul.u32 2, %s37
        %p526 = scmp.lt.s32.totalorder %s525, 3
        %s527 = scalar_select %p526, %s525, 3
        %s528 = smul.addr %s527, 9
        %s529 = smul.addr %s528, 8
        %s530 = scalar_lea.vmem %s3, %s529
        %p531 = pneg %p131
        %p532 = pneg %p128
        %p533 = pneg %p152
        %p534 = pneg %p149
        %p535 = pneg %p173
        %p536 = pneg %p170
        %p537 = pneg %p194
        %p538 = pneg %p191
        %p539 = pneg %p215
        %p540 = pneg %p212
        %p541 = pneg %p236
        %p542 = pneg %p233
        %p543 = pneg %p257
        %p544 = pneg %p254
        %p545 = pneg %p278
        %p546 = pneg %p275
        %p547 = pneg %p299
        %p548 = pneg %p296
        %p549 = pneg %p320
        %p550 = pneg %p317
        %p551 = pneg %p346
        %p552 = pneg %p343
        %s553 = sand.u32 %s333, 1
        %s554 = scalar_lea.sflag [#allocation3], %s553
        %s555 = sand.u32 %s333, 1
        %s556 = smul.addr %s555, 64
        %s557 = scalar_lea.vmem [#allocation2], %s556
        %p558 = pneg %p372
        %p559 = pneg %p369
        %s560 = sand.u32 %s37, 1
        %s561 = scalar_lea.sflag [#allocation5], %s560
        %s562 = sand.u32 %s359, 1
        %s563 = smul.addr %s562, 64
        %s564 = scalar_lea.vmem [#allocation4], %s563
        %p565 = pneg %p398
        %p566 = pneg %p395
        %s567 = sand.u32 %s37, 1
        %s568 = scalar_lea.sflag [#allocation5], %s567
        %s569 = sand.u32 %s385, 1
        %s570 = smul.addr %s569, 2
        %s571 = scalar_lea.vmem [#allocation6], %s570
        %p572 = pneg %p424
        %p573 = pneg %p421
        %s574 = sand.u32 %s411, 1
        %s575 = scalar_lea.sflag [#allocation8], %s574
        %s576 = sand.u32 %s411, 1
        %s577 = smul.addr %s576, 2
        %s578 = scalar_lea.vmem [#allocation7], %s577
        %p579 = scmp.lt.s32.totalorder %s37, 1
        %s580 = scalar_select %p579, %s37, 1
        %s581 = smul.addr %s580, 17
        %s582 = smul.addr %s581, 8
        %s583 = scalar_lea.vmem %s0, %s582
        %s584 = smul.u32 2, %s37
        %p585 = scmp.lt.s32.totalorder %s584, 3
        %s586 = scalar_select %p585, %s584, 3
        %s587 = smul.addr %s586, 9
        %s588 = smul.addr %s587, 8
        %s589 = scalar_lea.vmem %s2, %s588
        %s590 = smul.u32 2, %s37
        %s591 = smul.u32 2, %s37
        %p592 = scmp.lt.s32.totalorder %s591, 3
        %s593 = scalar_select %p592, %s591, 3
        %s594 = smul.addr %s593, 9
        %s595 = smul.addr %s594, 8
        %s596 = scalar_lea.vmem %s3, %s595
        %s597 = smul.u32 2, %s37
        %s598 = smul.u32 2, %s37
        %s599 = smul.u32 2, %s37
        %v600 = vld [vmem:[%s583] sm:$0xff]
        %v601 = vld [vmem:[%s583 + $0x8] sm:$0xff]
        %v602 = vld [vmem:[%s583 + $0x10] sm:$0xff]
        %v603 = vld [vmem:[%s583 + $0x18] sm:$0xff]
        %v604 = vld [vmem:[%s583 + $0x20] sm:$0xff]
        %v605 = vld [vmem:[%s583 + $0x28] sm:$0xff]
        %v606 = vld [vmem:[%s583 + $0x30] sm:$0xff]
        %v607 = vld [vmem:[%s583 + $0x38] sm:$0xff]
        %v608 = vld [vmem:[%s583 + $0x40] sm:$0xff]
        %v609 = vld [vmem:[%s583 + $0x48] sm:$0xff]
        %v610 = vld [vmem:[%s583 + $0x50] sm:$0xff]
        %v611 = vld [vmem:[%s583 + $0x58] sm:$0xff]
        %v612 = vld [vmem:[%s583 + $0x60] sm:$0xff]
        %v613 = vld [vmem:[%s583 + $0x68] sm:$0xff]
        %v614 = vld [vmem:[%s583 + $0x70] sm:$0xff]
        %v615 = vld [vmem:[%s583 + $0x78] sm:$0xff]
        %v616 = vld [vmem:[%s583 + $0x80] sm:$0xff]
        %v617 = vld [vmem:[%s1] sm:$0xff]
        %v618 = vld [vmem:[%s1 + $0x8] sm:$0xff]
        %v619 = vld [vmem:[%s1 + $0x10] sm:$0xff]
        %v620 = vld [vmem:[%s1 + $0x18] sm:$0xff]
        %v621 = vld [vmem:[%s1 + $0x20] sm:$0xff]
        %v622 = vld [vmem:[%s1 + $0x28] sm:$0xff]
        %v623 = vld [vmem:[%s1 + $0x30] sm:$0xff]
        %v624 = vld [vmem:[%s1 + $0x38] sm:$0xff]
        %v625 = vld [vmem:[%s1 + $0x40] sm:$0xff]
        %v626 = vld [vmem:[%s1 + $0x48] sm:$0xff]
        %v627 = vld [vmem:[%s1 + $0x50] sm:$0xff]
        %v628 = vld [vmem:[%s1 + $0x58] sm:$0xff]
        %v629 = vld [vmem:[%s1 + $0x60] sm:$0xff]
        %v630 = vld [vmem:[%s1 + $0x68] sm:$0xff]
        %v631 = vld [vmem:[%s1 + $0x70] sm:$0xff]
        %v632 = vld [vmem:[%s1 + $0x78] sm:$0xff]
        %v633 = vld [vmem:[%s1 + $0x80] sm:$0xff]
        %v634 = vld [vmem:[%s1 + $0x88] sm:$0xff]
        %v635 = vld [vmem:[%s1 + $0x90] sm:$0xff]
        %v636 = vld [vmem:[%s1 + $0x98] sm:$0xff]
        %v637 = vld [vmem:[%s1 + $0xa0] sm:$0xff]
        %v638 = vld [vmem:[%s1 + $0xa8] sm:$0xff]
        %v639 = vld [vmem:[%s1 + $0xb0] sm:$0xff]
        %v640 = vld [vmem:[%s1 + $0xb8] sm:$0xff]
        %v641 = vld [vmem:[%s1 + $0xc0] sm:$0xff]
        %v642 = vld [vmem:[%s1 + $0xc8] sm:$0xff]
        %v643 = vld [vmem:[%s1 + $0xd0] sm:$0xff]
        %v644 = vld [vmem:[%s1 + $0xd8] sm:$0xff]
        %v645 = vld [vmem:[%s1 + $0xe0] sm:$0xff]
        %v646 = vld [vmem:[%s1 + $0xe8] sm:$0xff]
        %v647 = vld [vmem:[%s1 + $0xf0] sm:$0xff]
        %v648 = vld [vmem:[%s1 + $0xf8] sm:$0xff]
        %v649 = vld [vmem:[%s1 + $0x100] sm:$0xff]
        %v650 = vld [vmem:[%s1 + $0x108] sm:$0xff]
        %v651 = vld [vmem:[%s4] sm:$0x3]
        %v652 = vld [vmem:[%s5] sm:$0x3]
        %v653 = vld [vmem:[%s6] sm:$0x1]
        %vm654 = vcmask 64512
        %v656 = vsel %vm654, %v618, 0
        %v659 = vsel %vm654, %v620, 0
        %v662 = vsel %vm654, %v622, 0
        %v665 = vsel %vm654, %v624, 0
        %v668 = vsel %vm654, %v626, 0
        %v671 = vsel %vm654, %v628, 0
        %v674 = vsel %vm654, %v630, 0
        %v677 = vsel %vm654, %v632, 0
        %v680 = vsel %vm654, %v634, 0
        %v683 = vsel %vm654, %v636, 0
        %v686 = vsel %vm654, %v638, 0
        %v689 = vsel %vm654, %v640, 0
        %v692 = vsel %vm654, %v642, 0
        %v695 = vsel %vm654, %v644, 0
        %v698 = vsel %vm654, %v646, 0
        %v701 = vsel %vm654, %v648, 0
        %v704 = vsel %vm654, %v650, 0
        %706 = vmatprep.subr.mxu0 0.0
        %707 = vmatpush1.msra.mxu0 %v600
        %708 = vmatprep.subr.mxu0 0.0
        %709 = vmatpush1.msra.mxu0 %v601
        %710 = vmatprep.subr.mxu0 0.0
        %711 = vmatpush1.msra.mxu0 %v602
        %712 = vmatprep.subr.mxu0 0.0
        %713 = vmatpush1.msra.mxu0 %v603
        %714 = vmatprep.subr.mxu0 0.0
        %715 = vmatpush1.msra.mxu0 %v604
        %716 = vmatprep.subr.mxu0 0.0
        %717 = vmatpush1.msra.mxu0 %v605
        %718 = vmatprep.subr.mxu0 0.0
        %719 = vmatpush1.msra.mxu0 %v606
        %720 = vmatprep.subr.mxu0 0.0
        %721 = vmatpush1.msra.mxu0 %v607
        %722 = vmatprep.subr.mxu0 0.0
        %723 = vmatpush1.msra.mxu0 %v608
        %724 = vmatprep.subr.mxu0 0.0
        %725 = vmatpush1.msra.mxu0 %v609
        %726 = vmatprep.subr.mxu0 0.0
        %727 = vmatpush1.msra.mxu0 %v610
        %728 = vmatprep.subr.mxu0 0.0
        %729 = vmatpush1.msra.mxu0 %v611
        %730 = vmatprep.subr.mxu0 0.0
        %731 = vmatpush1.msra.mxu0 %v612
        %732 = vmatprep.subr.mxu0 0.0
        %733 = vmatpush1.msra.mxu0 %v613
        %734 = vmatprep.subr.mxu0 0.0
        %735 = vmatpush1.msra.mxu0 %v614
        %736 = vmatprep.subr.mxu0 0.0
        %737 = vmatpush1.msra.mxu0 %v615
        %738 = vmatprep.subr.mxu0 0.0
        %739 = vmatpush1.msra.mxu0 %v616
        %740 = vmatprep.subr.mxu0 0.0
        %741 = vmatpush1.msra.mxu0 0.0
        %742 = vmatprep.subr.mxu0 0.0
        %743 = vmatpush1.msra.mxu0 0.0
        %744 = vmatprep.subr.mxu0 0.0
        %745 = vmatpush1.msra.mxu0 0.0
        %746 = vmatprep.subr.mxu0 0.0
        %747 = vmatpush1.msra.mxu0 0.0
        %748 = vmatprep.subr.mxu0 0.0
        %749 = vmatpush1.msra.mxu0 0.0
        %750 = vmatprep.subr.mxu0 0.0
        %751 = vmatpush1.msra.mxu0 0.0
        %752 = vmatprep.subr.mxu0 0.0
        %753 = vmatpush1.msra.mxu0 0.0
        %754 = vmatprep.subr.mxu0 0.0
        %755 = vmatpush1.msra.mxu0 0.0
        %756 = vmatprep.subr.mxu0 0.0
        %757 = vmatpush1.msra.mxu0 0.0
        %758 = vmatprep.subr.mxu0 0.0
        %759 = vmatpush1.msra.mxu0 0.0
        %760 = vmatprep.subr.mxu0 0.0
        %761 = vmatpush1.msra.mxu0 0.0
        %762 = vmatprep.subr.mxu0 0.0
        %763 = vmatpush1.msra.mxu0 0.0
        %764 = vmatprep.subr.mxu0 0.0
        %765 = vmatpush1.msra.mxu0 0.0
        %766 = vmatprep.subr.mxu0 0.0
        %767 = vmatpush1.msra.mxu0 0.0
        %768 = vmatprep.subr.mxu0 0.0
        %769 = vmatpush1.msra.mxu0 0.0
        %770 = vmatprep.mubr.f32.mxu0 %v656
        %771 = vmatmul.mubr.f32.gmra.mrb[0].mxu0 %v617
        %v772 = vpop.f32.mrb[0].mxu0
        %v773 = vadd.f32 0.0, %v772
        %v774 = vpop.f32.mrb[0].mxu0
        %775 = vmatprep.mubr.f32.mxu0 %v659
        %776 = vmatmul.mubr.f32.gmra.mrb[0].mxu0 %v619
        %v777 = vpop.f32.mrb[0].mxu0
        %v778 = vadd.f32 0.0, %v777
        %v779 = vpop.f32.mrb[0].mxu0
        %780 = vmatprep.mubr.f32.mxu0 %v662
        %781 = vmatmul.mubr.f32.gmra.mrb[0].mxu0 %v621
        %v782 = vpop.f32.mrb[0].mxu0
        %v783 = vadd.f32 0.0, %v782
        %v784 = vpop.f32.mrb[0].mxu0
        %785 = vmatprep.mubr.f32.mxu0 %v665
        %786 = vmatmul.mubr.f32.gmra.mrb[0].mxu0 %v623
        %v787 = vpop.f32.mrb[0].mxu0
        %v788 = vadd.f32 0.0, %v787
        %v789 = vpop.f32.mrb[0].mxu0
        %790 = vmatprep.mubr.f32.mxu0 %v668
        %791 = vmatmul.mubr.f32.gmra.mrb[0].mxu0 %v625
        %v792 = vpop.f32.mrb[0].mxu0
        %v793 = vadd.f32 0.0, %v792
        %v794 = vpop.f32.mrb[0].mxu0
        %795 = vmatprep.mubr.f32.mxu0 %v671
        %796 = vmatmul.mubr.f32.gmra.mrb[0].mxu0 %v627
        %v797 = vpop.f32.mrb[0].mxu0
        %v798 = vadd.f32 0.0, %v797
        %v799 = vpop.f32.mrb[0].mxu0
        %800 = vmatprep.mubr.f32.mxu0 %v674
        %801 = vmatmul.mubr.f32.gmra.mrb[0].mxu0 %v629
        %v802 = vpop.f32.mrb[0].mxu0
        %v803 = vadd.f32 0.0, %v802
        %v804 = vpop.f32.mrb[0].mxu0
        %805 = vmatprep.mubr.f32.mxu0 %v677
        %806 = vmatmul.mubr.f32.gmra.mrb[0].mxu0 %v631
        %v807 = vpop.f32.mrb[0].mxu0
        %v808 = vadd.f32 0.0, %v807
        %v809 = vpop.f32.mrb[0].mxu0
        %810 = vmatprep.mubr.f32.mxu0 %v680
        %811 = vmatmul.mubr.f32.gmra.mrb[0].mxu0 %v633
        %v812 = vpop.f32.mrb[0].mxu0
        %v813 = vadd.f32 0.0, %v812
        %v814 = vpop.f32.mrb[0].mxu0
        %815 = vmatprep.mubr.f32.mxu0 %v683
        %816 = vmatmul.mubr.f32.gmra.mrb[0].mxu0 %v635
        %v817 = vpop.f32.mrb[0].mxu0
        %v818 = vadd.f32 0.0, %v817
        %v819 = vpop.f32.mrb[0].mxu0
        %820 = vmatprep.mubr.f32.mxu0 %v686
        %821 = vmatmul.mubr.f32.gmra.mrb[0].mxu0 %v637
        %v822 = vpop.f32.mrb[0].mxu0
        %v823 = vadd.f32 0.0, %v822
        %v824 = vpop.f32.mrb[0].mxu0
        %825 = vmatprep.mubr.f32.mxu0 %v689
        %826 = vmatmul.mubr.f32.gmra.mrb[0].mxu0 %v639
        %v827 = vpop.f32.mrb[0].mxu0
        %v828 = vadd.f32 0.0, %v827
        %v829 = vpop.f32.mrb[0].mxu0
        %830 = vmatprep.mubr.f32.mxu0 %v692
        %831 = vmatmul.mubr.f32.gmra.mrb[0].mxu0 %v641
        %v832 = vpop.f32.mrb[0].mxu0
        %v833 = vadd.f32 0.0, %v832
        %v834 = vpop.f32.mrb[0].mxu0
        %835 = vmatprep.mubr.f32.mxu0 %v695
        %836 = vmatmul.mubr.f32.gmra.mrb[0].mxu0 %v643
        %v837 = vpop.f32.mrb[0].mxu0
        %v838 = vadd.f32 0.0, %v837
        %v839 = vpop.f32.mrb[0].mxu0
        %840 = vmatprep.mubr.f32.mxu0 %v698
        %841 = vmatmul.mubr.f32.gmra.mrb[0].mxu0 %v645
        %v842 = vpop.f32.mrb[0].mxu0
        %v843 = vadd.f32 0.0, %v842
        %v844 = vpop.f32.mrb[0].mxu0
        %845 = vmatprep.mubr.f32.mxu0 %v701
        %846 = vmatmul.mubr.f32.gmra.mrb[0].mxu0 %v647
        %v847 = vpop.f32.mrb[0].mxu0
        %v848 = vadd.f32 0.0, %v847
        %v849 = vpop.f32.mrb[0].mxu0
        %850 = vmatprep.mubr.f32.mxu0 %v704
        %851 = vmatmul.mubr.f32.gmra.mrb[0].mxu0 %v649
        %v852 = vpop.f32.mrb[0].mxu0
        %v853 = vadd.f32 0.0, %v852
        %v854 = vpop.f32.mrb[0].mxu0
        %855 = vdwg.mxu0
        %vm856 = vcmask 15360
        %v858 = vsel %vm856, %v600, 0
        %v861 = vsel %vm856, %v601, 0
        %v864 = vsel %vm856, %v602, 0
        %v867 = vsel %vm856, %v603, 0
        %v870 = vsel %vm856, %v604, 0
        %v873 = vsel %vm856, %v605, 0
        %v876 = vsel %vm856, %v606, 0
        %v879 = vsel %vm856, %v607, 0
        %v882 = vsel %vm856, %v608, 0
        %v885 = vsel %vm856, %v609, 0
        %v888 = vsel %vm856, %v610, 0
        %v891 = vsel %vm856, %v611, 0
        %v894 = vsel %vm856, %v612, 0
        %v897 = vsel %vm856, %v613, 0
        %v900 = vsel %vm856, %v614, 0
        %v903 = vsel %vm856, %v615, 0
        %v906 = vsel %vm856, %v616, 0
        %vm908 = vcmask 1041408
        %v910 = vsel %vm908, %v652, 0
        %912 = vmatprep.subr.mxu0 0.0
        %913 = vmatpush1.msra.mxu0 %v910
        %914 = vmatprep.subr.mxu0 0.0
        %915 = vmatpush1.msra.mxu0 0.0
        %916 = vmatprep.subr.mxu0 0.0
        %917 = vmatpush1.msra.mxu0 0.0
        %918 = vmatprep.subr.mxu0 0.0
        %919 = vmatpush1.msra.mxu0 0.0
        %920 = vmatprep.subr.mxu0 0.0
        %921 = vmatpush1.msra.mxu0 0.0
        %922 = vmatprep.subr.mxu0 0.0
        %923 = vmatpush1.msra.mxu0 0.0
        %924 = vmatprep.subr.mxu0 0.0
        %925 = vmatpush1.msra.mxu0 0.0
        %926 = vmatprep.subr.mxu0 0.0
        %927 = vmatpush1.msra.mxu0 0.0
        %928 = vmatprep.subr.mxu0 0.0
        %929 = vmatpush1.msra.mxu0 0.0
        %930 = vmatprep.subr.mxu0 0.0
        %931 = vmatpush1.msra.mxu0 0.0
        %932 = vmatprep.subr.mxu0 0.0
        %933 = vmatpush1.msra.mxu0 0.0
        %934 = vmatprep.subr.mxu0 0.0
        %935 = vmatpush1.msra.mxu0 0.0
        %936 = vmatprep.subr.mxu0 0.0
        %937 = vmatpush1.msra.mxu0 0.0
        %938 = vmatprep.subr.mxu0 0.0
        %939 = vmatpush1.msra.mxu0 0.0
        %940 = vmatprep.subr.mxu0 0.0
        %941 = vmatpush1.msra.mxu0 0.0
        %942 = vmatprep.subr.mxu0 0.0
        %943 = vmatpush1.msra.mxu0 0.0
        %944 = vmatprep.subr.mxu0 0.0
        %945 = vmatpush1.msra.mxu0 0.0
        %946 = vmatprep.subr.mxu0 0.0
        %947 = vmatpush1.msra.mxu0 0.0
        %948 = vmatprep.subr.mxu0 0.0
        %949 = vmatpush1.msra.mxu0 0.0
        %950 = vmatprep.subr.mxu0 0.0
        %951 = vmatpush1.msra.mxu0 0.0
        %952 = vmatprep.subr.mxu0 0.0
        %953 = vmatpush1.msra.mxu0 0.0
        %954 = vmatprep.subr.mxu0 0.0
        %955 = vmatpush1.msra.mxu0 0.0
        %956 = vmatprep.subr.mxu0 0.0
        %957 = vmatpush1.msra.mxu0 0.0
        %958 = vmatprep.subr.mxu0 0.0
        %959 = vmatpush1.msra.mxu0 0.0
        %960 = vmatprep.subr.mxu0 0.0
        %961 = vmatpush1.msra.mxu0 0.0
        %962 = vmatprep.subr.mxu0 0.0
        %963 = vmatpush1.msra.mxu0 0.0
        %964 = vmatprep.subr.mxu0 0.0
        %965 = vmatpush1.msra.mxu0 0.0
        %966 = vmatprep.subr.mxu0 0.0
        %967 = vmatpush1.msra.mxu0 0.0
        %968 = vmatprep.subr.mxu0 0.0
        %969 = vmatpush1.msra.mxu0 0.0
        %970 = vmatprep.subr.mxu0 0.0
        %971 = vmatpush1.msra.mxu0 0.0
        %972 = vmatprep.subr.mxu0 0.0
        %973 = vmatpush1.msra.mxu0 0.0
        %974 = vmatprep.subr.mxu0 0.0
        %975 = vmatpush1.msra.mxu0 0.0
        %976 = vmatprep.mubr.f32.mxu0 0.0
        %977 = vmatmul.mubr.f32.gmra.mrb[0].mxu0 %v858
        %v978 = vpop.f32.mrb[0].mxu0
        %v979 = vadd.f32 0.0, %v978
        %v980 = vpop.f32.mrb[0].mxu0
        %981 = vmatprep.mubr.f32.mxu0 0.0
        %982 = vmatmul.mubr.f32.gmra.mrb[0].mxu0 %v861
        %v983 = vpop.f32.mrb[0].mxu0
        %v984 = vadd.f32 0.0, %v983
        %v985 = vpop.f32.mrb[0].mxu0
        %986 = vmatprep.mubr.f32.mxu0 0.0
        %987 = vmatmul.mubr.f32.gmra.mrb[0].mxu0 %v864
        %v988 = vpop.f32.mrb[0].mxu0
        %v989 = vadd.f32 0.0, %v988
        %v990 = vpop.f32.mrb[0].mxu0
        %991 = vmatprep.mubr.f32.mxu0 0.0
        %992 = vmatmul.mubr.f32.gmra.mrb[0].mxu0 %v867
        %v993 = vpop.f32.mrb[0].mxu0
        %v994 = vadd.f32 0.0, %v993
        %v995 = vpop.f32.mrb[0].mxu0
        %996 = vmatprep.mubr.f32.mxu0 0.0
        %997 = vmatmul.mubr.f32.gmra.mrb[0].mxu0 %v870
        %v998 = vpop.f32.mrb[0].mxu0
        %v999 = vadd.f32 0.0, %v998
        %v1000 = vpop.f32.mrb[0].mxu0
        %1001 = vmatprep.mubr.f32.mxu0 0.0
        %1002 = vmatmul.mubr.f32.gmra.mrb[0].mxu0 %v873
        %v1003 = vpop.f32.mrb[0].mxu0
        %v1004 = vadd.f32 0.0, %v1003
        %v1005 = vpop.f32.mrb[0].mxu0
        %1006 = vmatprep.mubr.f32.mxu0 0.0
        %1007 = vmatmul.mubr.f32.gmra.mrb[0].mxu0 %v876
        %v1008 = vpop.f32.mrb[0].mxu0
        %v1009 = vadd.f32 0.0, %v1008
        %v1010 = vpop.f32.mrb[0].mxu0
        %1011 = vmatprep.mubr.f32.mxu0 0.0
        %1012 = vmatmul.mubr.f32.gmra.mrb[0].mxu0 %v879
        %v1013 = vpop.f32.mrb[0].mxu0
        %v1014 = vadd.f32 0.0, %v1013
        %v1015 = vpop.f32.mrb[0].mxu0
        %1016 = vmatprep.mubr.f32.mxu0 0.0
        %1017 = vmatmul.mubr.f32.gmra.mrb[0].mxu0 %v882
        %v1018 = vpop.f32.mrb[0].mxu0
        %v1019 = vadd.f32 0.0, %v1018
        %v1020 = vpop.f32.mrb[0].mxu0
        %1021 = vmatprep.mubr.f32.mxu0 0.0
        %1022 = vmatmul.mubr.f32.gmra.mrb[0].mxu0 %v885
        %v1023 = vpop.f32.mrb[0].mxu0
        %v1024 = vadd.f32 0.0, %v1023
        %v1025 = vpop.f32.mrb[0].mxu0
        %1026 = vmatprep.mubr.f32.mxu0 0.0
        %1027 = vmatmul.mubr.f32.gmra.mrb[0].mxu0 %v888
        %v1028 = vpop.f32.mrb[0].mxu0
        %v1029 = vadd.f32 0.0, %v1028
        %v1030 = vpop.f32.mrb[0].mxu0
        %1031 = vmatprep.mubr.f32.mxu0 0.0
        %1032 = vmatmul.mubr.f32.gmra.mrb[0].mxu0 %v891
        %v1033 = vpop.f32.mrb[0].mxu0
        %v1034 = vadd.f32 0.0, %v1033
        %v1035 = vpop.f32.mrb[0].mxu0
        %1036 = vmatprep.mubr.f32.mxu0 0.0
        %1037 = vmatmul.mubr.f32.gmra.mrb[0].mxu0 %v894
        %v1038 = vpop.f32.mrb[0].mxu0
        %v1039 = vadd.f32 0.0, %v1038
        %v1040 = vpop.f32.mrb[0].mxu0
        %1041 = vmatprep.mubr.f32.mxu0 0.0
        %1042 = vmatmul.mubr.f32.gmra.mrb[0].mxu0 %v897
        %v1043 = vpop.f32.mrb[0].mxu0
        %v1044 = vadd.f32 0.0, %v1043
        %v1045 = vpop.f32.mrb[0].mxu0
        %1046 = vmatprep.mubr.f32.mxu0 0.0
        %1047 = vmatmul.mubr.f32.gmra.mrb[0].mxu0 %v900
        %v1048 = vpop.f32.mrb[0].mxu0
        %v1049 = vadd.f32 0.0, %v1048
        %v1050 = vpop.f32.mrb[0].mxu0
        %1051 = vmatprep.mubr.f32.mxu0 0.0
        %1052 = vmatmul.mubr.f32.gmra.mrb[0].mxu0 %v903
        %v1053 = vpop.f32.mrb[0].mxu0
        %v1054 = vadd.f32 0.0, %v1053
        %v1055 = vpop.f32.mrb[0].mxu0
        %1056 = vmatprep.mubr.f32.mxu0 0.0
        %1057 = vmatmul.mubr.f32.gmra.mrb[0].mxu0 %v906
        %v1058 = vpop.f32.mrb[0].mxu0
        %v1059 = vadd.f32 0.0, %v1058
        %v1060 = vpop.f32.mrb[0].mxu0
        %1061 = vdwg.mxu0
        %v1063 = vsel %vm856, %v773, 0
        %v1066 = vsel %vm856, %v778, 0
        %v1069 = vsel %vm856, %v783, 0
        %v1072 = vsel %vm856, %v788, 0
        %v1075 = vsel %vm856, %v793, 0
        %v1078 = vsel %vm856, %v798, 0
        %v1081 = vsel %vm856, %v803, 0
        %v1084 = vsel %vm856, %v808, 0
        %v1087 = vsel %vm856, %v813, 0
        %v1090 = vsel %vm856, %v818, 0
        %v1093 = vsel %vm856, %v823, 0
        %v1096 = vsel %vm856, %v828, 0
        %v1099 = vsel %vm856, %v833, 0
        %v1102 = vsel %vm856, %v838, 0
        %v1105 = vsel %vm856, %v843, 0
        %v1108 = vsel %vm856, %v848, 0
        %v1111 = vsel %vm856, %v853, 0
        %v1114 = vsel %vm908, %v651, 0
        %1116 = vmatprep.subr.mxu0 0.0
        %1117 = vmatpush1.msra.mxu0 %v1114
        %1118 = vmatprep.subr.mxu0 0.0
        %1119 = vmatpush1.msra.mxu0 0.0
        %1120 = vmatprep.subr.mxu0 0.0
        %1121 = vmatpush1.msra.mxu0 0.0
        %1122 = vmatprep.subr.mxu0 0.0
        %1123 = vmatpush1.msra.mxu0 0.0
        %1124 = vmatprep.subr.mxu0 0.0
        %1125 = vmatpush1.msra.mxu0 0.0
        %1126 = vmatprep.subr.mxu0 0.0
        %1127 = vmatpush1.msra.mxu0 0.0
        %1128 = vmatprep.subr.mxu0 0.0
        %1129 = vmatpush1.msra.mxu0 0.0
        %1130 = vmatprep.subr.mxu0 0.0
        %1131 = vmatpush1.msra.mxu0 0.0
        %1132 = vmatprep.subr.mxu0 0.0
        %1133 = vmatpush1.msra.mxu0 0.0
        %1134 = vmatprep.subr.mxu0 0.0
        %1135 = vmatpush1.msra.mxu0 0.0
        %1136 = vmatprep.subr.mxu0 0.0
        %1137 = vmatpush1.msra.mxu0 0.0
        %1138 = vmatprep.subr.mxu0 0.0
        %1139 = vmatpush1.msra.mxu0 0.0
        %1140 = vmatprep.subr.mxu0 0.0
        %1141 = vmatpush1.msra.mxu0 0.0
        %1142 = vmatprep.subr.mxu0 0.0
        %1143 = vmatpush1.msra.mxu0 0.0
        %1144 = vmatprep.subr.mxu0 0.0
        %1145 = vmatpush1.msra.mxu0 0.0
        %1146 = vmatprep.subr.mxu0 0.0
        %1147 = vmatpush1.msra.mxu0 0.0
        %1148 = vmatprep.subr.mxu0 0.0
        %1149 = vmatpush1.msra.mxu0 0.0
        %1150 = vmatprep.subr.mxu0 0.0
        %1151 = vmatpush1.msra.mxu0 0.0
        %1152 = vmatprep.subr.mxu0 0.0
        %1153 = vmatpush1.msra.mxu0 0.0
        %1154 = vmatprep.subr.mxu0 0.0
        %1155 = vmatpush1.msra.mxu0 0.0
        %1156 = vmatprep.subr.mxu0 0.0
        %1157 = vmatpush1.msra.mxu0 0.0
        %1158 = vmatprep.subr.mxu0 0.0
        %1159 = vmatpush1.msra.mxu0 0.0
        %1160 = vmatprep.subr.mxu0 0.0
        %1161 = vmatpush1.msra.mxu0 0.0
        %1162 = vmatprep.subr.mxu0 0.0
        %1163 = vmatpush1.msra.mxu0 0.0
        %1164 = vmatprep.subr.mxu0 0.0
        %1165 = vmatpush1.msra.mxu0 0.0
        %1166 = vmatprep.subr.mxu0 0.0
        %1167 = vmatpush1.msra.mxu0 0.0
        %1168 = vmatprep.subr.mxu0 0.0
        %1169 = vmatpush1.msra.mxu0 0.0
        %1170 = vmatprep.subr.mxu0 0.0
        %1171 = vmatpush1.msra.mxu0 0.0
        %1172 = vmatprep.subr.mxu0 0.0
        %1173 = vmatpush1.msra.mxu0 0.0
        %1174 = vmatprep.subr.mxu0 0.0
        %1175 = vmatpush1.msra.mxu0 0.0
        %1176 = vmatprep.subr.mxu0 0.0
        %1177 = vmatpush1.msra.mxu0 0.0
        %1178 = vmatprep.subr.mxu0 0.0
        %1179 = vmatpush1.msra.mxu0 0.0
        %1180 = vmatprep.mubr.f32.mxu0 0.0
        %1181 = vmatmul.mubr.f32.gmra.mrb[0].mxu0 %v1063
        %v1182 = vpop.f32.mrb[0].mxu0
        %v1183 = vadd.f32 %v979, %v1182
        %v1184 = vpop.f32.mrb[0].mxu0
        %1185 = vmatprep.mubr.f32.mxu0 0.0
        %1186 = vmatmul.mubr.f32.gmra.mrb[0].mxu0 %v1066
        %v1187 = vpop.f32.mrb[0].mxu0
        %v1188 = vadd.f32 %v984, %v1187
        %v1189 = vpop.f32.mrb[0].mxu0
        %1190 = vmatprep.mubr.f32.mxu0 0.0
        %1191 = vmatmul.mubr.f32.gmra.mrb[0].mxu0 %v1069
        %v1192 = vpop.f32.mrb[0].mxu0
        %v1193 = vadd.f32 %v989, %v1192
        %v1194 = vpop.f32.mrb[0].mxu0
        %1195 = vmatprep.mubr.f32.mxu0 0.0
        %1196 = vmatmul.mubr.f32.gmra.mrb[0].mxu0 %v1072
        %v1197 = vpop.f32.mrb[0].mxu0
        %v1198 = vadd.f32 %v994, %v1197
        %v1199 = vpop.f32.mrb[0].mxu0
        %1200 = vmatprep.mubr.f32.mxu0 0.0
        %1201 = vmatmul.mubr.f32.gmra.mrb[0].mxu0 %v1075
        %v1202 = vpop.f32.mrb[0].mxu0
        %v1203 = vadd.f32 %v999, %v1202
        %v1204 = vpop.f32.mrb[0].mxu0
        %1205 = vmatprep.mubr.f32.mxu0 0.0
        %1206 = vmatmul.mubr.f32.gmra.mrb[0].mxu0 %v1078
        %v1207 = vpop.f32.mrb[0].mxu0
        %v1208 = vadd.f32 %v1004, %v1207
        %v1209 = vpop.f32.mrb[0].mxu0
        %1210 = vmatprep.mubr.f32.mxu0 0.0
        %1211 = vmatmul.mubr.f32.gmra.mrb[0].mxu0 %v1081
        %v1212 = vpop.f32.mrb[0].mxu0
        %v1213 = vadd.f32 %v1009, %v1212
        %v1214 = vpop.f32.mrb[0].mxu0
        %1215 = vmatprep.mubr.f32.mxu0 0.0
        %1216 = vmatmul.mubr.f32.gmra.mrb[0].mxu0 %v1084
        %v1217 = vpop.f32.mrb[0].mxu0
        %v1218 = vadd.f32 %v1014, %v1217
        %v1219 = vpop.f32.mrb[0].mxu0
        %1220 = vmatprep.mubr.f32.mxu0 0.0
        %1221 = vmatmul.mubr.f32.gmra.mrb[0].mxu0 %v1087
        %v1222 = vpop.f32.mrb[0].mxu0
        %v1223 = vadd.f32 %v1019, %v1222
        %v1224 = vpop.f32.mrb[0].mxu0
        %1225 = vmatprep.mubr.f32.mxu0 0.0
        %1226 = vmatmul.mubr.f32.gmra.mrb[0].mxu0 %v1090
        %v1227 = vpop.f32.mrb[0].mxu0
        %v1228 = vadd.f32 %v1024, %v1227
        %v1229 = vpop.f32.mrb[0].mxu0
        %1230 = vmatprep.mubr.f32.mxu0 0.0
        %1231 = vmatmul.mubr.f32.gmra.mrb[0].mxu0 %v1093
        %v1232 = vpop.f32.mrb[0].mxu0
        %v1233 = vadd.f32 %v1029, %v1232
        %v1234 = vpop.f32.mrb[0].mxu0
        %1235 = vmatprep.mubr.f32.mxu0 0.0
        %1236 = vmatmul.mubr.f32.gmra.mrb[0].mxu0 %v1096
        %v1237 = vpop.f32.mrb[0].mxu0
        %v1238 = vadd.f32 %v1034, %v1237
        %v1239 = vpop.f32.mrb[0].mxu0
        %1240 = vmatprep.mubr.f32.mxu0 0.0
        %1241 = vmatmul.mubr.f32.gmra.mrb[0].mxu0 %v1099
        %v1242 = vpop.f32.mrb[0].mxu0
        %v1243 = vadd.f32 %v1039, %v1242
        %v1244 = vpop.f32.mrb[0].mxu0
        %1245 = vmatprep.mubr.f32.mxu0 0.0
        %1246 = vmatmul.mubr.f32.gmra.mrb[0].mxu0 %v1102
        %v1247 = vpop.f32.mrb[0].mxu0
        %v1248 = vadd.f32 %v1044, %v1247
        %v1249 = vpop.f32.mrb[0].mxu0
        %1250 = vmatprep.mubr.f32.mxu0 0.0
        %1251 = vmatmul.mubr.f32.gmra.mrb[0].mxu0 %v1105
        %v1252 = vpop.f32.mrb[0].mxu0
        %v1253 = vadd.f32 %v1049, %v1252
        %v1254 = vpop.f32.mrb[0].mxu0
        %1255 = vmatprep.mubr.f32.mxu0 0.0
        %1256 = vmatmul.mubr.f32.gmra.mrb[0].mxu0 %v1108
        %v1257 = vpop.f32.mrb[0].mxu0
        %v1258 = vadd.f32 %v1054, %v1257
        %v1259 = vpop.f32.mrb[0].mxu0
        %1260 = vmatprep.mubr.f32.mxu0 0.0
        %1261 = vmatmul.mubr.f32.gmra.mrb[0].mxu0 %v1111
        %v1262 = vpop.f32.mrb[0].mxu0
        %v1263 = vadd.f32 %v1059, %v1262
        %v1264 = vpop.f32.mrb[0].mxu0
        %1265 = vdwg.mxu0
        %v1267 = vlaneseq
        %v1268 = vshrl.u32 %v1267, 7
        %v1269 = vsub.s32 0, %v1268
        %v1270 = vrot.slane %v653, %v1269
        %v1272 = vadd.f32 %v1183, %v1270
        %v1273 = vadd.f32 %v1188, %v1270
        %v1274 = vadd.f32 %v1193, %v1270
        %v1275 = vadd.f32 %v1198, %v1270
        %v1276 = vadd.f32 %v1203, %v1270
        %v1277 = vadd.f32 %v1208, %v1270
        %v1278 = vadd.f32 %v1213, %v1270
        %v1279 = vadd.f32 %v1218, %v1270
        %v1280 = vadd.f32 %v1223, %v1270
        %v1281 = vadd.f32 %v1228, %v1270
        %v1282 = vadd.f32 %v1233, %v1270
        %v1283 = vadd.f32 %v1238, %v1270
        %v1284 = vadd.f32 %v1243, %v1270
        %v1285 = vadd.f32 %v1248, %v1270
        %v1286 = vadd.f32 %v1253, %v1270
        %v1287 = vadd.f32 %v1258, %v1270
        %v1288 = vadd.f32 %v1263, %v1270
        %v1289 = vmax.f32 %v1272, 0.0
        %v1290 = vmax.f32 %v1273, 0.0
        %v1291 = vmax.f32 %v1274, 0.0
        %v1292 = vmax.f32 %v1275, 0.0
        %v1293 = vmax.f32 %v1276, 0.0
        %v1294 = vmax.f32 %v1277, 0.0
        %v1295 = vmax.f32 %v1278, 0.0
        %v1296 = vmax.f32 %v1279, 0.0
        %v1297 = vmax.f32 %v1280, 0.0
        %v1298 = vmax.f32 %v1281, 0.0
        %v1299 = vmax.f32 %v1282, 0.0
        %v1300 = vmax.f32 %v1283, 0.0
        %v1301 = vmax.f32 %v1284, 0.0
        %v1302 = vmax.f32 %v1285, 0.0
        %v1303 = vmax.f32 %v1286, 0.0
        %v1304 = vmax.f32 %v1287, 0.0
        %v1305 = vmax.f32 %v1288, 0.0
        %v1306 = vld [vmem:[%s7] sm:$0xff]
        %v1307 = vld [vmem:[%s7 + $0x8] sm:$0xff]
        %v1308 = vld [vmem:[%s7 + $0x10] sm:$0xff]
        %v1309 = vld [vmem:[%s7 + $0x18] sm:$0xff]
        %v1310 = vld [vmem:[%s7 + $0x20] sm:$0xff]
        %v1311 = vld [vmem:[%s7 + $0x28] sm:$0xff]
        %v1312 = vld [vmem:[%s7 + $0x30] sm:$0xff]
        %v1313 = vld [vmem:[%s7 + $0x38] sm:$0xff]
        %v1314 = vld [vmem:[%s7 + $0x40] sm:$0xff]
        %v1315 = vld [vmem:[%s7 + $0x48] sm:$0xff]
        %v1316 = vld [vmem:[%s7 + $0x50] sm:$0xff]
        %v1317 = vld [vmem:[%s7 + $0x58] sm:$0xff]
        %v1318 = vld [vmem:[%s7 + $0x60] sm:$0xff]
        %v1319 = vld [vmem:[%s7 + $0x68] sm:$0xff]
        %v1320 = vld [vmem:[%s7 + $0x70] sm:$0xff]
        %v1321 = vld [vmem:[%s7 + $0x78] sm:$0xff]
        %v1322 = vld [vmem:[%s8] sm:$0xff]
        %v1323 = vld [vmem:[%s8 + $0x8] sm:$0xff]
        %v1324 = vld [vmem:[%s8 + $0x10] sm:$0xff]
        %v1325 = vld [vmem:[%s8 + $0x18] sm:$0xff]
        %v1326 = vld [vmem:[%s8 + $0x20] sm:$0xff]
        %v1327 = vld [vmem:[%s8 + $0x28] sm:$0xff]
        %v1328 = vld [vmem:[%s8 + $0x30] sm:$0xff]
        %v1329 = vld [vmem:[%s8 + $0x38] sm:$0xff]
        %v1330 = vld [vmem:[%s8 + $0x40] sm:$0xff]
        %v1331 = vld [vmem:[%s8 + $0x48] sm:$0xff]
        %v1332 = vld [vmem:[%s8 + $0x50] sm:$0xff]
        %v1333 = vld [vmem:[%s8 + $0x58] sm:$0xff]
        %v1334 = vld [vmem:[%s8 + $0x60] sm:$0xff]
        %v1335 = vld [vmem:[%s8 + $0x68] sm:$0xff]
        %v1336 = vld [vmem:[%s8 + $0x70] sm:$0xff]
        %v1337 = vld [vmem:[%s8 + $0x78] sm:$0xff]
        %v1338 = vld [vmem:[%s9] sm:$0x1]
        %1339 = vmatprep.subr.mxu0 0.0
        %1340 = vmatpush1.msra.mxu0 %v1289
        %1341 = vmatprep.subr.mxu0 0.0
        %1342 = vmatpush1.msra.mxu0 %v1290
        %1343 = vmatprep.subr.mxu0 0.0
        %1344 = vmatpush1.msra.mxu0 %v1291
        %1345 = vmatprep.subr.mxu0 0.0
        %1346 = vmatpush1.msra.mxu0 %v1292
        %1347 = vmatprep.subr.mxu0 0.0
        %1348 = vmatpush1.msra.mxu0 %v1293
        %1349 = vmatprep.subr.mxu0 0.0
        %1350 = vmatpush1.msra.mxu0 %v1294
        %1351 = vmatprep.subr.mxu0 0.0
        %1352 = vmatpush1.msra.mxu0 %v1295
        %1353 = vmatprep.subr.mxu0 0.0
        %1354 = vmatpush1.msra.mxu0 %v1296
        %1355 = vmatprep.subr.mxu0 0.0
        %1356 = vmatpush1.msra.mxu0 %v1297
        %1357 = vmatprep.subr.mxu0 0.0
        %1358 = vmatpush1.msra.mxu0 %v1298
        %1359 = vmatprep.subr.mxu0 0.0
        %1360 = vmatpush1.msra.mxu0 %v1299
        %1361 = vmatprep.subr.mxu0 0.0
        %1362 = vmatpush1.msra.mxu0 %v1300
        %1363 = vmatprep.subr.mxu0 0.0
        %1364 = vmatpush1.msra.mxu0 %v1301
        %1365 = vmatprep.subr.mxu0 0.0
        %1366 = vmatpush1.msra.mxu0 %v1302
        %1367 = vmatprep.subr.mxu0 0.0
        %1368 = vmatpush1.msra.mxu0 %v1303
        %1369 = vmatprep.subr.mxu0 0.0
        %1370 = vmatpush1.msra.mxu0 %v1304
        %1371 = vmatprep.subr.mxu0 0.0
        %1372 = vmatpush1.msra.mxu0 %v1305
        %1373 = vmatprep.subr.mxu0 0.0
        %1374 = vmatpush1.msra.mxu0 0.0
        %1375 = vmatprep.subr.mxu0 0.0
        %1376 = vmatpush1.msra.mxu0 0.0
        %1377 = vmatprep.subr.mxu0 0.0
        %1378 = vmatpush1.msra.mxu0 0.0
        %1379 = vmatprep.subr.mxu0 0.0
        %1380 = vmatpush1.msra.mxu0 0.0
        %1381 = vmatprep.subr.mxu0 0.0
        %1382 = vmatpush1.msra.mxu0 0.0
        %1383 = vmatprep.subr.mxu0 0.0
        %1384 = vmatpush1.msra.mxu0 0.0
        %1385 = vmatprep.subr.mxu0 0.0
        %1386 = vmatpush1.msra.mxu0 0.0
        %1387 = vmatprep.subr.mxu0 0.0
        %1388 = vmatpush1.msra.mxu0 0.0
        %1389 = vmatprep.subr.mxu0 0.0
        %1390 = vmatpush1.msra.mxu0 0.0
        %1391 = vmatprep.subr.mxu0 0.0
        %1392 = vmatpush1.msra.mxu0 0.0
        %1393 = vmatprep.subr.mxu0 0.0
        %1394 = vmatpush1.msra.mxu0 0.0
        %1395 = vmatprep.subr.mxu0 0.0
        %1396 = vmatpush1.msra.mxu0 0.0
        %1397 = vmatprep.subr.mxu0 0.0
        %1398 = vmatpush1.msra.mxu0 0.0
        %1399 = vmatprep.subr.mxu0 0.0
        %1400 = vmatpush1.msra.mxu0 0.0
        %1401 = vmatprep.subr.mxu0 0.0
        %1402 = vmatpush1.msra.mxu0 0.0
        %1403 = vmatprep.mubr.f32.mxu0 %v656
        %1404 = vmatmul.mubr.f32.gmra.mrb[0].mxu0 %v617
        %v1405 = vpop.f32.mrb[0].mxu0
        %v1406 = vadd.f32 0.0, %v1405
        %v1407 = vpop.f32.mrb[0].mxu0
        %1408 = vmatprep.mubr.f32.mxu0 %v659
        %1409 = vmatmul.mubr.f32.gmra.mrb[0].mxu0 %v619
        %v1410 = vpop.f32.mrb[0].mxu0
        %v1411 = vadd.f32 0.0, %v1410
        %v1412 = vpop.f32.mrb[0].mxu0
        %1413 = vmatprep.mubr.f32.mxu0 %v662
        %1414 = vmatmul.mubr.f32.gmra.mrb[0].mxu0 %v621
        %v1415 = vpop.f32.mrb[0].mxu0
        %v1416 = vadd.f32 0.0, %v1415
        %v1417 = vpop.f32.mrb[0].mxu0
        %1418 = vmatprep.mubr.f32.mxu0 %v665
        %1419 = vmatmul.mubr.f32.gmra.mrb[0].mxu0 %v623
        %v1420 = vpop.f32.mrb[0].mxu0
        %v1421 = vadd.f32 0.0, %v1420
        %v1422 = vpop.f32.mrb[0].mxu0
        %1423 = vmatprep.mubr.f32.mxu0 %v668
        %1424 = vmatmul.mubr.f32.gmra.mrb[0].mxu0 %v625
        %v1425 = vpop.f32.mrb[0].mxu0
        %v1426 = vadd.f32 0.0, %v1425
        %v1427 = vpop.f32.mrb[0].mxu0
        %1428 = vmatprep.mubr.f32.mxu0 %v671
        %1429 = vmatmul.mubr.f32.gmra.mrb[0].mxu0 %v627
        %v1430 = vpop.f32.mrb[0].mxu0
        %v1431 = vadd.f32 0.0, %v1430
        %v1432 = vpop.f32.mrb[0].mxu0
        %1433 = vmatprep.mubr.f32.mxu0 %v674
        %1434 = vmatmul.mubr.f32.gmra.mrb[0].mxu0 %v629
        %v1435 = vpop.f32.mrb[0].mxu0
        %v1436 = vadd.f32 0.0, %v1435
        %v1437 = vpop.f32.mrb[0].mxu0
        %1438 = vmatprep.mubr.f32.mxu0 %v677
        %1439 = vmatmul.mubr.f32.gmra.mrb[0].mxu0 %v631
        %v1440 = vpop.f32.mrb[0].mxu0
        %v1441 = vadd.f32 0.0, %v1440
        %v1442 = vpop.f32.mrb[0].mxu0
        %1443 = vmatprep.mubr.f32.mxu0 %v680
        %1444 = vmatmul.mubr.f32.gmra.mrb[0].mxu0 %v633
        %v1445 = vpop.f32.mrb[0].mxu0
        %v1446 = vadd.f32 0.0, %v1445
        %v1447 = vpop.f32.mrb[0].mxu0
        %1448 = vmatprep.mubr.f32.mxu0 %v683
        %1449 = vmatmul.mubr.f32.gmra.mrb[0].mxu0 %v635
        %v1450 = vpop.f32.mrb[0].mxu0
        %v1451 = vadd.f32 0.0, %v1450
        %v1452 = vpop.f32.mrb[0].mxu0
        %1453 = vmatprep.mubr.f32.mxu0 %v686
        %1454 = vmatmul.mubr.f32.gmra.mrb[0].mxu0 %v637
        %v1455 = vpop.f32.mrb[0].mxu0
        %v1456 = vadd.f32 0.0, %v1455
        %v1457 = vpop.f32.mrb[0].mxu0
        %1458 = vmatprep.mubr.f32.mxu0 %v689
        %1459 = vmatmul.mubr.f32.gmra.mrb[0].mxu0 %v639
        %v1460 = vpop.f32.mrb[0].mxu0
        %v1461 = vadd.f32 0.0, %v1460
        %v1462 = vpop.f32.mrb[0].mxu0
        %1463 = vmatprep.mubr.f32.mxu0 %v692
        %1464 = vmatmul.mubr.f32.gmra.mrb[0].mxu0 %v641
        %v1465 = vpop.f32.mrb[0].mxu0
        %v1466 = vadd.f32 0.0, %v1465
        %v1467 = vpop.f32.mrb[0].mxu0
        %1468 = vmatprep.mubr.f32.mxu0 %v695
        %1469 = vmatmul.mubr.f32.gmra.mrb[0].mxu0 %v643
        %v1470 = vpop.f32.mrb[0].mxu0
        %v1471 = vadd.f32 0.0, %v1470
        %v1472 = vpop.f32.mrb[0].mxu0
        %1473 = vmatprep.mubr.f32.mxu0 %v698
        %1474 = vmatmul.mubr.f32.gmra.mrb[0].mxu0 %v645
        %v1475 = vpop.f32.mrb[0].mxu0
        %v1476 = vadd.f32 0.0, %v1475
        %v1477 = vpop.f32.mrb[0].mxu0
        %1478 = vmatprep.mubr.f32.mxu0 %v701
        %1479 = vmatmul.mubr.f32.gmra.mrb[0].mxu0 %v647
        %v1480 = vpop.f32.mrb[0].mxu0
        %v1481 = vadd.f32 0.0, %v1480
        %v1482 = vpop.f32.mrb[0].mxu0
        %1483 = vmatprep.mubr.f32.mxu0 %v704
        %1484 = vmatmul.mubr.f32.gmra.mrb[0].mxu0 %v649
        %v1485 = vpop.f32.mrb[0].mxu0
        %v1486 = vadd.f32 0.0, %v1485
        %v1487 = vpop.f32.mrb[0].mxu0
        %1488 = vdwg.mxu0
        %1489 = vmatprep.subr.mxu0 0.0
        %1490 = vmatpush1.msra.mxu0 %v1322
        %1491 = vmatprep.subr.mxu0 0.0
        %1492 = vmatpush1.msra.mxu0 %v1323
        %1493 = vmatprep.subr.mxu0 0.0
        %1494 = vmatpush1.msra.mxu0 %v1324
        %1495 = vmatprep.subr.mxu0 0.0
        %1496 = vmatpush1.msra.mxu0 %v1325
        %1497 = vmatprep.subr.mxu0 0.0
        %1498 = vmatpush1.msra.mxu0 %v1326
        %1499 = vmatprep.subr.mxu0 0.0
        %1500 = vmatpush1.msra.mxu0 %v1327
        %1501 = vmatprep.subr.mxu0 0.0
        %1502 = vmatpush1.msra.mxu0 %v1328
        %1503 = vmatprep.subr.mxu0 0.0
        %1504 = vmatpush1.msra.mxu0 %v1329
        %1505 = vmatprep.subr.mxu0 0.0
        %1506 = vmatpush1.msra.mxu0 %v1330
        %1507 = vmatprep.subr.mxu0 0.0
        %1508 = vmatpush1.msra.mxu0 %v1331
        %1509 = vmatprep.subr.mxu0 0.0
        %1510 = vmatpush1.msra.mxu0 %v1332
        %1511 = vmatprep.subr.mxu0 0.0
        %1512 = vmatpush1.msra.mxu0 %v1333
        %1513 = vmatprep.subr.mxu0 0.0
        %1514 = vmatpush1.msra.mxu0 %v1334
        %1515 = vmatprep.subr.mxu0 0.0
        %1516 = vmatpush1.msra.mxu0 %v1335
        %1517 = vmatprep.subr.mxu0 0.0
        %1518 = vmatpush1.msra.mxu0 %v1336
        %1519 = vmatprep.subr.mxu0 0.0
        %1520 = vmatpush1.msra.mxu0 %v1337
        %1521 = vmatprep.subr.mxu0 0.0
        %1522 = vmatpush1.msra.mxu0 0.0
        %1523 = vmatprep.subr.mxu0 0.0
        %1524 = vmatpush1.msra.mxu0 0.0
        %1525 = vmatprep.subr.mxu0 0.0
        %1526 = vmatpush1.msra.mxu0 0.0
        %1527 = vmatprep.subr.mxu0 0.0
        %1528 = vmatpush1.msra.mxu0 0.0
        %1529 = vmatprep.subr.mxu0 0.0
        %1530 = vmatpush1.msra.mxu0 0.0
        %1531 = vmatprep.subr.mxu0 0.0
        %1532 = vmatpush1.msra.mxu0 0.0
        %1533 = vmatprep.subr.mxu0 0.0
        %1534 = vmatpush1.msra.mxu0 0.0
        %1535 = vmatprep.subr.mxu0 0.0
        %1536 = vmatpush1.msra.mxu0 0.0
        %1537 = vmatprep.subr.mxu0 0.0
        %1538 = vmatpush1.msra.mxu0 0.0
        %1539 = vmatprep.subr.mxu0 0.0
        %1540 = vmatpush1.msra.mxu0 0.0
        %1541 = vmatprep.subr.mxu0 0.0
        %1542 = vmatpush1.msra.mxu0 0.0
        %1543 = vmatprep.subr.mxu0 0.0
        %1544 = vmatpush1.msra.mxu0 0.0
        %1545 = vmatprep.subr.mxu0 0.0
        %1546 = vmatpush1.msra.mxu0 0.0
        %1547 = vmatprep.subr.mxu0 0.0
        %1548 = vmatpush1.msra.mxu0 0.0
        %1549 = vmatprep.subr.mxu0 0.0
        %1550 = vmatpush1.msra.mxu0 0.0
        %1551 = vmatprep.subr.mxu0 0.0
        %1552 = vmatpush1.msra.mxu0 0.0
        %1553 = vmatprep.mubr.f32.mxu0 0.0
        %1554 = vmatmul.mubr.f32.gmra.mrb[0].mxu0 %v1289
        %v1555 = vpop.f32.mrb[0].mxu0
        %v1556 = vadd.f32 0.0, %v1555
        %v1557 = vpop.f32.mrb[0].mxu0
        %1558 = vmatprep.mubr.f32.mxu0 0.0
        %1559 = vmatmul.mubr.f32.gmra.mrb[0].mxu0 %v1290
        %v1560 = vpop.f32.mrb[0].mxu0
        %v1561 = vadd.f32 0.0, %v1560
        %v1562 = vpop.f32.mrb[0].mxu0
        %1563 = vmatprep.mubr.f32.mxu0 0.0
        %1564 = vmatmul.mubr.f32.gmra.mrb[0].mxu0 %v1291
        %v1565 = vpop.f32.mrb[0].mxu0
        %v1566 = vadd.f32 0.0, %v1565
        %v1567 = vpop.f32.mrb[0].mxu0
        %1568 = vmatprep.mubr.f32.mxu0 0.0
        %1569 = vmatmul.mubr.f32.gmra.mrb[0].mxu0 %v1292
        %v1570 = vpop.f32.mrb[0].mxu0
        %v1571 = vadd.f32 0.0, %v1570
        %v1572 = vpop.f32.mrb[0].mxu0
        %1573 = vmatprep.mubr.f32.mxu0 0.0
        %1574 = vmatmul.mubr.f32.gmra.mrb[0].mxu0 %v1293
        %v1575 = vpop.f32.mrb[0].mxu0
        %v1576 = vadd.f32 0.0, %v1575
        %v1577 = vpop.f32.mrb[0].mxu0
        %1578 = vmatprep.mubr.f32.mxu0 0.0
        %1579 = vmatmul.mubr.f32.gmra.mrb[0].mxu0 %v1294
        %v1580 = vpop.f32.mrb[0].mxu0
        %v1581 = vadd.f32 0.0, %v1580
        %v1582 = vpop.f32.mrb[0].mxu0
        %1583 = vmatprep.mubr.f32.mxu0 0.0
        %1584 = vmatmul.mubr.f32.gmra.mrb[0].mxu0 %v1295
        %v1585 = vpop.f32.mrb[0].mxu0
        %v1586 = vadd.f32 0.0, %v1585
        %v1587 = vpop.f32.mrb[0].mxu0
        %1588 = vmatprep.mubr.f32.mxu0 0.0
        %1589 = vmatmul.mubr.f32.gmra.mrb[0].mxu0 %v1296
        %v1590 = vpop.f32.mrb[0].mxu0
        %v1591 = vadd.f32 0.0, %v1590
        %v1592 = vpop.f32.mrb[0].mxu0
        %1593 = vmatprep.mubr.f32.mxu0 0.0
        %1594 = vmatmul.mubr.f32.gmra.mrb[0].mxu0 %v1297
        %v1595 = vpop.f32.mrb[0].mxu0
        %v1596 = vadd.f32 0.0, %v1595
        %v1597 = vpop.f32.mrb[0].mxu0
        %1598 = vmatprep.mubr.f32.mxu0 0.0
        %1599 = vmatmul.mubr.f32.gmra.mrb[0].mxu0 %v1298
        %v1600 = vpop.f32.mrb[0].mxu0
        %v1601 = vadd.f32 0.0, %v1600
        %v1602 = vpop.f32.mrb[0].mxu0
        %1603 = vmatprep.mubr.f32.mxu0 0.0
        %1604 = vmatmul.mubr.f32.gmra.mrb[0].mxu0 %v1299
        %v1605 = vpop.f32.mrb[0].mxu0
        %v1606 = vadd.f32 0.0, %v1605
        %v1607 = vpop.f32.mrb[0].mxu0
        %1608 = vmatprep.mubr.f32.mxu0 0.0
        %1609 = vmatmul.mubr.f32.gmra.mrb[0].mxu0 %v1300
        %v1610 = vpop.f32.mrb[0].mxu0
        %v1611 = vadd.f32 0.0, %v1610
        %v1612 = vpop.f32.mrb[0].mxu0
        %1613 = vmatprep.mubr.f32.mxu0 0.0
        %1614 = vmatmul.mubr.f32.gmra.mrb[0].mxu0 %v1301
        %v1615 = vpop.f32.mrb[0].mxu0
        %v1616 = vadd.f32 0.0, %v1615
        %v1617 = vpop.f32.mrb[0].mxu0
        %1618 = vmatprep.mubr.f32.mxu0 0.0
        %1619 = vmatmul.mubr.f32.gmra.mrb[0].mxu0 %v1302
        %v1620 = vpop.f32.mrb[0].mxu0
        %v1621 = vadd.f32 0.0, %v1620
        %v1622 = vpop.f32.mrb[0].mxu0
        %1623 = vmatprep.mubr.f32.mxu0 0.0
        %1624 = vmatmul.mubr.f32.gmra.mrb[0].mxu0 %v1303
        %v1625 = vpop.f32.mrb[0].mxu0
        %v1626 = vadd.f32 0.0, %v1625
        %v1627 = vpop.f32.mrb[0].mxu0
        %1628 = vmatprep.mubr.f32.mxu0 0.0
        %1629 = vmatmul.mubr.f32.gmra.mrb[0].mxu0 %v1304
        %v1630 = vpop.f32.mrb[0].mxu0
        %v1631 = vadd.f32 0.0, %v1630
        %v1632 = vpop.f32.mrb[0].mxu0
        %1633 = vmatprep.mubr.f32.mxu0 0.0
        %1634 = vmatmul.mubr.f32.gmra.mrb[0].mxu0 %v1305
        %v1635 = vpop.f32.mrb[0].mxu0
        %v1636 = vadd.f32 0.0, %v1635
        %v1637 = vpop.f32.mrb[0].mxu0
        %1638 = vdwg.mxu0
        %1639 = vmatprep.subr.mxu0 0.0
        %1640 = vmatpush1.msra.mxu0 %v1306
        %1641 = vmatprep.subr.mxu0 0.0
        %1642 = vmatpush1.msra.mxu0 %v1307
        %1643 = vmatprep.subr.mxu0 0.0
        %1644 = vmatpush1.msra.mxu0 %v1308
        %1645 = vmatprep.subr.mxu0 0.0
        %1646 = vmatpush1.msra.mxu0 %v1309
        %1647 = vmatprep.subr.mxu0 0.0
        %1648 = vmatpush1.msra.mxu0 %v1310
        %1649 = vmatprep.subr.mxu0 0.0
        %1650 = vmatpush1.msra.mxu0 %v1311
        %1651 = vmatprep.subr.mxu0 0.0
        %1652 = vmatpush1.msra.mxu0 %v1312
        %1653 = vmatprep.subr.mxu0 0.0
        %1654 = vmatpush1.msra.mxu0 %v1313
        %1655 = vmatprep.subr.mxu0 0.0
        %1656 = vmatpush1.msra.mxu0 %v1314
        %1657 = vmatprep.subr.mxu0 0.0
        %1658 = vmatpush1.msra.mxu0 %v1315
        %1659 = vmatprep.subr.mxu0 0.0
        %1660 = vmatpush1.msra.mxu0 %v1316
        %1661 = vmatprep.subr.mxu0 0.0
        %1662 = vmatpush1.msra.mxu0 %v1317
        %1663 = vmatprep.subr.mxu0 0.0
        %1664 = vmatpush1.msra.mxu0 %v1318
        %1665 = vmatprep.subr.mxu0 0.0
        %1666 = vmatpush1.msra.mxu0 %v1319
        %1667 = vmatprep.subr.mxu0 0.0
        %1668 = vmatpush1.msra.mxu0 %v1320
        %1669 = vmatprep.subr.mxu0 0.0
        %1670 = vmatpush1.msra.mxu0 %v1321
        %1671 = vmatprep.subr.mxu0 0.0
        %1672 = vmatpush1.msra.mxu0 0.0
        %1673 = vmatprep.subr.mxu0 0.0
        %1674 = vmatpush1.msra.mxu0 0.0
        %1675 = vmatprep.subr.mxu0 0.0
        %1676 = vmatpush1.msra.mxu0 0.0
        %1677 = vmatprep.subr.mxu0 0.0
        %1678 = vmatpush1.msra.mxu0 0.0
        %1679 = vmatprep.subr.mxu0 0.0
        %1680 = vmatpush1.msra.mxu0 0.0
        %1681 = vmatprep.subr.mxu0 0.0
        %1682 = vmatpush1.msra.mxu0 0.0
        %1683 = vmatprep.subr.mxu0 0.0
        %1684 = vmatpush1.msra.mxu0 0.0
        %1685 = vmatprep.subr.mxu0 0.0
        %1686 = vmatpush1.msra.mxu0 0.0
        %1687 = vmatprep.subr.mxu0 0.0
        %1688 = vmatpush1.msra.mxu0 0.0
        %1689 = vmatprep.subr.mxu0 0.0
        %1690 = vmatpush1.msra.mxu0 0.0
        %1691 = vmatprep.subr.mxu0 0.0
        %1692 = vmatpush1.msra.mxu0 0.0
        %1693 = vmatprep.subr.mxu0 0.0
        %1694 = vmatpush1.msra.mxu0 0.0
        %1695 = vmatprep.subr.mxu0 0.0
        %1696 = vmatpush1.msra.mxu0 0.0
        %1697 = vmatprep.subr.mxu0 0.0
        %1698 = vmatpush1.msra.mxu0 0.0
        %1699 = vmatprep.subr.mxu0 0.0
        %1700 = vmatpush1.msra.mxu0 0.0
        %1701 = vmatprep.subr.mxu0 0.0
        %1702 = vmatpush1.msra.mxu0 0.0
        %1703 = vmatprep.mubr.f32.mxu0 0.0
        %1704 = vmatmul.mubr.f32.gmra.mrb[0].mxu0 %v1406
        %v1705 = vpop.f32.mrb[0].mxu0
        %v1706 = vadd.f32 %v1556, %v1705
        %v1707 = vpop.f32.mrb[0].mxu0
        %1708 = vmatprep.mubr.f32.mxu0 0.0
        %1709 = vmatmul.mubr.f32.gmra.mrb[0].mxu0 %v1411
        %v1710 = vpop.f32.mrb[0].mxu0
        %v1711 = vadd.f32 %v1561, %v1710
        %v1712 = vpop.f32.mrb[0].mxu0
        %1713 = vmatprep.mubr.f32.mxu0 0.0
        %1714 = vmatmul.mubr.f32.gmra.mrb[0].mxu0 %v1416
        %v1715 = vpop.f32.mrb[0].mxu0
        %v1716 = vadd.f32 %v1566, %v1715
        %v1717 = vpop.f32.mrb[0].mxu0
        %1718 = vmatprep.mubr.f32.mxu0 0.0
        %1719 = vmatmul.mubr.f32.gmra.mrb[0].mxu0 %v1421
        %v1720 = vpop.f32.mrb[0].mxu0
        %v1721 = vadd.f32 %v1571, %v1720
        %v1722 = vpop.f32.mrb[0].mxu0
        %1723 = vmatprep.mubr.f32.mxu0 0.0
        %1724 = vmatmul.mubr.f32.gmra.mrb[0].mxu0 %v1426
        %v1725 = vpop.f32.mrb[0].mxu0
        %v1726 = vadd.f32 %v1576, %v1725
        %v1727 = vpop.f32.mrb[0].mxu0
        %1728 = vmatprep.mubr.f32.mxu0 0.0
        %1729 = vmatmul.mubr.f32.gmra.mrb[0].mxu0 %v1431
        %v1730 = vpop.f32.mrb[0].mxu0
        %v1731 = vadd.f32 %v1581, %v1730
        %v1732 = vpop.f32.mrb[0].mxu0
        %1733 = vmatprep.mubr.f32.mxu0 0.0
        %1734 = vmatmul.mubr.f32.gmra.mrb[0].mxu0 %v1436
        %v1735 = vpop.f32.mrb[0].mxu0
        %v1736 = vadd.f32 %v1586, %v1735
        %v1737 = vpop.f32.mrb[0].mxu0
        %1738 = vmatprep.mubr.f32.mxu0 0.0
        %1739 = vmatmul.mubr.f32.gmra.mrb[0].mxu0 %v1441
        %v1740 = vpop.f32.mrb[0].mxu0
        %v1741 = vadd.f32 %v1591, %v1740
        %v1742 = vpop.f32.mrb[0].mxu0
        %1743 = vmatprep.mubr.f32.mxu0 0.0
        %1744 = vmatmul.mubr.f32.gmra.mrb[0].mxu0 %v1446
        %v1745 = vpop.f32.mrb[0].mxu0
        %v1746 = vadd.f32 %v1596, %v1745
        %v1747 = vpop.f32.mrb[0].mxu0
        %1748 = vmatprep.mubr.f32.mxu0 0.0
        %1749 = vmatmul.mubr.f32.gmra.mrb[0].mxu0 %v1451
        %v1750 = vpop.f32.mrb[0].mxu0
        %v1751 = vadd.f32 %v1601, %v1750
        %v1752 = vpop.f32.mrb[0].mxu0
        %1753 = vmatprep.mubr.f32.mxu0 0.0
        %1754 = vmatmul.mubr.f32.gmra.mrb[0].mxu0 %v1456
        %v1755 = vpop.f32.mrb[0].mxu0
        %v1756 = vadd.f32 %v1606, %v1755
        %v1757 = vpop.f32.mrb[0].mxu0
        %1758 = vmatprep.mubr.f32.mxu0 0.0
        %1759 = vmatmul.mubr.f32.gmra.mrb[0].mxu0 %v1461
        %v1760 = vpop.f32.mrb[0].mxu0
        %v1761 = vadd.f32 %v1611, %v1760
        %v1762 = vpop.f32.mrb[0].mxu0
        %1763 = vmatprep.mubr.f32.mxu0 0.0
        %1764 = vmatmul.mubr.f32.gmra.mrb[0].mxu0 %v1466
        %v1765 = vpop.f32.mrb[0].mxu0
        %v1766 = vadd.f32 %v1616, %v1765
        %v1767 = vpop.f32.mrb[0].mxu0
        %1768 = vmatprep.mubr.f32.mxu0 0.0
        %1769 = vmatmul.mubr.f32.gmra.mrb[0].mxu0 %v1471
        %v1770 = vpop.f32.mrb[0].mxu0
        %v1771 = vadd.f32 %v1621, %v1770
        %v1772 = vpop.f32.mrb[0].mxu0
        %1773 = vmatprep.mubr.f32.mxu0 0.0
        %1774 = vmatmul.mubr.f32.gmra.mrb[0].mxu0 %v1476
        %v1775 = vpop.f32.mrb[0].mxu0
        %v1776 = vadd.f32 %v1626, %v1775
        %v1777 = vpop.f32.mrb[0].mxu0
        %1778 = vmatprep.mubr.f32.mxu0 0.0
        %1779 = vmatmul.mubr.f32.gmra.mrb[0].mxu0 %v1481
        %v1780 = vpop.f32.mrb[0].mxu0
        %v1781 = vadd.f32 %v1631, %v1780
        %v1782 = vpop.f32.mrb[0].mxu0
        %1783 = vmatprep.mubr.f32.mxu0 0.0
        %1784 = vmatmul.mubr.f32.gmra.mrb[0].mxu0 %v1486
        %v1785 = vpop.f32.mrb[0].mxu0
        %v1786 = vadd.f32 %v1636, %v1785
        %v1787 = vpop.f32.mrb[0].mxu0
        %1788 = vdwg.mxu0
        %v1790 = vlaneseq
        %v1791 = vshrl.u32 %v1790, 7
        %v1792 = vsub.s32 0, %v1791
        %v1793 = vrot.slane %v1338, %v1792
        %v1795 = vadd.f32 %v1706, %v1793
        %v1796 = vadd.f32 %v1711, %v1793
        %v1797 = vadd.f32 %v1716, %v1793
        %v1798 = vadd.f32 %v1721, %v1793
        %v1799 = vadd.f32 %v1726, %v1793
        %v1800 = vadd.f32 %v1731, %v1793
        %v1801 = vadd.f32 %v1736, %v1793
        %v1802 = vadd.f32 %v1741, %v1793
        %v1803 = vadd.f32 %v1746, %v1793
        %v1804 = vadd.f32 %v1751, %v1793
        %v1805 = vadd.f32 %v1756, %v1793
        %v1806 = vadd.f32 %v1761, %v1793
        %v1807 = vadd.f32 %v1766, %v1793
        %v1808 = vadd.f32 %v1771, %v1793
        %v1809 = vadd.f32 %v1776, %v1793
        %v1810 = vadd.f32 %v1781, %v1793
        %v1811 = vadd.f32 %v1786, %v1793
        %v1812 = vmax.f32 %v1795, 0.0
        %v1813 = vmax.f32 %v1796, 0.0
        %v1814 = vmax.f32 %v1797, 0.0
        %v1815 = vmax.f32 %v1798, 0.0
        %v1816 = vmax.f32 %v1799, 0.0
        %v1817 = vmax.f32 %v1800, 0.0
        %v1818 = vmax.f32 %v1801, 0.0
        %v1819 = vmax.f32 %v1802, 0.0
        %v1820 = vmax.f32 %v1803, 0.0
        %v1821 = vmax.f32 %v1804, 0.0
        %v1822 = vmax.f32 %v1805, 0.0
        %v1823 = vmax.f32 %v1806, 0.0
        %v1824 = vmax.f32 %v1807, 0.0
        %v1825 = vmax.f32 %v1808, 0.0
        %v1826 = vmax.f32 %v1809, 0.0
        %v1827 = vmax.f32 %v1810, 0.0
        %v1828 = vmax.f32 %v1811, 0.0
        %v1829 = vld [vmem:[%s10] sm:$0xff]
        %v1830 = vld [vmem:[%s10 + $0x8] sm:$0xff]
        %v1831 = vld [vmem:[%s10 + $0x10] sm:$0xff]
        %v1832 = vld [vmem:[%s10 + $0x18] sm:$0xff]
        %v1833 = vld [vmem:[%s10 + $0x20] sm:$0xff]
        %v1834 = vld [vmem:[%s10 + $0x28] sm:$0xff]
        %v1835 = vld [vmem:[%s10 + $0x30] sm:$0xff]
        %v1836 = vld [vmem:[%s10 + $0x38] sm:$0xff]
        %v1837 = vld [vmem:[%s10 + $0x40] sm:$0xff]
        %v1838 = vld [vmem:[%s10 + $0x48] sm:$0xff]
        %v1839 = vld [vmem:[%s10 + $0x50] sm:$0xff]
        %v1840 = vld [vmem:[%s10 + $0x58] sm:$0xff]
        %v1841 = vld [vmem:[%s10 + $0x60] sm:$0xff]
        %v1842 = vld [vmem:[%s10 + $0x68] sm:$0xff]
        %v1843 = vld [vmem:[%s10 + $0x70] sm:$0xff]
        %v1844 = vld [vmem:[%s10 + $0x78] sm:$0xff]
        %v1845 = vld [vmem:[%s11] sm:$0xff]
        %v1846 = vld [vmem:[%s11 + $0x8] sm:$0xff]
        %v1847 = vld [vmem:[%s11 + $0x10] sm:$0xff]
        %v1848 = vld [vmem:[%s11 + $0x18] sm:$0xff]
        %v1849 = vld [vmem:[%s11 + $0x20] sm:$0xff]
        %v1850 = vld [vmem:[%s11 + $0x28] sm:$0xff]
        %v1851 = vld [vmem:[%s11 + $0x30] sm:$0xff]
        %v1852 = vld [vmem:[%s11 + $0x38] sm:$0xff]
        %v1853 = vld [vmem:[%s11 + $0x40] sm:$0xff]
        %v1854 = vld [vmem:[%s11 + $0x48] sm:$0xff]
        %v1855 = vld [vmem:[%s11 + $0x50] sm:$0xff]
        %v1856 = vld [vmem:[%s11 + $0x58] sm:$0xff]
        %v1857 = vld [vmem:[%s11 + $0x60] sm:$0xff]
        %v1858 = vld [vmem:[%s11 + $0x68] sm:$0xff]
        %v1859 = vld [vmem:[%s11 + $0x70] sm:$0xff]
        %v1860 = vld [vmem:[%s11 + $0x78] sm:$0xff]
        %v1861 = vld [vmem:[%s12] sm:$0x1]
        %1862 = vmatprep.subr.mxu0 0.0
        %1863 = vmatpush1.msra.mxu0 %v1812
        %1864 = vmatprep.subr.mxu0 0.0
        %1865 = vmatpush1.msra.mxu0 %v1813
        %1866 = vmatprep.subr.mxu0 0.0
        %1867 = vmatpush1.msra.mxu0 %v1814
        %1868 = vmatprep.subr.mxu0 0.0
        %1869 = vmatpush1.msra.mxu0 %v1815
        %1870 = vmatprep.subr.mxu0 0.0
        %1871 = vmatpush1.msra.mxu0 %v1816
        %1872 = vmatprep.subr.mxu0 0.0
        %1873 = vmatpush1.msra.mxu0 %v1817
        %1874 = vmatprep.subr.mxu0 0.0
        %1875 = vmatpush1.msra.mxu0 %v1818
        %1876 = vmatprep.subr.mxu0 0.0
        %1877 = vmatpush1.msra.mxu0 %v1819
        %1878 = vmatprep.subr.mxu0 0.0
        %1879 = vmatpush1.msra.mxu0 %v1820
        %1880 = vmatprep.subr.mxu0 0.0
        %1881 = vmatpush1.msra.mxu0 %v1821
        %1882 = vmatprep.subr.mxu0 0.0
        %1883 = vmatpush1.msra.mxu0 %v1822
        %1884 = vmatprep.subr.mxu0 0.0
        %1885 = vmatpush1.msra.mxu0 %v1823
        %1886 = vmatprep.subr.mxu0 0.0
        %1887 = vmatpush1.msra.mxu0 %v1824
        %1888 = vmatprep.subr.mxu0 0.0
        %1889 = vmatpush1.msra.mxu0 %v1825
        %1890 = vmatprep.subr.mxu0 0.0
        %1891 = vmatpush1.msra.mxu0 %v1826
        %1892 = vmatprep.subr.mxu0 0.0
        %1893 = vmatpush1.msra.mxu0 %v1827
        %1894 = vmatprep.subr.mxu0 0.0
        %1895 = vmatpush1.msra.mxu0 %v1828
        %1896 = vmatprep.subr.mxu0 0.0
        %1897 = vmatpush1.msra.mxu0 0.0
        %1898 = vmatprep.subr.mxu0 0.0
        %1899 = vmatpush1.msra.mxu0 0.0
        %1900 = vmatprep.subr.mxu0 0.0
        %1901 = vmatpush1.msra.mxu0 0.0
        %1902 = vmatprep.subr.mxu0 0.0
        %1903 = vmatpush1.msra.mxu0 0.0
        %1904 = vmatprep.subr.mxu0 0.0
        %1905 = vmatpush1.msra.mxu0 0.0
        %1906 = vmatprep.subr.mxu0 0.0
        %1907 = vmatpush1.msra.mxu0 0.0
        %1908 = vmatprep.subr.mxu0 0.0
        %1909 = vmatpush1.msra.mxu0 0.0
        %1910 = vmatprep.subr.mxu0 0.0
        %1911 = vmatpush1.msra.mxu0 0.0
        %1912 = vmatprep.subr.mxu0 0.0
        %1913 = vmatpush1.msra.mxu0 0.0
        %1914 = vmatprep.subr.mxu0 0.0
        %1915 = vmatpush1.msra.mxu0 0.0
        %1916 = vmatprep.subr.mxu0 0.0
        %1917 = vmatpush1.msra.mxu0 0.0
        %1918 = vmatprep.subr.mxu0 0.0
        %1919 = vmatpush1.msra.mxu0 0.0
        %1920 = vmatprep.subr.mxu0 0.0
        %1921 = vmatpush1.msra.mxu0 0.0
        %1922 = vmatprep.subr.mxu0 0.0
        %1923 = vmatpush1.msra.mxu0 0.0
        %1924 = vmatprep.subr.mxu0 0.0
        %1925 = vmatpush1.msra.mxu0 0.0
        %1926 = vmatprep.mubr.f32.mxu0 %v656
        %1927 = vmatmul.mubr.f32.gmra.mrb[0].mxu0 %v617
        %v1928 = vpop.f32.mrb[0].mxu0
        %v1929 = vadd.f32 0.0, %v1928
        %v1930 = vpop.f32.mrb[0].mxu0
        %1931 = vmatprep.mubr.f32.mxu0 %v659
        %1932 = vmatmul.mubr.f32.gmra.mrb[0].mxu0 %v619
        %v1933 = vpop.f32.mrb[0].mxu0
        %v1934 = vadd.f32 0.0, %v1933
        %v1935 = vpop.f32.mrb[0].mxu0
        %1936 = vmatprep.mubr.f32.mxu0 %v662
        %1937 = vmatmul.mubr.f32.gmra.mrb[0].mxu0 %v621
        %v1938 = vpop.f32.mrb[0].mxu0
        %v1939 = vadd.f32 0.0, %v1938
        %v1940 = vpop.f32.mrb[0].mxu0
        %1941 = vmatprep.mubr.f32.mxu0 %v665
        %1942 = vmatmul.mubr.f32.gmra.mrb[0].mxu0 %v623
        %v1943 = vpop.f32.mrb[0].mxu0
        %v1944 = vadd.f32 0.0, %v1943
        %v1945 = vpop.f32.mrb[0].mxu0
        %1946 = vmatprep.mubr.f32.mxu0 %v668
        %1947 = vmatmul.mubr.f32.gmra.mrb[0].mxu0 %v625
        %v1948 = vpop.f32.mrb[0].mxu0
        %v1949 = vadd.f32 0.0, %v1948
        %v1950 = vpop.f32.mrb[0].mxu0
        %1951 = vmatprep.mubr.f32.mxu0 %v671
        %1952 = vmatmul.mubr.f32.gmra.mrb[0].mxu0 %v627
        %v1953 = vpop.f32.mrb[0].mxu0
        %v1954 = vadd.f32 0.0, %v1953
        %v1955 = vpop.f32.mrb[0].mxu0
        %1956 = vmatprep.mubr.f32.mxu0 %v674
        %1957 = vmatmul.mubr.f32.gmra.mrb[0].mxu0 %v629
        %v1958 = vpop.f32.mrb[0].mxu0
        %v1959 = vadd.f32 0.0, %v1958
        %v1960 = vpop.f32.mrb[0].mxu0
        %1961 = vmatprep.mubr.f32.mxu0 %v677
        %1962 = vmatmul.mubr.f32.gmra.mrb[0].mxu0 %v631
        %v1963 = vpop.f32.mrb[0].mxu0
        %v1964 = vadd.f32 0.0, %v1963
        %v1965 = vpop.f32.mrb[0].mxu0
        %1966 = vmatprep.mubr.f32.mxu0 %v680
        %1967 = vmatmul.mubr.f32.gmra.mrb[0].mxu0 %v633
        %v1968 = vpop.f32.mrb[0].mxu0
        %v1969 = vadd.f32 0.0, %v1968
        %v1970 = vpop.f32.mrb[0].mxu0
        %1971 = vmatprep.mubr.f32.mxu0 %v683
        %1972 = vmatmul.mubr.f32.gmra.mrb[0].mxu0 %v635
        %v1973 = vpop.f32.mrb[0].mxu0
        %v1974 = vadd.f32 0.0, %v1973
        %v1975 = vpop.f32.mrb[0].mxu0
        %1976 = vmatprep.mubr.f32.mxu0 %v686
        %1977 = vmatmul.mubr.f32.gmra.mrb[0].mxu0 %v637
        %v1978 = vpop.f32.mrb[0].mxu0
        %v1979 = vadd.f32 0.0, %v1978
        %v1980 = vpop.f32.mrb[0].mxu0
        %1981 = vmatprep.mubr.f32.mxu0 %v689
        %1982 = vmatmul.mubr.f32.gmra.mrb[0].mxu0 %v639
        %v1983 = vpop.f32.mrb[0].mxu0
        %v1984 = vadd.f32 0.0, %v1983
        %v1985 = vpop.f32.mrb[0].mxu0
        %1986 = vmatprep.mubr.f32.mxu0 %v692
        %1987 = vmatmul.mubr.f32.gmra.mrb[0].mxu0 %v641
        %v1988 = vpop.f32.mrb[0].mxu0
        %v1989 = vadd.f32 0.0, %v1988
        %v1990 = vpop.f32.mrb[0].mxu0
        %1991 = vmatprep.mubr.f32.mxu0 %v695
        %1992 = vmatmul.mubr.f32.gmra.mrb[0].mxu0 %v643
        %v1993 = vpop.f32.mrb[0].mxu0
        %v1994 = vadd.f32 0.0, %v1993
        %v1995 = vpop.f32.mrb[0].mxu0
        %1996 = vmatprep.mubr.f32.mxu0 %v698
        %1997 = vmatmul.mubr.f32.gmra.mrb[0].mxu0 %v645
        %v1998 = vpop.f32.mrb[0].mxu0
        %v1999 = vadd.f32 0.0, %v1998
        %v2000 = vpop.f32.mrb[0].mxu0
        %2001 = vmatprep.mubr.f32.mxu0 %v701
        %2002 = vmatmul.mubr.f32.gmra.mrb[0].mxu0 %v647
        %v2003 = vpop.f32.mrb[0].mxu0
        %v2004 = vadd.f32 0.0, %v2003
        %v2005 = vpop.f32.mrb[0].mxu0
        %2006 = vmatprep.mubr.f32.mxu0 %v704
        %2007 = vmatmul.mubr.f32.gmra.mrb[0].mxu0 %v649
        %v2008 = vpop.f32.mrb[0].mxu0
        %v2009 = vadd.f32 0.0, %v2008
        %v2010 = vpop.f32.mrb[0].mxu0
        %2011 = vdwg.mxu0
        %2012 = vmatprep.subr.mxu0 0.0
        %2013 = vmatpush1.msra.mxu0 %v1845
        %2014 = vmatprep.subr.mxu0 0.0
        %2015 = vmatpush1.msra.mxu0 %v1846
        %2016 = vmatprep.subr.mxu0 0.0
        %2017 = vmatpush1.msra.mxu0 %v1847
        %2018 = vmatprep.subr.mxu0 0.0
        %2019 = vmatpush1.msra.mxu0 %v1848
        %2020 = vmatprep.subr.mxu0 0.0
        %2021 = vmatpush1.msra.mxu0 %v1849
        %2022 = vmatprep.subr.mxu0 0.0
        %2023 = vmatpush1.msra.mxu0 %v1850
        %2024 = vmatprep.subr.mxu0 0.0
        %2025 = vmatpush1.msra.mxu0 %v1851
        %2026 = vmatprep.subr.mxu0 0.0
        %2027 = vmatpush1.msra.mxu0 %v1852
        %2028 = vmatprep.subr.mxu0 0.0
        %2029 = vmatpush1.msra.mxu0 %v1853
        %2030 = vmatprep.subr.mxu0 0.0
        %2031 = vmatpush1.msra.mxu0 %v1854
        %2032 = vmatprep.subr.mxu0 0.0
        %2033 = vmatpush1.msra.mxu0 %v1855
        %2034 = vmatprep.subr.mxu0 0.0
        %2035 = vmatpush1.msra.mxu0 %v1856
        %2036 = vmatprep.subr.mxu0 0.0
        %2037 = vmatpush1.msra.mxu0 %v1857
        %2038 = vmatprep.subr.mxu0 0.0
        %2039 = vmatpush1.msra.mxu0 %v1858
        %2040 = vmatprep.subr.mxu0 0.0
        %2041 = vmatpush1.msra.mxu0 %v1859
        %2042 = vmatprep.subr.mxu0 0.0
        %2043 = vmatpush1.msra.mxu0 %v1860
        %2044 = vmatprep.subr.mxu0 0.0
        %2045 = vmatpush1.msra.mxu0 0.0
        %2046 = vmatprep.subr.mxu0 0.0
        %2047 = vmatpush1.msra.mxu0 0.0
        %2048 = vmatprep.subr.mxu0 0.0
        %2049 = vmatpush1.msra.mxu0 0.0
        %2050 = vmatprep.subr.mxu0 0.0
        %2051 = vmatpush1.msra.mxu0 0.0
        %2052 = vmatprep.subr.mxu0 0.0
        %2053 = vmatpush1.msra.mxu0 0.0
        %2054 = vmatprep.subr.mxu0 0.0
        %2055 = vmatpush1.msra.mxu0 0.0
        %2056 = vmatprep.subr.mxu0 0.0
        %2057 = vmatpush1.msra.mxu0 0.0
        %2058 = vmatprep.subr.mxu0 0.0
        %2059 = vmatpush1.msra.mxu0 0.0
        %2060 = vmatprep.subr.mxu0 0.0
        %2061 = vmatpush1.msra.mxu0 0.0
        %2062 = vmatprep.subr.mxu0 0.0
        %2063 = vmatpush1.msra.mxu0 0.0
        %2064 = vmatprep.subr.mxu0 0.0
        %2065 = vmatpush1.msra.mxu0 0.0
        %2066 = vmatprep.subr.mxu0 0.0
        %2067 = vmatpush1.msra.mxu0 0.0
        %2068 = vmatprep.subr.mxu0 0.0
        %2069 = vmatpush1.msra.mxu0 0.0
        %2070 = vmatprep.subr.mxu0 0.0
        %2071 = vmatpush1.msra.mxu0 0.0
        %2072 = vmatprep.subr.mxu0 0.0
        %2073 = vmatpush1.msra.mxu0 0.0
        %2074 = vmatprep.subr.mxu0 0.0
        %2075 = vmatpush1.msra.mxu0 0.0
        %2076 = vmatprep.mubr.f32.mxu0 0.0
        %2077 = vmatmul.mubr.f32.gmra.mrb[0].mxu0 %v1812
        %v2078 = vpop.f32.mrb[0].mxu0
        %v2079 = vadd.f32 0.0, %v2078
        %v2080 = vpop.f32.mrb[0].mxu0
        %2081 = vmatprep.mubr.f32.mxu0 0.0
        %2082 = vmatmul.mubr.f32.gmra.mrb[0].mxu0 %v1813
        %v2083 = vpop.f32.mrb[0].mxu0
        %v2084 = vadd.f32 0.0, %v2083
        %v2085 = vpop.f32.mrb[0].mxu0
        %2086 = vmatprep.mubr.f32.mxu0 0.0
        %2087 = vmatmul.mubr.f32.gmra.mrb[0].mxu0 %v1814
        %v2088 = vpop.f32.mrb[0].mxu0
        %v2089 = vadd.f32 0.0, %v2088
        %v2090 = vpop.f32.mrb[0].mxu0
        %2091 = vmatprep.mubr.f32.mxu0 0.0
        %2092 = vmatmul.mubr.f32.gmra.mrb[0].mxu0 %v1815
        %v2093 = vpop.f32.mrb[0].mxu0
        %v2094 = vadd.f32 0.0, %v2093
        %v2095 = vpop.f32.mrb[0].mxu0
        %2096 = vmatprep.mubr.f32.mxu0 0.0
        %2097 = vmatmul.mubr.f32.gmra.mrb[0].mxu0 %v1816
        %v2098 = vpop.f32.mrb[0].mxu0
        %v2099 = vadd.f32 0.0, %v2098
        %v2100 = vpop.f32.mrb[0].mxu0
        %2101 = vmatprep.mubr.f32.mxu0 0.0
        %2102 = vmatmul.mubr.f32.gmra.mrb[0].mxu0 %v1817
        %v2103 = vpop.f32.mrb[0].mxu0
        %v2104 = vadd.f32 0.0, %v2103
        %v2105 = vpop.f32.mrb[0].mxu0
        %2106 = vmatprep.mubr.f32.mxu0 0.0
        %2107 = vmatmul.mubr.f32.gmra.mrb[0].mxu0 %v1818
        %v2108 = vpop.f32.mrb[0].mxu0
        %v2109 = vadd.f32 0.0, %v2108
        %v2110 = vpop.f32.mrb[0].mxu0
        %2111 = vmatprep.mubr.f32.mxu0 0.0
        %2112 = vmatmul.mubr.f32.gmra.mrb[0].mxu0 %v1819
        %v2113 = vpop.f32.mrb[0].mxu0
        %v2114 = vadd.f32 0.0, %v2113
        %v2115 = vpop.f32.mrb[0].mxu0
        %2116 = vmatprep.mubr.f32.mxu0 0.0
        %2117 = vmatmul.mubr.f32.gmra.mrb[0].mxu0 %v1820
        %v2118 = vpop.f32.mrb[0].mxu0
        %v2119 = vadd.f32 0.0, %v2118
        %v2120 = vpop.f32.mrb[0].mxu0
        %2121 = vmatprep.mubr.f32.mxu0 0.0
        %2122 = vmatmul.mubr.f32.gmra.mrb[0].mxu0 %v1821
        %v2123 = vpop.f32.mrb[0].mxu0
        %v2124 = vadd.f32 0.0, %v2123
        %v2125 = vpop.f32.mrb[0].mxu0
        %2126 = vmatprep.mubr.f32.mxu0 0.0
        %2127 = vmatmul.mubr.f32.gmra.mrb[0].mxu0 %v1822
        %v2128 = vpop.f32.mrb[0].mxu0
        %v2129 = vadd.f32 0.0, %v2128
        %v2130 = vpop.f32.mrb[0].mxu0
        %2131 = vmatprep.mubr.f32.mxu0 0.0
        %2132 = vmatmul.mubr.f32.gmra.mrb[0].mxu0 %v1823
        %v2133 = vpop.f32.mrb[0].mxu0
        %v2134 = vadd.f32 0.0, %v2133
        %v2135 = vpop.f32.mrb[0].mxu0
        %2136 = vmatprep.mubr.f32.mxu0 0.0
        %2137 = vmatmul.mubr.f32.gmra.mrb[0].mxu0 %v1824
        %v2138 = vpop.f32.mrb[0].mxu0
        %v2139 = vadd.f32 0.0, %v2138
        %v2140 = vpop.f32.mrb[0].mxu0
        %2141 = vmatprep.mubr.f32.mxu0 0.0
        %2142 = vmatmul.mubr.f32.gmra.mrb[0].mxu0 %v1825
        %v2143 = vpop.f32.mrb[0].mxu0
        %v2144 = vadd.f32 0.0, %v2143
        %v2145 = vpop.f32.mrb[0].mxu0
        %2146 = vmatprep.mubr.f32.mxu0 0.0
        %2147 = vmatmul.mubr.f32.gmra.mrb[0].mxu0 %v1826
        %v2148 = vpop.f32.mrb[0].mxu0
        %v2149 = vadd.f32 0.0, %v2148
        %v2150 = vpop.f32.mrb[0].mxu0
        %2151 = vmatprep.mubr.f32.mxu0 0.0
        %2152 = vmatmul.mubr.f32.gmra.mrb[0].mxu0 %v1827
        %v2153 = vpop.f32.mrb[0].mxu0
        %v2154 = vadd.f32 0.0, %v2153
        %v2155 = vpop.f32.mrb[0].mxu0
        %2156 = vmatprep.mubr.f32.mxu0 0.0
        %2157 = vmatmul.mubr.f32.gmra.mrb[0].mxu0 %v1828
        %v2158 = vpop.f32.mrb[0].mxu0
        %v2159 = vadd.f32 0.0, %v2158
        %v2160 = vpop.f32.mrb[0].mxu0
        %2161 = vdwg.mxu0
        %2162 = vmatprep.subr.mxu0 0.0
        %2163 = vmatpush1.msra.mxu0 %v1829
        %2164 = vmatprep.subr.mxu0 0.0
        %2165 = vmatpush1.msra.mxu0 %v1830
        %2166 = vmatprep.subr.mxu0 0.0
        %2167 = vmatpush1.msra.mxu0 %v1831
        %2168 = vmatprep.subr.mxu0 0.0
        %2169 = vmatpush1.msra.mxu0 %v1832
        %2170 = vmatprep.subr.mxu0 0.0
        %2171 = vmatpush1.msra.mxu0 %v1833
        %2172 = vmatprep.subr.mxu0 0.0
        %2173 = vmatpush1.msra.mxu0 %v1834
        %2174 = vmatprep.subr.mxu0 0.0
        %2175 = vmatpush1.msra.mxu0 %v1835
        %2176 = vmatprep.subr.mxu0 0.0
        %2177 = vmatpush1.msra.mxu0 %v1836
        %2178 = vmatprep.subr.mxu0 0.0
        %2179 = vmatpush1.msra.mxu0 %v1837
        %2180 = vmatprep.subr.mxu0 0.0
        %2181 = vmatpush1.msra.mxu0 %v1838
        %2182 = vmatprep.subr.mxu0 0.0
        %2183 = vmatpush1.msra.mxu0 %v1839
        %2184 = vmatprep.subr.mxu0 0.0
        %2185 = vmatpush1.msra.mxu0 %v1840
        %2186 = vmatprep.subr.mxu0 0.0
        %2187 = vmatpush1.msra.mxu0 %v1841
        %2188 = vmatprep.subr.mxu0 0.0
        %2189 = vmatpush1.msra.mxu0 %v1842
        %2190 = vmatprep.subr.mxu0 0.0
        %2191 = vmatpush1.msra.mxu0 %v1843
        %2192 = vmatprep.subr.mxu0 0.0
        %2193 = vmatpush1.msra.mxu0 %v1844
        %2194 = vmatprep.subr.mxu0 0.0
        %2195 = vmatpush1.msra.mxu0 0.0
        %2196 = vmatprep.subr.mxu0 0.0
        %2197 = vmatpush1.msra.mxu0 0.0
        %2198 = vmatprep.subr.mxu0 0.0
        %2199 = vmatpush1.msra.mxu0 0.0
        %2200 = vmatprep.subr.mxu0 0.0
        %2201 = vmatpush1.msra.mxu0 0.0
        %2202 = vmatprep.subr.mxu0 0.0
        %2203 = vmatpush1.msra.mxu0 0.0
        %2204 = vmatprep.subr.mxu0 0.0
        %2205 = vmatpush1.msra.mxu0 0.0
        %2206 = vmatprep.subr.mxu0 0.0
        %2207 = vmatpush1.msra.mxu0 0.0
        %2208 = vmatprep.subr.mxu0 0.0
        %2209 = vmatpush1.msra.mxu0 0.0
        %2210 = vmatprep.subr.mxu0 0.0
        %2211 = vmatpush1.msra.mxu0 0.0
        %2212 = vmatprep.subr.mxu0 0.0
        %2213 = vmatpush1.msra.mxu0 0.0
        %2214 = vmatprep.subr.mxu0 0.0
        %2215 = vmatpush1.msra.mxu0 0.0
        %2216 = vmatprep.subr.mxu0 0.0
        %2217 = vmatpush1.msra.mxu0 0.0
        %2218 = vmatprep.subr.mxu0 0.0
        %2219 = vmatpush1.msra.mxu0 0.0
        %2220 = vmatprep.subr.mxu0 0.0
        %2221 = vmatpush1.msra.mxu0 0.0
        %2222 = vmatprep.subr.mxu0 0.0
        %2223 = vmatpush1.msra.mxu0 0.0
        %2224 = vmatprep.subr.mxu0 0.0
        %2225 = vmatpush1.msra.mxu0 0.0
        %2226 = vmatprep.mubr.f32.mxu0 0.0
        %2227 = vmatmul.mubr.f32.gmra.mrb[0].mxu0 %v1929
        %v2228 = vpop.f32.mrb[0].mxu0
        %v2229 = vadd.f32 %v2079, %v2228
        %v2230 = vpop.f32.mrb[0].mxu0
        %2231 = vmatprep.mubr.f32.mxu0 0.0
        %2232 = vmatmul.mubr.f32.gmra.mrb[0].mxu0 %v1934
        %v2233 = vpop.f32.mrb[0].mxu0
        %v2234 = vadd.f32 %v2084, %v2233
        %v2235 = vpop.f32.mrb[0].mxu0
        %2236 = vmatprep.mubr.f32.mxu0 0.0
        %2237 = vmatmul.mubr.f32.gmra.mrb[0].mxu0 %v1939
        %v2238 = vpop.f32.mrb[0].mxu0
        %v2239 = vadd.f32 %v2089, %v2238
        %v2240 = vpop.f32.mrb[0].mxu0
        %2241 = vmatprep.mubr.f32.mxu0 0.0
        %2242 = vmatmul.mubr.f32.gmra.mrb[0].mxu0 %v1944
        %v2243 = vpop.f32.mrb[0].mxu0
        %v2244 = vadd.f32 %v2094, %v2243
        %v2245 = vpop.f32.mrb[0].mxu0
        %2246 = vmatprep.mubr.f32.mxu0 0.0
        %2247 = vmatmul.mubr.f32.gmra.mrb[0].mxu0 %v1949
        %v2248 = vpop.f32.mrb[0].mxu0
        %v2249 = vadd.f32 %v2099, %v2248
        %v2250 = vpop.f32.mrb[0].mxu0
        %2251 = vmatprep.mubr.f32.mxu0 0.0
        %2252 = vmatmul.mubr.f32.gmra.mrb[0].mxu0 %v1954
        %v2253 = vpop.f32.mrb[0].mxu0
        %v2254 = vadd.f32 %v2104, %v2253
        %v2255 = vpop.f32.mrb[0].mxu0
        %2256 = vmatprep.mubr.f32.mxu0 0.0
        %2257 = vmatmul.mubr.f32.gmra.mrb[0].mxu0 %v1959
        %v2258 = vpop.f32.mrb[0].mxu0
        %v2259 = vadd.f32 %v2109, %v2258
        %v2260 = vpop.f32.mrb[0].mxu0
        %2261 = vmatprep.mubr.f32.mxu0 0.0
        %2262 = vmatmul.mubr.f32.gmra.mrb[0].mxu0 %v1964
        %v2263 = vpop.f32.mrb[0].mxu0
        %v2264 = vadd.f32 %v2114, %v2263
        %v2265 = vpop.f32.mrb[0].mxu0
        %2266 = vmatprep.mubr.f32.mxu0 0.0
        %2267 = vmatmul.mubr.f32.gmra.mrb[0].mxu0 %v1969
        %v2268 = vpop.f32.mrb[0].mxu0
        %v2269 = vadd.f32 %v2119, %v2268
        %v2270 = vpop.f32.mrb[0].mxu0
        %2271 = vmatprep.mubr.f32.mxu0 0.0
        %2272 = vmatmul.mubr.f32.gmra.mrb[0].mxu0 %v1974
        %v2273 = vpop.f32.mrb[0].mxu0
        %v2274 = vadd.f32 %v2124, %v2273
        %v2275 = vpop.f32.mrb[0].mxu0
        %2276 = vmatprep.mubr.f32.mxu0 0.0
        %2277 = vmatmul.mubr.f32.gmra.mrb[0].mxu0 %v1979
        %v2278 = vpop.f32.mrb[0].mxu0
        %v2279 = vadd.f32 %v2129, %v2278
        %v2280 = vpop.f32.mrb[0].mxu0
        %2281 = vmatprep.mubr.f32.mxu0 0.0
        %2282 = vmatmul.mubr.f32.gmra.mrb[0].mxu0 %v1984
        %v2283 = vpop.f32.mrb[0].mxu0
        %v2284 = vadd.f32 %v2134, %v2283
        %v2285 = vpop.f32.mrb[0].mxu0
        %2286 = vmatprep.mubr.f32.mxu0 0.0
        %2287 = vmatmul.mubr.f32.gmra.mrb[0].mxu0 %v1989
        %v2288 = vpop.f32.mrb[0].mxu0
        %v2289 = vadd.f32 %v2139, %v2288
        %v2290 = vpop.f32.mrb[0].mxu0
        %2291 = vmatprep.mubr.f32.mxu0 0.0
        %2292 = vmatmul.mubr.f32.gmra.mrb[0].mxu0 %v1994
        %v2293 = vpop.f32.mrb[0].mxu0
        %v2294 = vadd.f32 %v2144, %v2293
        %v2295 = vpop.f32.mrb[0].mxu0
        %2296 = vmatprep.mubr.f32.mxu0 0.0
        %2297 = vmatmul.mubr.f32.gmra.mrb[0].mxu0 %v1999
        %v2298 = vpop.f32.mrb[0].mxu0
        %v2299 = vadd.f32 %v2149, %v2298
        %v2300 = vpop.f32.mrb[0].mxu0
        %2301 = vmatprep.mubr.f32.mxu0 0.0
        %2302 = vmatmul.mubr.f32.gmra.mrb[0].mxu0 %v2004
        %v2303 = vpop.f32.mrb[0].mxu0
        %v2304 = vadd.f32 %v2154, %v2303
        %v2305 = vpop.f32.mrb[0].mxu0
        %2306 = vmatprep.mubr.f32.mxu0 0.0
        %2307 = vmatmul.mubr.f32.gmra.mrb[0].mxu0 %v2009
        %v2308 = vpop.f32.mrb[0].mxu0
        %v2309 = vadd.f32 %v2159, %v2308
        %v2310 = vpop.f32.mrb[0].mxu0
        %2311 = vdwg.mxu0
        %v2313 = vlaneseq
        %v2314 = vshrl.u32 %v2313, 7
        %v2315 = vsub.s32 0, %v2314
        %v2316 = vrot.slane %v1861, %v2315
        %v2318 = vadd.f32 %v2229, %v2316
        %v2319 = vadd.f32 %v2234, %v2316
        %v2320 = vadd.f32 %v2239, %v2316
        %v2321 = vadd.f32 %v2244, %v2316
        %v2322 = vadd.f32 %v2249, %v2316
        %v2323 = vadd.f32 %v2254, %v2316
        %v2324 = vadd.f32 %v2259, %v2316
        %v2325 = vadd.f32 %v2264, %v2316
        %v2326 = vadd.f32 %v2269, %v2316
        %v2327 = vadd.f32 %v2274, %v2316
        %v2328 = vadd.f32 %v2279, %v2316
        %v2329 = vadd.f32 %v2284, %v2316
        %v2330 = vadd.f32 %v2289, %v2316
        %v2331 = vadd.f32 %v2294, %v2316
        %v2332 = vadd.f32 %v2299, %v2316
        %v2333 = vadd.f32 %v2304, %v2316
        %v2334 = vadd.f32 %v2309, %v2316
        %v2335 = vmax.f32 %v2318, 0.0
        %v2336 = vmax.f32 %v2319, 0.0
        %v2337 = vmax.f32 %v2320, 0.0
        %v2338 = vmax.f32 %v2321, 0.0
        %v2339 = vmax.f32 %v2322, 0.0
        %v2340 = vmax.f32 %v2323, 0.0
        %v2341 = vmax.f32 %v2324, 0.0
        %v2342 = vmax.f32 %v2325, 0.0
        %v2343 = vmax.f32 %v2326, 0.0
        %v2344 = vmax.f32 %v2327, 0.0
        %v2345 = vmax.f32 %v2328, 0.0
        %v2346 = vmax.f32 %v2329, 0.0
        %v2347 = vmax.f32 %v2330, 0.0
        %v2348 = vmax.f32 %v2331, 0.0
        %v2349 = vmax.f32 %v2332, 0.0
        %v2350 = vmax.f32 %v2333, 0.0
        %v2351 = vmax.f32 %v2334, 0.0
        %v2352 = vld [vmem:[%s589] sm:$0xff]
        %v2353 = vld [vmem:[%s589 + $0x8] sm:$0xff]
        %v2354 = vld [vmem:[%s589 + $0x10] sm:$0xff]
        %v2355 = vld [vmem:[%s589 + $0x18] sm:$0xff]
        %v2356 = vld [vmem:[%s589 + $0x20] sm:$0xff]
        %v2357 = vld [vmem:[%s589 + $0x28] sm:$0xff]
        %v2358 = vld [vmem:[%s589 + $0x30] sm:$0xff]
        %v2359 = vld [vmem:[%s589 + $0x38] sm:$0xff]
        %v2360 = vld [vmem:[%s589 + $0x40] sm:$0xf]
        %v2361 = vld [vmem:[%s596] sm:$0xff]
        %v2362 = vld [vmem:[%s596 + $0x8] sm:$0xff]
        %v2363 = vld [vmem:[%s596 + $0x10] sm:$0xff]
        %v2364 = vld [vmem:[%s596 + $0x18] sm:$0xff]
        %v2365 = vld [vmem:[%s596 + $0x20] sm:$0xff]
        %v2366 = vld [vmem:[%s596 + $0x28] sm:$0xff]
        %v2367 = vld [vmem:[%s596 + $0x30] sm:$0xff]
        %v2368 = vld [vmem:[%s596 + $0x38] sm:$0xff]
        %v2369 = vld [vmem:[%s596 + $0x40] sm:$0xf]
        %vm2370 = vcmask 261120
        %v2371 = vsel %vm2370, %v2361, -inf
        %2372 = vmax.xlane.f32.xlu0 %v2371
        %v2373 = vpop.xlane.xlu0 %2372
        %v2374 = vsel %vm2370, %v2362, -inf
        %2375 = vmax.xlane.f32.xlu0 %v2374
        %v2376 = vpop.xlane.xlu0 %2375
        %v2377 = vsel %vm2370, %v2363, -inf
        %2378 = vmax.xlane.f32.xlu0 %v2377
        %v2379 = vpop.xlane.xlu0 %2378
        %v2380 = vsel %vm2370, %v2364, -inf
        %2381 = vmax.xlane.f32.xlu0 %v2380
        %v2382 = vpop.xlane.xlu0 %2381
        %v2383 = vsel %vm2370, %v2365, -inf
        %2384 = vmax.xlane.f32.xlu0 %v2383
        %v2385 = vpop.xlane.xlu0 %2384
        %v2386 = vsel %vm2370, %v2366, -inf
        %2387 = vmax.xlane.f32.xlu0 %v2386
        %v2388 = vpop.xlane.xlu0 %2387
        %v2389 = vsel %vm2370, %v2367, -inf
        %2390 = vmax.xlane.f32.xlu0 %v2389
        %v2391 = vpop.xlane.xlu0 %2390
        %v2392 = vsel %vm2370, %v2368, -inf
        %2393 = vmax.xlane.f32.xlu0 %v2392
        %v2394 = vpop.xlane.xlu0 %2393
        %vm2395 = vcmask 257024
        %v2396 = vsel %vm2395, %v2369, -inf
        %2397 = vmax.xlane.f32.xlu0 %v2396
        %v2398 = vpop.xlane.xlu0 %2397
        %v2399 = vsub.f32 %v2361, %v2373
        %v2400 = vsub.f32 %v2362, %v2376
        %v2401 = vsub.f32 %v2363, %v2379
        %v2402 = vsub.f32 %v2364, %v2382
        %v2403 = vsub.f32 %v2365, %v2385
        %v2404 = vsub.f32 %v2366, %v2388
        %v2405 = vsub.f32 %v2367, %v2391
        %v2406 = vsub.f32 %v2368, %v2394
        %v2407 = vsub.f32 %v2369, %v2398
        %v2408 = vmul.f32 %v2399, 1.442695
        %v2409 = vpow.pop %v2408
        %v2410 = vmul.f32 %v2400, 1.442695
        %v2411 = vpow.pop %v2410
        %v2412 = vmul.f32 %v2401, 1.442695
        %v2413 = vpow.pop %v2412
        %v2414 = vmul.f32 %v2402, 1.442695
        %v2415 = vpow.pop %v2414
        %v2416 = vmul.f32 %v2403, 1.442695
        %v2417 = vpow.pop %v2416
        %v2418 = vmul.f32 %v2404, 1.442695
        %v2419 = vpow.pop %v2418
        %v2420 = vmul.f32 %v2405, 1.442695
        %v2421 = vpow.pop %v2420
        %v2422 = vmul.f32 %v2406, 1.442695
        %v2423 = vpow.pop %v2422
        %v2424 = vmul.f32 %v2407, 1.442695
        %v2425 = vpow.pop %v2424
        %v2426 = vsel %vm2370, %v2409, 0.0
        %2427 = vadd.xlane.f32.xlu0 %v2426
        %v2428 = vpop.xlane.xlu0 %2427
        %v2429 = vsel %vm2370, %v2411, 0.0
        %2430 = vadd.xlane.f32.xlu0 %v2429
        %v2431 = vpop.xlane.xlu0 %2430
        %v2432 = vsel %vm2370, %v2413, 0.0
        %2433 = vadd.xlane.f32.xlu0 %v2432
        %v2434 = vpop.xlane.xlu0 %2433
        %v2435 = vsel %vm2370, %v2415, 0.0
        %2436 = vadd.xlane.f32.xlu0 %v2435
        %v2437 = vpop.xlane.xlu0 %2436
        %v2438 = vsel %vm2370, %v2417, 0.0
        %2439 = vadd.xlane.f32.xlu0 %v2438
        %v2440 = vpop.xlane.xlu0 %2439
        %v2441 = vsel %vm2370, %v2419, 0.0
        %2442 = vadd.xlane.f32.xlu0 %v2441
        %v2443 = vpop.xlane.xlu0 %2442
        %v2444 = vsel %vm2370, %v2421, 0.0
        %2445 = vadd.xlane.f32.xlu0 %v2444
        %v2446 = vpop.xlane.xlu0 %2445
        %v2447 = vsel %vm2370, %v2423, 0.0
        %2448 = vadd.xlane.f32.xlu0 %v2447
        %v2449 = vpop.xlane.xlu0 %2448
        %v2450 = vsel %vm2395, %v2425, 0.0
        %2451 = vadd.xlane.f32.xlu0 %v2450
        %v2452 = vpop.xlane.xlu0 %2451
        %v2453 = vrcp.pop %v2428
        %v2454 = vmul.f32 %v2409, %v2453
        %v2455 = vrcp.pop %v2431
        %v2456 = vmul.f32 %v2411, %v2455
        %v2457 = vrcp.pop %v2434
        %v2458 = vmul.f32 %v2413, %v2457
        %v2459 = vrcp.pop %v2437
        %v2460 = vmul.f32 %v2415, %v2459
        %v2461 = vrcp.pop %v2440
        %v2462 = vmul.f32 %v2417, %v2461
        %v2463 = vrcp.pop %v2443
        %v2464 = vmul.f32 %v2419, %v2463
        %v2465 = vrcp.pop %v2446
        %v2466 = vmul.f32 %v2421, %v2465
        %v2467 = vrcp.pop %v2449
        %v2468 = vmul.f32 %v2423, %v2467
        %v2469 = vrcp.pop %v2452
        %v2470 = vmul.f32 %v2425, %v2469
        %2471 = vxpose.xlu0.b32.start [1/16] %v2454, 128
        %2472 = vxpose.xlu0.b32.cont [2/16] %v2456, 128
        %2473 = vxpose.xlu0.b32.cont [3/16] %v2458, 128
        %2474 = vxpose.xlu0.b32.cont [4/16] %v2460, 128
        %2475 = vxpose.xlu0.b32.cont [5/16] %v2462, 128
        %2476 = vxpose.xlu0.b32.cont [6/16] %v2464, 128
        %2477 = vxpose.xlu0.b32.cont [7/16] %v2466, 128
        %2478 = vxpose.xlu0.b32.cont [8/16] %v2468, 128
        %2479 = vxpose.xlu0.b32.cont [9/16] %v2470, 128
        %2480 = vxpose.xlu0.b32.cont [10/16] 0.0, 128
        %2481 = vxpose.xlu0.b32.cont [11/16] 0.0, 128
        %2482 = vxpose.xlu0.b32.cont [12/16] 0.0, 128
        %2483 = vxpose.xlu0.b32.cont [13/16] 0.0, 128
        %2484 = vxpose.xlu0.b32.cont [14/16] 0.0, 128
        %2485 = vxpose.xlu0.b32.cont [15/16] 0.0, 128
        %2486 = vxpose.xlu0.b32.end [16/16] 0.0, 128
        %v2487 = vpop.trf.xlu0
        %v2488 = vpop.trf.xlu0
        %v2489 = vpop.trf.xlu0
        %v2490 = vpop.trf.xlu0
        %v2491 = vpop.trf.xlu0
        %v2492 = vpop.trf.xlu0
        %v2493 = vpop.trf.xlu0
        %v2494 = vpop.trf.xlu0
        %v2495 = vpop.trf.xlu0
        %v2496 = vpop.trf.xlu0
        %v2497 = vpop.trf.xlu0
        %v2498 = vpop.trf.xlu0
        %v2499 = vpop.trf.xlu0
        %v2500 = vpop.trf.xlu0
        %v2501 = vpop.trf.xlu0
        %v2502 = vpop.trf.xlu0
        %vm2503 = vcmask 556032
        %v2505 = vsel %vm2503, %v2487, 0
        %v2508 = vsel %vm2503, %v2488, 0
        %v2511 = vsel %vm2503, %v2489, 0
        %v2514 = vsel %vm2503, %v2490, 0
        %vm2516 = vcmask 1043456
        %v2518 = vsel %vm2516, %v2343, 0
        %2520 = vmatprep.subr.mxu0 0.0
        %2521 = vmatpush1.msra.mxu0 %v2335
        %2522 = vmatprep.subr.mxu0 0.0
        %2523 = vmatpush1.msra.mxu0 %v2336
        %2524 = vmatprep.subr.mxu0 0.0
        %2525 = vmatpush1.msra.mxu0 %v2337
        %2526 = vmatprep.subr.mxu0 0.0
        %2527 = vmatpush1.msra.mxu0 %v2338
        %2528 = vmatprep.subr.mxu0 0.0
        %2529 = vmatpush1.msra.mxu0 %v2339
        %2530 = vmatprep.subr.mxu0 0.0
        %2531 = vmatpush1.msra.mxu0 %v2340
        %2532 = vmatprep.subr.mxu0 0.0
        %2533 = vmatpush1.msra.mxu0 %v2341
        %2534 = vmatprep.subr.mxu0 0.0
        %2535 = vmatpush1.msra.mxu0 %v2342
        %2536 = vmatprep.subr.mxu0 0.0
        %2537 = vmatpush1.msra.mxu0 %v2518
        %2538 = vmatprep.subr.mxu0 0.0
        %2539 = vmatpush1.msra.mxu0 0.0
        %2540 = vmatprep.subr.mxu0 0.0
        %2541 = vmatpush1.msra.mxu0 0.0
        %2542 = vmatprep.subr.mxu0 0.0
        %2543 = vmatpush1.msra.mxu0 0.0
        %2544 = vmatprep.subr.mxu0 0.0
        %2545 = vmatpush1.msra.mxu0 0.0
        %2546 = vmatprep.subr.mxu0 0.0
        %2547 = vmatpush1.msra.mxu0 0.0
        %2548 = vmatprep.subr.mxu0 0.0
        %2549 = vmatpush1.msra.mxu0 0.0
        %2550 = vmatprep.subr.mxu0 0.0
        %2551 = vmatpush1.msra.mxu0 0.0
        %2552 = vmatprep.subr.mxu0 0.0
        %2553 = vmatpush1.msra.mxu0 0.0
        %2554 = vmatprep.subr.mxu0 0.0
        %2555 = vmatpush1.msra.mxu0 0.0
        %2556 = vmatprep.subr.mxu0 0.0
        %2557 = vmatpush1.msra.mxu0 0.0
        %2558 = vmatprep.subr.mxu0 0.0
        %2559 = vmatpush1.msra.mxu0 0.0
        %2560 = vmatprep.subr.mxu0 0.0
        %2561 = vmatpush1.msra.mxu0 0.0
        %2562 = vmatprep.subr.mxu0 0.0
        %2563 = vmatpush1.msra.mxu0 0.0
        %2564 = vmatprep.subr.mxu0 0.0
        %2565 = vmatpush1.msra.mxu0 0.0
        %2566 = vmatprep.subr.mxu0 0.0
        %2567 = vmatpush1.msra.mxu0 0.0
        %2568 = vmatprep.subr.mxu0 0.0
        %2569 = vmatpush1.msra.mxu0 0.0
        %2570 = vmatprep.subr.mxu0 0.0
        %2571 = vmatpush1.msra.mxu0 0.0
        %2572 = vmatprep.subr.mxu0 0.0
        %2573 = vmatpush1.msra.mxu0 0.0
        %2574 = vmatprep.subr.mxu0 0.0
        %2575 = vmatpush1.msra.mxu0 0.0
        %2576 = vmatprep.subr.mxu0 0.0
        %2577 = vmatpush1.msra.mxu0 0.0
        %2578 = vmatprep.subr.mxu0 0.0
        %2579 = vmatpush1.msra.mxu0 0.0
        %2580 = vmatprep.subr.mxu0 0.0
        %2581 = vmatpush1.msra.mxu0 0.0
        %2582 = vmatprep.subr.mxu0 0.0
        %2583 = vmatpush1.msra.mxu0 0.0
        %2584 = vmatprep.mubr.f32.mxu0 0.0
        %2585 = vmatmul.mubr.f32.gmra.mrb[0].mxu0 %v2505
        %v2586 = vpop.f32.mrb[0].mxu0
        %v2587 = vadd.f32 0.0, %v2586
        %v2588 = vpop.f32.mrb[0].mxu0
        %2589 = vmatprep.mubr.f32.mxu0 0.0
        %2590 = vmatmul.mubr.f32.gmra.mrb[0].mxu0 %v2508
        %v2591 = vpop.f32.mrb[0].mxu0
        %v2592 = vadd.f32 0.0, %v2591
        %v2593 = vpop.f32.mrb[0].mxu0
        %2594 = vmatprep.mubr.f32.mxu0 0.0
        %2595 = vmatmul.mubr.f32.gmra.mrb[0].mxu0 %v2511
        %v2596 = vpop.f32.mrb[0].mxu0
        %v2597 = vadd.f32 0.0, %v2596
        %v2598 = vpop.f32.mrb[0].mxu0
        %2599 = vmatprep.mubr.f32.mxu0 0.0
        %2600 = vmatmul.mubr.f32.gmra.mrb[0].mxu0 %v2514
        %v2601 = vpop.f32.mrb[0].mxu0
        %v2602 = vadd.f32 0.0, %v2601
        %v2603 = vpop.f32.mrb[0].mxu0
        %2604 = vdwg.mxu0
        %v2606 = vsel %vm2516, %v2360, 0
        %2608 = vmatprep.subr.mxu0 0.0
        %2609 = vmatpush1.msra.mxu0 %v2352
        %2610 = vmatprep.subr.mxu0 0.0
        %2611 = vmatpush1.msra.mxu0 %v2353
        %2612 = vmatprep.subr.mxu0 0.0
        %2613 = vmatpush1.msra.mxu0 %v2354
        %2614 = vmatprep.subr.mxu0 0.0
        %2615 = vmatpush1.msra.mxu0 %v2355
        %2616 = vmatprep.subr.mxu0 0.0
        %2617 = vmatpush1.msra.mxu0 %v2356
        %2618 = vmatprep.subr.mxu0 0.0
        %2619 = vmatpush1.msra.mxu0 %v2357
        %2620 = vmatprep.subr.mxu0 0.0
        %2621 = vmatpush1.msra.mxu0 %v2358
        %2622 = vmatprep.subr.mxu0 0.0
        %2623 = vmatpush1.msra.mxu0 %v2359
        %2624 = vmatprep.subr.mxu0 0.0
        %2625 = vmatpush1.msra.mxu0 %v2606
        %2626 = vmatprep.subr.mxu0 0.0
        %2627 = vmatpush1.msra.mxu0 0.0
        %2628 = vmatprep.subr.mxu0 0.0
        %2629 = vmatpush1.msra.mxu0 0.0
        %2630 = vmatprep.subr.mxu0 0.0
        %2631 = vmatpush1.msra.mxu0 0.0
        %2632 = vmatprep.subr.mxu0 0.0
        %2633 = vmatpush1.msra.mxu0 0.0
        %2634 = vmatprep.subr.mxu0 0.0
        %2635 = vmatpush1.msra.mxu0 0.0
        %2636 = vmatprep.subr.mxu0 0.0
        %2637 = vmatpush1.msra.mxu0 0.0
        %2638 = vmatprep.subr.mxu0 0.0
        %2639 = vmatpush1.msra.mxu0 0.0
        %2640 = vmatprep.subr.mxu0 0.0
        %2641 = vmatpush1.msra.mxu0 0.0
        %2642 = vmatprep.subr.mxu0 0.0
        %2643 = vmatpush1.msra.mxu0 0.0
        %2644 = vmatprep.subr.mxu0 0.0
        %2645 = vmatpush1.msra.mxu0 0.0
        %2646 = vmatprep.subr.mxu0 0.0
        %2647 = vmatpush1.msra.mxu0 0.0
        %2648 = vmatprep.subr.mxu0 0.0
        %2649 = vmatpush1.msra.mxu0 0.0
        %2650 = vmatprep.subr.mxu0 0.0
        %2651 = vmatpush1.msra.mxu0 0.0
        %2652 = vmatprep.subr.mxu0 0.0
        %2653 = vmatpush1.msra.mxu0 0.0
        %2654 = vmatprep.subr.mxu0 0.0
        %2655 = vmatpush1.msra.mxu0 0.0
        %2656 = vmatprep.subr.mxu0 0.0
        %2657 = vmatpush1.msra.mxu0 0.0
        %2658 = vmatprep.subr.mxu0 0.0
        %2659 = vmatpush1.msra.mxu0 0.0
        %2660 = vmatprep.subr.mxu0 0.0
        %2661 = vmatpush1.msra.mxu0 0.0
        %2662 = vmatprep.subr.mxu0 0.0
        %2663 = vmatpush1.msra.mxu0 0.0
        %2664 = vmatprep.subr.mxu0 0.0
        %2665 = vmatpush1.msra.mxu0 0.0
        %2666 = vmatprep.subr.mxu0 0.0
        %2667 = vmatpush1.msra.mxu0 0.0
        %2668 = vmatprep.subr.mxu0 0.0
        %2669 = vmatpush1.msra.mxu0 0.0
        %2670 = vmatprep.subr.mxu0 0.0
        %2671 = vmatpush1.msra.mxu0 0.0
        %2672 = vmatprep.mubr.f32.mxu0 0.0
        %2673 = vmatmul.mubr.f32.gmra.mrb[0].mxu0 %v2505
        %v2674 = vpop.f32.mrb[0].mxu0
        %v2675 = vadd.f32 0.0, %v2674
        %v2676 = vpop.f32.mrb[0].mxu0
        %2677 = vmatprep.mubr.f32.mxu0 0.0
        %2678 = vmatmul.mubr.f32.gmra.mrb[0].mxu0 %v2508
        %v2679 = vpop.f32.mrb[0].mxu0
        %v2680 = vadd.f32 0.0, %v2679
        %v2681 = vpop.f32.mrb[0].mxu0
        %2682 = vmatprep.mubr.f32.mxu0 0.0
        %2683 = vmatmul.mubr.f32.gmra.mrb[0].mxu0 %v2511
        %v2684 = vpop.f32.mrb[0].mxu0
        %v2685 = vadd.f32 0.0, %v2684
        %v2686 = vpop.f32.mrb[0].mxu0
        %2687 = vmatprep.mubr.f32.mxu0 0.0
        %2688 = vmatmul.mubr.f32.gmra.mrb[0].mxu0 %v2514
        %v2689 = vpop.f32.mrb[0].mxu0
        %v2690 = vadd.f32 0.0, %v2689
        %v2691 = vpop.f32.mrb[0].mxu0
        %2692 = vdwg.mxu0
        %v2694 = vsel %vm2503, %v2675, 0
        %v2697 = vsel %vm2503, %v2680, 0
        %v2700 = vsel %vm2503, %v2685, 0
        %v2703 = vsel %vm2503, %v2690, 0
        %v2706 = vsel %vm2516, %v2470, 0
        %2708 = vmatprep.subr.mxu0 0.0
        %2709 = vmatpush1.msra.mxu0 %v2454
        %2710 = vmatprep.subr.mxu0 0.0
        %2711 = vmatpush1.msra.mxu0 %v2456
        %2712 = vmatprep.subr.mxu0 0.0
        %2713 = vmatpush1.msra.mxu0 %v2458
        %2714 = vmatprep.subr.mxu0 0.0
        %2715 = vmatpush1.msra.mxu0 %v2460
        %2716 = vmatprep.subr.mxu0 0.0
        %2717 = vmatpush1.msra.mxu0 %v2462
        %2718 = vmatprep.subr.mxu0 0.0
        %2719 = vmatpush1.msra.mxu0 %v2464
        %2720 = vmatprep.subr.mxu0 0.0
        %2721 = vmatpush1.msra.mxu0 %v2466
        %2722 = vmatprep.subr.mxu0 0.0
        %2723 = vmatpush1.msra.mxu0 %v2468
        %2724 = vmatprep.subr.mxu0 0.0
        %2725 = vmatpush1.msra.mxu0 %v2706
        %2726 = vmatprep.subr.mxu0 0.0
        %2727 = vmatpush1.msra.mxu0 0.0
        %2728 = vmatprep.subr.mxu0 0.0
        %2729 = vmatpush1.msra.mxu0 0.0
        %2730 = vmatprep.subr.mxu0 0.0
        %2731 = vmatpush1.msra.mxu0 0.0
        %2732 = vmatprep.subr.mxu0 0.0
        %2733 = vmatpush1.msra.mxu0 0.0
        %2734 = vmatprep.subr.mxu0 0.0
        %2735 = vmatpush1.msra.mxu0 0.0
        %2736 = vmatprep.subr.mxu0 0.0
        %2737 = vmatpush1.msra.mxu0 0.0
        %2738 = vmatprep.subr.mxu0 0.0
        %2739 = vmatpush1.msra.mxu0 0.0
        %2740 = vmatprep.subr.mxu0 0.0
        %2741 = vmatpush1.msra.mxu0 0.0
        %2742 = vmatprep.subr.mxu0 0.0
        %2743 = vmatpush1.msra.mxu0 0.0
        %2744 = vmatprep.subr.mxu0 0.0
        %2745 = vmatpush1.msra.mxu0 0.0
        %2746 = vmatprep.subr.mxu0 0.0
        %2747 = vmatpush1.msra.mxu0 0.0
        %2748 = vmatprep.subr.mxu0 0.0
        %2749 = vmatpush1.msra.mxu0 0.0
        %2750 = vmatprep.subr.mxu0 0.0
        %2751 = vmatpush1.msra.mxu0 0.0
        %2752 = vmatprep.subr.mxu0 0.0
        %2753 = vmatpush1.msra.mxu0 0.0
        %2754 = vmatprep.subr.mxu0 0.0
        %2755 = vmatpush1.msra.mxu0 0.0
        %2756 = vmatprep.subr.mxu0 0.0
        %2757 = vmatpush1.msra.mxu0 0.0
        %2758 = vmatprep.subr.mxu0 0.0
        %2759 = vmatpush1.msra.mxu0 0.0
        %2760 = vmatprep.subr.mxu0 0.0
        %2761 = vmatpush1.msra.mxu0 0.0
        %2762 = vmatprep.subr.mxu0 0.0
        %2763 = vmatpush1.msra.mxu0 0.0
        %2764 = vmatprep.subr.mxu0 0.0
        %2765 = vmatpush1.msra.mxu0 0.0
        %2766 = vmatprep.subr.mxu0 0.0
        %2767 = vmatpush1.msra.mxu0 0.0
        %2768 = vmatprep.subr.mxu0 0.0
        %2769 = vmatpush1.msra.mxu0 0.0
        %2770 = vmatprep.subr.mxu0 0.0
        %2771 = vmatpush1.msra.mxu0 0.0
        %2772 = vmatprep.mubr.f32.mxu0 0.0
        %2773 = vmatmul.mubr.f32.gmra.mrb[0].mxu0 %v2694
        %v2774 = vpop.f32.mrb[0].mxu0
        %v2775 = vadd.f32 0.0, %v2774
        %v2776 = vpop.f32.mrb[0].mxu0
        %2777 = vmatprep.mubr.f32.mxu0 0.0
        %2778 = vmatmul.mubr.f32.gmra.mrb[0].mxu0 %v2697
        %v2779 = vpop.f32.mrb[0].mxu0
        %v2780 = vadd.f32 0.0, %v2779
        %v2781 = vpop.f32.mrb[0].mxu0
        %2782 = vmatprep.mubr.f32.mxu0 0.0
        %2783 = vmatmul.mubr.f32.gmra.mrb[0].mxu0 %v2700
        %v2784 = vpop.f32.mrb[0].mxu0
        %v2785 = vadd.f32 0.0, %v2784
        %v2786 = vpop.f32.mrb[0].mxu0
        %2787 = vmatprep.mubr.f32.mxu0 0.0
        %2788 = vmatmul.mubr.f32.gmra.mrb[0].mxu0 %v2703
        %v2789 = vpop.f32.mrb[0].mxu0
        %v2790 = vadd.f32 0.0, %v2789
        %v2791 = vpop.f32.mrb[0].mxu0
        %2792 = vdwg.mxu0
        %v2794 = vsel %vm2370, %v2454, 0
        %v2797 = vsel %vm2370, %v2456, 0
        %v2800 = vsel %vm2370, %v2458, 0
        %v2803 = vsel %vm2370, %v2460, 0
        %v2806 = vsel %vm2370, %v2462, 0
        %v2809 = vsel %vm2370, %v2464, 0
        %v2812 = vsel %vm2370, %v2466, 0
        %v2815 = vsel %vm2370, %v2468, 0
        %v2817 = vsel %vm2370, %v2470, 0
        %2819 = vmatprep.subr.mxu0 0.0
        %2820 = vmatpush1.msra.mxu0 %v2487
        %2821 = vmatprep.subr.mxu0 0.0
        %2822 = vmatpush1.msra.mxu0 %v2488
        %2823 = vmatprep.subr.mxu0 0.0
        %2824 = vmatpush1.msra.mxu0 %v2489
        %2825 = vmatprep.subr.mxu0 0.0
        %2826 = vmatpush1.msra.mxu0 %v2490
        %2827 = vmatprep.subr.mxu0 0.0
        %2828 = vmatpush1.msra.mxu0 0.0
        %2829 = vmatprep.subr.mxu0 0.0
        %2830 = vmatpush1.msra.mxu0 0.0
        %2831 = vmatprep.subr.mxu0 0.0
        %2832 = vmatpush1.msra.mxu0 0.0
        %2833 = vmatprep.subr.mxu0 0.0
        %2834 = vmatpush1.msra.mxu0 0.0
        %2835 = vmatprep.subr.mxu0 0.0
        %2836 = vmatpush1.msra.mxu0 0.0
        %2837 = vmatprep.subr.mxu0 0.0
        %2838 = vmatpush1.msra.mxu0 0.0
        %2839 = vmatprep.subr.mxu0 0.0
        %2840 = vmatpush1.msra.mxu0 0.0
        %2841 = vmatprep.subr.mxu0 0.0
        %2842 = vmatpush1.msra.mxu0 0.0
        %2843 = vmatprep.subr.mxu0 0.0
        %2844 = vmatpush1.msra.mxu0 0.0
        %2845 = vmatprep.subr.mxu0 0.0
        %2846 = vmatpush1.msra.mxu0 0.0
        %2847 = vmatprep.subr.mxu0 0.0
        %2848 = vmatpush1.msra.mxu0 0.0
        %2849 = vmatprep.subr.mxu0 0.0
        %2850 = vmatpush1.msra.mxu0 0.0
        %2851 = vmatprep.subr.mxu0 0.0
        %2852 = vmatpush1.msra.mxu0 0.0
        %2853 = vmatprep.subr.mxu0 0.0
        %2854 = vmatpush1.msra.mxu0 0.0
        %2855 = vmatprep.subr.mxu0 0.0
        %2856 = vmatpush1.msra.mxu0 0.0
        %2857 = vmatprep.subr.mxu0 0.0
        %2858 = vmatpush1.msra.mxu0 0.0
        %2859 = vmatprep.subr.mxu0 0.0
        %2860 = vmatpush1.msra.mxu0 0.0
        %2861 = vmatprep.subr.mxu0 0.0
        %2862 = vmatpush1.msra.mxu0 0.0
        %2863 = vmatprep.subr.mxu0 0.0
        %2864 = vmatpush1.msra.mxu0 0.0
        %2865 = vmatprep.subr.mxu0 0.0
        %2866 = vmatpush1.msra.mxu0 0.0
        %2867 = vmatprep.subr.mxu0 0.0
        %2868 = vmatpush1.msra.mxu0 0.0
        %2869 = vmatprep.subr.mxu0 0.0
        %2870 = vmatpush1.msra.mxu0 0.0
        %2871 = vmatprep.subr.mxu0 0.0
        %2872 = vmatpush1.msra.mxu0 0.0
        %2873 = vmatprep.subr.mxu0 0.0
        %2874 = vmatpush1.msra.mxu0 0.0
        %2875 = vmatprep.subr.mxu0 0.0
        %2876 = vmatpush1.msra.mxu0 0.0
        %2877 = vmatprep.subr.mxu0 0.0
        %2878 = vmatpush1.msra.mxu0 0.0
        %2879 = vmatprep.subr.mxu0 0.0
        %2880 = vmatpush1.msra.mxu0 0.0
        %2881 = vmatprep.subr.mxu0 0.0
        %2882 = vmatpush1.msra.mxu0 0.0
        %2883 = vmatprep.mubr.f32.mxu0 0.0
        %2884 = vmatmul.mubr.f32.gmra.mrb[0].mxu0 %v2794
        %v2885 = vpop.f32.mrb[0].mxu0
        %v2886 = vadd.f32 0.0, %v2885
        %v2887 = vpop.f32.mrb[0].mxu0
        %2888 = vmatprep.mubr.f32.mxu0 0.0
        %2889 = vmatmul.mubr.f32.gmra.mrb[0].mxu0 %v2797
        %v2890 = vpop.f32.mrb[0].mxu0
        %v2891 = vadd.f32 0.0, %v2890
        %v2892 = vpop.f32.mrb[0].mxu0
        %2893 = vmatprep.mubr.f32.mxu0 0.0
        %2894 = vmatmul.mubr.f32.gmra.mrb[0].mxu0 %v2800
        %v2895 = vpop.f32.mrb[0].mxu0
        %v2896 = vadd.f32 0.0, %v2895
        %v2897 = vpop.f32.mrb[0].mxu0
        %2898 = vmatprep.mubr.f32.mxu0 0.0
        %2899 = vmatmul.mubr.f32.gmra.mrb[0].mxu0 %v2803
        %v2900 = vpop.f32.mrb[0].mxu0
        %v2901 = vadd.f32 0.0, %v2900
        %v2902 = vpop.f32.mrb[0].mxu0
        %2903 = vmatprep.mubr.f32.mxu0 0.0
        %2904 = vmatmul.mubr.f32.gmra.mrb[0].mxu0 %v2806
        %v2905 = vpop.f32.mrb[0].mxu0
        %v2906 = vadd.f32 0.0, %v2905
        %v2907 = vpop.f32.mrb[0].mxu0
        %2908 = vmatprep.mubr.f32.mxu0 0.0
        %2909 = vmatmul.mubr.f32.gmra.mrb[0].mxu0 %v2809
        %v2910 = vpop.f32.mrb[0].mxu0
        %v2911 = vadd.f32 0.0, %v2910
        %v2912 = vpop.f32.mrb[0].mxu0
        %2913 = vmatprep.mubr.f32.mxu0 0.0
        %2914 = vmatmul.mubr.f32.gmra.mrb[0].mxu0 %v2812
        %v2915 = vpop.f32.mrb[0].mxu0
        %v2916 = vadd.f32 0.0, %v2915
        %v2917 = vpop.f32.mrb[0].mxu0
        %2918 = vmatprep.mubr.f32.mxu0 0.0
        %2919 = vmatmul.mubr.f32.gmra.mrb[0].mxu0 %v2815
        %v2920 = vpop.f32.mrb[0].mxu0
        %v2921 = vadd.f32 0.0, %v2920
        %v2922 = vpop.f32.mrb[0].mxu0
        %2923 = vmatprep.mubr.f32.mxu0 0.0
        %2924 = vmatmul.mubr.f32.gmra.mrb[0].mxu0 %v2817
        %v2925 = vpop.f32.mrb[0].mxu0
        %v2926 = vadd.f32 0.0, %v2925
        %v2927 = vpop.f32.mrb[0].mxu0
        %2928 = vdwg.mxu0
        %v2929 = vsub.f32 %v2352, %v2886
        %v2930 = vsub.f32 %v2353, %v2891
        %v2931 = vsub.f32 %v2354, %v2896
        %v2932 = vsub.f32 %v2355, %v2901
        %v2933 = vsub.f32 %v2356, %v2906
        %v2934 = vsub.f32 %v2357, %v2911
        %v2935 = vsub.f32 %v2358, %v2916
        %v2936 = vsub.f32 %v2359, %v2921
        %v2937 = vsub.f32 %v2360, %v2926
        %v2938 = vmul.f32 %v2929, %v2929
        %v2939 = vmul.f32 %v2930, %v2930
        %v2940 = vmul.f32 %v2931, %v2931
        %v2941 = vmul.f32 %v2932, %v2932
        %v2942 = vmul.f32 %v2933, %v2933
        %v2943 = vmul.f32 %v2934, %v2934
        %v2944 = vmul.f32 %v2935, %v2935
        %v2945 = vmul.f32 %v2936, %v2936
        %v2946 = vmul.f32 %v2937, %v2937
        %v2947 = vsel %vm2503, %v2938, 0.0
        %2948 = vadd.xlane.f32.xlu0 %v2947
        %v2949 = vpop.xlane.xlu0 %2948
        %v2950 = vsel %vm2503, %v2939, 0.0
        %2951 = vadd.xlane.f32.xlu0 %v2950
        %v2952 = vpop.xlane.xlu0 %2951
        %v2953 = vsel %vm2503, %v2940, 0.0
        %2954 = vadd.xlane.f32.xlu0 %v2953
        %v2955 = vpop.xlane.xlu0 %2954
        %v2956 = vsel %vm2503, %v2941, 0.0
        %2957 = vadd.xlane.f32.xlu0 %v2956
        %v2958 = vpop.xlane.xlu0 %2957
        %v2959 = vsel %vm2503, %v2942, 0.0
        %2960 = vadd.xlane.f32.xlu0 %v2959
        %v2961 = vpop.xlane.xlu0 %2960
        %v2962 = vsel %vm2503, %v2943, 0.0
        %2963 = vadd.xlane.f32.xlu0 %v2962
        %v2964 = vpop.xlane.xlu0 %2963
        %v2965 = vsel %vm2503, %v2944, 0.0
        %2966 = vadd.xlane.f32.xlu0 %v2965
        %v2967 = vpop.xlane.xlu0 %2966
        %v2968 = vsel %vm2503, %v2945, 0.0
        %2969 = vadd.xlane.f32.xlu0 %v2968
        %v2970 = vpop.xlane.xlu0 %2969
        %vm2971 = vcmask 551936
        %v2972 = vsel %vm2971, %v2946, 0.0
        %2973 = vadd.xlane.f32.xlu0 %v2972
        %v2974 = vpop.xlane.xlu0 %2973
        %v2975 = vadd.f32 %v2949, %v2952
        %v2976 = vadd.f32 %v2975, %v2955
        %v2977 = vadd.f32 %v2976, %v2958
        %v2978 = vadd.f32 %v2977, %v2961
        %v2979 = vadd.f32 %v2978, %v2964
        %v2980 = vadd.f32 %v2979, %v2967
        %v2981 = vadd.f32 %v2980, %v2970
        %v2982 = vsel %vm2516, %v2974, 0.0
        %v2983 = vadd.f32 %v2981, %v2982
        %v2984 = vrot.slane %v2983, 4
        %v2985 = vadd.f32 %v2983, %v2984
        %v2986 = vrot.slane %v2985, 2
        %v2987 = vadd.f32 %v2985, %v2986
        %v2988 = vrot.slane %v2987, 1
        %v2989 = vadd.f32 %v2987, %v2988
        %v2990 = vsub.f32 0.0, %v2454
        %v2991 = vsub.f32 0.0, %v2456
        %v2992 = vsub.f32 0.0, %v2458
        %v2993 = vsub.f32 0.0, %v2460
        %v2994 = vsub.f32 0.0, %v2462
        %v2995 = vsub.f32 0.0, %v2464
        %v2996 = vsub.f32 0.0, %v2466
        %v2997 = vsub.f32 0.0, %v2468
        %v2998 = vsub.f32 0.0, %v2470
        %v2999 = vadd.f32 %v2454, 1e-15
        %v3000 = vadd.f32 %v2456, 1e-15
        %v3001 = vadd.f32 %v2458, 1e-15
        %v3002 = vadd.f32 %v2460, 1e-15
        %v3003 = vadd.f32 %v2462, 1e-15
        %v3004 = vadd.f32 %v2464, 1e-15
        %v3005 = vadd.f32 %v2466, 1e-15
        %v3006 = vadd.f32 %v2468, 1e-15
        %v3007 = vadd.f32 %v2470, 1e-15
        %v3008 = vlog2.pop %v2999
        %v3009 = vmul.f32 %v3008, 0.6931472
        %v3010 = vlog2.pop %v3000
        %v3011 = vmul.f32 %v3010, 0.6931472
        %v3012 = vlog2.pop %v3001
        %v3013 = vmul.f32 %v3012, 0.6931472
        %v3014 = vlog2.pop %v3002
        %v3015 = vmul.f32 %v3014, 0.6931472
        %v3016 = vlog2.pop %v3003
        %v3017 = vmul.f32 %v3016, 0.6931472
        %v3018 = vlog2.pop %v3004
        %v3019 = vmul.f32 %v3018, 0.6931472
        %v3020 = vlog2.pop %v3005
        %v3021 = vmul.f32 %v3020, 0.6931472
        %v3022 = vlog2.pop %v3006
        %v3023 = vmul.f32 %v3022, 0.6931472
        %v3024 = vlog2.pop %v3007
        %v3025 = vmul.f32 %v3024, 0.6931472
        %v3026 = vmul.f32 %v2990, %v3009
        %v3027 = vmul.f32 %v2991, %v3011
        %v3028 = vmul.f32 %v2992, %v3013
        %v3029 = vmul.f32 %v2993, %v3015
        %v3030 = vmul.f32 %v2994, %v3017
        %v3031 = vmul.f32 %v2995, %v3019
        %v3032 = vmul.f32 %v2996, %v3021
        %v3033 = vmul.f32 %v2997, %v3023
        %v3034 = vmul.f32 %v2998, %v3025
        %v3035 = vsel %vm2370, %v3026, 0.0
        %3036 = vadd.xlane.f32.xlu0 %v3035
        %v3037 = vpop.xlane.xlu0 %3036
        %v3038 = vsel %vm2370, %v3027, 0.0
        %3039 = vadd.xlane.f32.xlu0 %v3038
        %v3040 = vpop.xlane.xlu0 %3039
        %v3041 = vsel %vm2370, %v3028, 0.0
        %3042 = vadd.xlane.f32.xlu0 %v3041
        %v3043 = vpop.xlane.xlu0 %3042
        %v3044 = vsel %vm2370, %v3029, 0.0
        %3045 = vadd.xlane.f32.xlu0 %v3044
        %v3046 = vpop.xlane.xlu0 %3045
        %v3047 = vsel %vm2370, %v3030, 0.0
        %3048 = vadd.xlane.f32.xlu0 %v3047
        %v3049 = vpop.xlane.xlu0 %3048
        %v3050 = vsel %vm2370, %v3031, 0.0
        %3051 = vadd.xlane.f32.xlu0 %v3050
        %v3052 = vpop.xlane.xlu0 %3051
        %v3053 = vsel %vm2370, %v3032, 0.0
        %3054 = vadd.xlane.f32.xlu0 %v3053
        %v3055 = vpop.xlane.xlu0 %3054
        %v3056 = vsel %vm2370, %v3033, 0.0
        %3057 = vadd.xlane.f32.xlu0 %v3056
        %v3058 = vpop.xlane.xlu0 %3057
        %v3059 = vsel %vm2395, %v3034, 0.0
        %3060 = vadd.xlane.f32.xlu0 %v3059
        %v3061 = vpop.xlane.xlu0 %3060
        %v3062 = vadd.f32 %v3037, %v3040
        %v3063 = vadd.f32 %v3062, %v3043
        %v3064 = vadd.f32 %v3063, %v3046
        %v3065 = vadd.f32 %v3064, %v3049
        %v3066 = vadd.f32 %v3065, %v3052
        %v3067 = vadd.f32 %v3066, %v3055
        %v3068 = vadd.f32 %v3067, %v3058
        %v3069 = vsel %vm2516, %v3061, 0.0
        %v3070 = vadd.f32 %v3068, %v3069
        %v3071 = vrot.slane %v3070, 4
        %v3072 = vadd.f32 %v3070, %v3071
        %v3073 = vrot.slane %v3072, 2
        %v3074 = vadd.f32 %v3072, %v3073
        %v3075 = vrot.slane %v3074, 1
        %v3076 = vadd.f32 %v3074, %v3075
        %3077 = vst [vmem:[%s557] sm:$0xff] %v2587
        %3078 = vst [vmem:[%s557 + $0x8] sm:$0xff] %v2592
        %3079 = vst [vmem:[%s557 + $0x10] sm:$0xff] %v2597
        %3080 = vst [vmem:[%s557 + $0x18] sm:$0xff] %v2602
        %3081 = vst.msk [vmem:[%s564] sm:$0xff] %vm2370, %v2775
        %3082 = vst.msk [vmem:[%s564 + $0x8] sm:$0xff] %vm2370, %v2780
        %3083 = vst.msk [vmem:[%s564 + $0x10] sm:$0xff] %vm2370, %v2785
        %3084 = vst.msk [vmem:[%s564 + $0x18] sm:$0xff] %vm2370, %v2790
        %s3085 = scalar_lea.vmem %s589, 72
        %v3086 = vld [vmem:[%s3085] sm:$0xff]
        %v3087 = vld [vmem:[%s3085 + $0x8] sm:$0xff]
        %v3088 = vld [vmem:[%s3085 + $0x10] sm:$0xff]
        %v3089 = vld [vmem:[%s3085 + $0x18] sm:$0xff]
        %v3090 = vld [vmem:[%s3085 + $0x20] sm:$0xff]
        %v3091 = vld [vmem:[%s3085 + $0x28] sm:$0xff]
        %v3092 = vld [vmem:[%s3085 + $0x30] sm:$0xff]
        %v3093 = vld [vmem:[%s3085 + $0x38] sm:$0xff]
        %v3094 = vld [vmem:[%s3085 + $0x40] sm:$0xf]
        %s3095 = scalar_lea.vmem %s596, 72
        %v3096 = vld [vmem:[%s3095] sm:$0xff]
        %v3097 = vld [vmem:[%s3095 + $0x8] sm:$0xff]
        %v3098 = vld [vmem:[%s3095 + $0x10] sm:$0xff]
        %v3099 = vld [vmem:[%s3095 + $0x18] sm:$0xff]
        %v3100 = vld [vmem:[%s3095 + $0x20] sm:$0xff]
        %v3101 = vld [vmem:[%s3095 + $0x28] sm:$0xff]
        %v3102 = vld [vmem:[%s3095 + $0x30] sm:$0xff]
        %v3103 = vld [vmem:[%s3095 + $0x38] sm:$0xff]
        %v3104 = vld [vmem:[%s3095 + $0x40] sm:$0xf]
        %v3105 = vsel %vm2370, %v3096, -inf
        %3106 = vmax.xlane.f32.xlu0 %v3105
        %v3107 = vpop.xlane.xlu0 %3106
        %v3108 = vsel %vm2370, %v3097, -inf
        %3109 = vmax.xlane.f32.xlu0 %v3108
        %v3110 = vpop.xlane.xlu0 %3109
        %v3111 = vsel %vm2370, %v3098, -inf
        %3112 = vmax.xlane.f32.xlu0 %v3111
        %v3113 = vpop.xlane.xlu0 %3112
        %v3114 = vsel %vm2370, %v3099, -inf
        %3115 = vmax.xlane.f32.xlu0 %v3114
        %v3116 = vpop.xlane.xlu0 %3115
        %v3117 = vsel %vm2370, %v3100, -inf
        %3118 = vmax.xlane.f32.xlu0 %v3117
        %v3119 = vpop.xlane.xlu0 %3118
        %v3120 = vsel %vm2370, %v3101, -inf
        %3121 = vmax.xlane.f32.xlu0 %v3120
        %v3122 = vpop.xlane.xlu0 %3121
        %v3123 = vsel %vm2370, %v3102, -inf
        %3124 = vmax.xlane.f32.xlu0 %v3123
        %v3125 = vpop.xlane.xlu0 %3124
        %v3126 = vsel %vm2370, %v3103, -inf
        %3127 = vmax.xlane.f32.xlu0 %v3126
        %v3128 = vpop.xlane.xlu0 %3127
        %v3129 = vsel %vm2395, %v3104, -inf
        %3130 = vmax.xlane.f32.xlu0 %v3129
        %v3131 = vpop.xlane.xlu0 %3130
        %v3132 = vsub.f32 %v3096, %v3107
        %v3133 = vsub.f32 %v3097, %v3110
        %v3134 = vsub.f32 %v3098, %v3113
        %v3135 = vsub.f32 %v3099, %v3116
        %v3136 = vsub.f32 %v3100, %v3119
        %v3137 = vsub.f32 %v3101, %v3122
        %v3138 = vsub.f32 %v3102, %v3125
        %v3139 = vsub.f32 %v3103, %v3128
        %v3140 = vsub.f32 %v3104, %v3131
        %v3141 = vmul.f32 %v3132, 1.442695
        %v3142 = vpow.pop %v3141
        %v3143 = vmul.f32 %v3133, 1.442695
        %v3144 = vpow.pop %v3143
        %v3145 = vmul.f32 %v3134, 1.442695
        %v3146 = vpow.pop %v3145
        %v3147 = vmul.f32 %v3135, 1.442695
        %v3148 = vpow.pop %v3147
        %v3149 = vmul.f32 %v3136, 1.442695
        %v3150 = vpow.pop %v3149
        %v3151 = vmul.f32 %v3137, 1.442695
        %v3152 = vpow.pop %v3151
        %v3153 = vmul.f32 %v3138, 1.442695
        %v3154 = vpow.pop %v3153
        %v3155 = vmul.f32 %v3139, 1.442695
        %v3156 = vpow.pop %v3155
        %v3157 = vmul.f32 %v3140, 1.442695
        %v3158 = vpow.pop %v3157
        %v3159 = vsel %vm2370, %v3142, 0.0
        %3160 = vadd.xlane.f32.xlu0 %v3159
        %v3161 = vpop.xlane.xlu0 %3160
        %v3162 = vsel %vm2370, %v3144, 0.0
        %3163 = vadd.xlane.f32.xlu0 %v3162
        %v3164 = vpop.xlane.xlu0 %3163
        %v3165 = vsel %vm2370, %v3146, 0.0
        %3166 = vadd.xlane.f32.xlu0 %v3165
        %v3167 = vpop.xlane.xlu0 %3166
        %v3168 = vsel %vm2370, %v3148, 0.0
        %3169 = vadd.xlane.f32.xlu0 %v3168
        %v3170 = vpop.xlane.xlu0 %3169
        %v3171 = vsel %vm2370, %v3150, 0.0
        %3172 = vadd.xlane.f32.xlu0 %v3171
        %v3173 = vpop.xlane.xlu0 %3172
        %v3174 = vsel %vm2370, %v3152, 0.0
        %3175 = vadd.xlane.f32.xlu0 %v3174
        %v3176 = vpop.xlane.xlu0 %3175
        %v3177 = vsel %vm2370, %v3154, 0.0
        %3178 = vadd.xlane.f32.xlu0 %v3177
        %v3179 = vpop.xlane.xlu0 %3178
        %v3180 = vsel %vm2370, %v3156, 0.0
        %3181 = vadd.xlane.f32.xlu0 %v3180
        %v3182 = vpop.xlane.xlu0 %3181
        %v3183 = vsel %vm2395, %v3158, 0.0
        %3184 = vadd.xlane.f32.xlu0 %v3183
        %v3185 = vpop.xlane.xlu0 %3184
        %v3186 = vrcp.pop %v3161
        %v3187 = vmul.f32 %v3142, %v3186
        %v3188 = vrcp.pop %v3164
        %v3189 = vmul.f32 %v3144, %v3188
        %v3190 = vrcp.pop %v3167
        %v3191 = vmul.f32 %v3146, %v3190
        %v3192 = vrcp.pop %v3170
        %v3193 = vmul.f32 %v3148, %v3192
        %v3194 = vrcp.pop %v3173
        %v3195 = vmul.f32 %v3150, %v3194
        %v3196 = vrcp.pop %v3176
        %v3197 = vmul.f32 %v3152, %v3196
        %v3198 = vrcp.pop %v3179
        %v3199 = vmul.f32 %v3154, %v3198
        %v3200 = vrcp.pop %v3182
        %v3201 = vmul.f32 %v3156, %v3200
        %v3202 = vrcp.pop %v3185
        %v3203 = vmul.f32 %v3158, %v3202
        %3204 = vxpose.xlu0.b32.start [1/16] %v3187, 128
        %3205 = vxpose.xlu0.b32.cont [2/16] %v3189, 128
        %3206 = vxpose.xlu0.b32.cont [3/16] %v3191, 128
        %3207 = vxpose.xlu0.b32.cont [4/16] %v3193, 128
        %3208 = vxpose.xlu0.b32.cont [5/16] %v3195, 128
        %3209 = vxpose.xlu0.b32.cont [6/16] %v3197, 128
        %3210 = vxpose.xlu0.b32.cont [7/16] %v3199, 128
        %3211 = vxpose.xlu0.b32.cont [8/16] %v3201, 128
        %3212 = vxpose.xlu0.b32.cont [9/16] %v3203, 128
        %3213 = vxpose.xlu0.b32.cont [10/16] 0.0, 128
        %3214 = vxpose.xlu0.b32.cont [11/16] 0.0, 128
        %3215 = vxpose.xlu0.b32.cont [12/16] 0.0, 128
        %3216 = vxpose.xlu0.b32.cont [13/16] 0.0, 128
        %3217 = vxpose.xlu0.b32.cont [14/16] 0.0, 128
        %3218 = vxpose.xlu0.b32.cont [15/16] 0.0, 128
        %3219 = vxpose.xlu0.b32.end [16/16] 0.0, 128
        %v3220 = vpop.trf.xlu0
        %v3221 = vpop.trf.xlu0
        %v3222 = vpop.trf.xlu0
        %v3223 = vpop.trf.xlu0
        %v3224 = vpop.trf.xlu0
        %v3225 = vpop.trf.xlu0
        %v3226 = vpop.trf.xlu0
        %v3227 = vpop.trf.xlu0
        %v3228 = vpop.trf.xlu0
        %v3229 = vpop.trf.xlu0
        %v3230 = vpop.trf.xlu0
        %v3231 = vpop.trf.xlu0
        %v3232 = vpop.trf.xlu0
        %v3233 = vpop.trf.xlu0
        %v3234 = vpop.trf.xlu0
        %v3235 = vpop.trf.xlu0
        %v3244 = vrot.slane %v2343, 4
        %v3245 = vrot.slane %v2344, 4
        %v3246 = vsel %vm2516, %v3244, %v3245
        %v3247 = vrot.slane %v2345, 4
        %v3248 = vsel %vm2516, %v3245, %v3247
        %v3249 = vrot.slane %v2346, 4
        %v3250 = vsel %vm2516, %v3247, %v3249
        %v3251 = vrot.slane %v2347, 4
        %v3252 = vsel %vm2516, %v3249, %v3251
        %v3253 = vrot.slane %v2348, 4
        %v3254 = vsel %vm2516, %v3251, %v3253
        %v3255 = vrot.slane %v2349, 4
        %v3256 = vsel %vm2516, %v3253, %v3255
        %v3257 = vrot.slane %v2350, 4
        %v3258 = vsel %vm2516, %v3255, %v3257
        %v3259 = vrot.slane %v2351, 4
        %v3260 = vsel %vm2516, %v3257, %v3259
        %v3270 = vsel %vm2503, %v3220, 0
        %v3273 = vsel %vm2503, %v3221, 0
        %v3276 = vsel %vm2503, %v3222, 0
        %v3279 = vsel %vm2503, %v3223, 0
        %v3281 = vsel %vm2516, %v3259, 0
        %3283 = vmatprep.subr.mxu0 0.0
        %3284 = vmatpush1.msra.mxu0 %v3246
        %3285 = vmatprep.subr.mxu0 0.0
        %3286 = vmatpush1.msra.mxu0 %v3248
        %3287 = vmatprep.subr.mxu0 0.0
        %3288 = vmatpush1.msra.mxu0 %v3250
        %3289 = vmatprep.subr.mxu0 0.0
        %3290 = vmatpush1.msra.mxu0 %v3252
        %3291 = vmatprep.subr.mxu0 0.0
        %3292 = vmatpush1.msra.mxu0 %v3254
        %3293 = vmatprep.subr.mxu0 0.0
        %3294 = vmatpush1.msra.mxu0 %v3256
        %3295 = vmatprep.subr.mxu0 0.0
        %3296 = vmatpush1.msra.mxu0 %v3258
        %3297 = vmatprep.subr.mxu0 0.0
        %3298 = vmatpush1.msra.mxu0 %v3260
        %3299 = vmatprep.subr.mxu0 0.0
        %3300 = vmatpush1.msra.mxu0 %v3281
        %3301 = vmatprep.subr.mxu0 0.0
        %3302 = vmatpush1.msra.mxu0 0.0
        %3303 = vmatprep.subr.mxu0 0.0
        %3304 = vmatpush1.msra.mxu0 0.0
        %3305 = vmatprep.subr.mxu0 0.0
        %3306 = vmatpush1.msra.mxu0 0.0
        %3307 = vmatprep.subr.mxu0 0.0
        %3308 = vmatpush1.msra.mxu0 0.0
        %3309 = vmatprep.subr.mxu0 0.0
        %3310 = vmatpush1.msra.mxu0 0.0
        %3311 = vmatprep.subr.mxu0 0.0
        %3312 = vmatpush1.msra.mxu0 0.0
        %3313 = vmatprep.subr.mxu0 0.0
        %3314 = vmatpush1.msra.mxu0 0.0
        %3315 = vmatprep.subr.mxu0 0.0
        %3316 = vmatpush1.msra.mxu0 0.0
        %3317 = vmatprep.subr.mxu0 0.0
        %3318 = vmatpush1.msra.mxu0 0.0
        %3319 = vmatprep.subr.mxu0 0.0
        %3320 = vmatpush1.msra.mxu0 0.0
        %3321 = vmatprep.subr.mxu0 0.0
        %3322 = vmatpush1.msra.mxu0 0.0
        %3323 = vmatprep.subr.mxu0 0.0
        %3324 = vmatpush1.msra.mxu0 0.0
        %3325 = vmatprep.subr.mxu0 0.0
        %3326 = vmatpush1.msra.mxu0 0.0
        %3327 = vmatprep.subr.mxu0 0.0
        %3328 = vmatpush1.msra.mxu0 0.0
        %3329 = vmatprep.subr.mxu0 0.0
        %3330 = vmatpush1.msra.mxu0 0.0
        %3331 = vmatprep.subr.mxu0 0.0
        %3332 = vmatpush1.msra.mxu0 0.0
        %3333 = vmatprep.subr.mxu0 0.0
        %3334 = vmatpush1.msra.mxu0 0.0
        %3335 = vmatprep.subr.mxu0 0.0
        %3336 = vmatpush1.msra.mxu0 0.0
        %3337 = vmatprep.subr.mxu0 0.0
        %3338 = vmatpush1.msra.mxu0 0.0
        %3339 = vmatprep.subr.mxu0 0.0
        %3340 = vmatpush1.msra.mxu0 0.0
        %3341 = vmatprep.subr.mxu0 0.0
        %3342 = vmatpush1.msra.mxu0 0.0
        %3343 = vmatprep.subr.mxu0 0.0
        %3344 = vmatpush1.msra.mxu0 0.0
        %3345 = vmatprep.subr.mxu0 0.0
        %3346 = vmatpush1.msra.mxu0 0.0
        %3347 = vmatprep.mubr.f32.mxu0 0.0
        %3348 = vmatmul.mubr.f32.gmra.mrb[0].mxu0 %v3270
        %v3349 = vpop.f32.mrb[0].mxu0
        %v3350 = vadd.f32 0.0, %v3349
        %v3351 = vpop.f32.mrb[0].mxu0
        %3352 = vmatprep.mubr.f32.mxu0 0.0
        %3353 = vmatmul.mubr.f32.gmra.mrb[0].mxu0 %v3273
        %v3354 = vpop.f32.mrb[0].mxu0
        %v3355 = vadd.f32 0.0, %v3354
        %v3356 = vpop.f32.mrb[0].mxu0
        %3357 = vmatprep.mubr.f32.mxu0 0.0
        %3358 = vmatmul.mubr.f32.gmra.mrb[0].mxu0 %v3276
        %v3359 = vpop.f32.mrb[0].mxu0
        %v3360 = vadd.f32 0.0, %v3359
        %v3361 = vpop.f32.mrb[0].mxu0
        %3362 = vmatprep.mubr.f32.mxu0 0.0
        %3363 = vmatmul.mubr.f32.gmra.mrb[0].mxu0 %v3279
        %v3364 = vpop.f32.mrb[0].mxu0
        %v3365 = vadd.f32 0.0, %v3364
        %v3366 = vpop.f32.mrb[0].mxu0
        %3367 = vdwg.mxu0
        %v3369 = vsel %vm2516, %v3094, 0
        %3371 = vmatprep.subr.mxu0 0.0
        %3372 = vmatpush1.msra.mxu0 %v3086
        %3373 = vmatprep.subr.mxu0 0.0
        %3374 = vmatpush1.msra.mxu0 %v3087
        %3375 = vmatprep.subr.mxu0 0.0
        %3376 = vmatpush1.msra.mxu0 %v3088
        %3377 = vmatprep.subr.mxu0 0.0
        %3378 = vmatpush1.msra.mxu0 %v3089
        %3379 = vmatprep.subr.mxu0 0.0
        %3380 = vmatpush1.msra.mxu0 %v3090
        %3381 = vmatprep.subr.mxu0 0.0
        %3382 = vmatpush1.msra.mxu0 %v3091
        %3383 = vmatprep.subr.mxu0 0.0
        %3384 = vmatpush1.msra.mxu0 %v3092
        %3385 = vmatprep.subr.mxu0 0.0
        %3386 = vmatpush1.msra.mxu0 %v3093
        %3387 = vmatprep.subr.mxu0 0.0
        %3388 = vmatpush1.msra.mxu0 %v3369
        %3389 = vmatprep.subr.mxu0 0.0
        %3390 = vmatpush1.msra.mxu0 0.0
        %3391 = vmatprep.subr.mxu0 0.0
        %3392 = vmatpush1.msra.mxu0 0.0
        %3393 = vmatprep.subr.mxu0 0.0
        %3394 = vmatpush1.msra.mxu0 0.0
        %3395 = vmatprep.subr.mxu0 0.0
        %3396 = vmatpush1.msra.mxu0 0.0
        %3397 = vmatprep.subr.mxu0 0.0
        %3398 = vmatpush1.msra.mxu0 0.0
        %3399 = vmatprep.subr.mxu0 0.0
        %3400 = vmatpush1.msra.mxu0 0.0
        %3401 = vmatprep.subr.mxu0 0.0
        %3402 = vmatpush1.msra.mxu0 0.0
        %3403 = vmatprep.subr.mxu0 0.0
        %3404 = vmatpush1.msra.mxu0 0.0
        %3405 = vmatprep.subr.mxu0 0.0
        %3406 = vmatpush1.msra.mxu0 0.0
        %3407 = vmatprep.subr.mxu0 0.0
        %3408 = vmatpush1.msra.mxu0 0.0
        %3409 = vmatprep.subr.mxu0 0.0
        %3410 = vmatpush1.msra.mxu0 0.0
        %3411 = vmatprep.subr.mxu0 0.0
        %3412 = vmatpush1.msra.mxu0 0.0
        %3413 = vmatprep.subr.mxu0 0.0
        %3414 = vmatpush1.msra.mxu0 0.0
        %3415 = vmatprep.subr.mxu0 0.0
        %3416 = vmatpush1.msra.mxu0 0.0
        %3417 = vmatprep.subr.mxu0 0.0
        %3418 = vmatpush1.msra.mxu0 0.0
        %3419 = vmatprep.subr.mxu0 0.0
        %3420 = vmatpush1.msra.mxu0 0.0
        %3421 = vmatprep.subr.mxu0 0.0
        %3422 = vmatpush1.msra.mxu0 0.0
        %3423 = vmatprep.subr.mxu0 0.0
        %3424 = vmatpush1.msra.mxu0 0.0
        %3425 = vmatprep.subr.mxu0 0.0
        %3426 = vmatpush1.msra.mxu0 0.0
        %3427 = vmatprep.subr.mxu0 0.0
        %3428 = vmatpush1.msra.mxu0 0.0
        %3429 = vmatprep.subr.mxu0 0.0
        %3430 = vmatpush1.msra.mxu0 0.0
        %3431 = vmatprep.subr.mxu0 0.0
        %3432 = vmatpush1.msra.mxu0 0.0
        %3433 = vmatprep.subr.mxu0 0.0
        %3434 = vmatpush1.msra.mxu0 0.0
        %3435 = vmatprep.mubr.f32.mxu0 0.0
        %3436 = vmatmul.mubr.f32.gmra.mrb[0].mxu0 %v3270
        %v3437 = vpop.f32.mrb[0].mxu0
        %v3438 = vadd.f32 0.0, %v3437
        %v3439 = vpop.f32.mrb[0].mxu0
        %3440 = vmatprep.mubr.f32.mxu0 0.0
        %3441 = vmatmul.mubr.f32.gmra.mrb[0].mxu0 %v3273
        %v3442 = vpop.f32.mrb[0].mxu0
        %v3443 = vadd.f32 0.0, %v3442
        %v3444 = vpop.f32.mrb[0].mxu0
        %3445 = vmatprep.mubr.f32.mxu0 0.0
        %3446 = vmatmul.mubr.f32.gmra.mrb[0].mxu0 %v3276
        %v3447 = vpop.f32.mrb[0].mxu0
        %v3448 = vadd.f32 0.0, %v3447
        %v3449 = vpop.f32.mrb[0].mxu0
        %3450 = vmatprep.mubr.f32.mxu0 0.0
        %3451 = vmatmul.mubr.f32.gmra.mrb[0].mxu0 %v3279
        %v3452 = vpop.f32.mrb[0].mxu0
        %v3453 = vadd.f32 0.0, %v3452
        %v3454 = vpop.f32.mrb[0].mxu0
        %3455 = vdwg.mxu0
        %v3457 = vsel %vm2503, %v3438, 0
        %v3460 = vsel %vm2503, %v3443, 0
        %v3463 = vsel %vm2503, %v3448, 0
        %v3466 = vsel %vm2503, %v3453, 0
        %v3469 = vsel %vm2516, %v3203, 0
        %3471 = vmatprep.subr.mxu0 0.0
        %3472 = vmatpush1.msra.mxu0 %v3187
        %3473 = vmatprep.subr.mxu0 0.0
        %3474 = vmatpush1.msra.mxu0 %v3189
        %3475 = vmatprep.subr.mxu0 0.0
        %3476 = vmatpush1.msra.mxu0 %v3191
        %3477 = vmatprep.subr.mxu0 0.0
        %3478 = vmatpush1.msra.mxu0 %v3193
        %3479 = vmatprep.subr.mxu0 0.0
        %3480 = vmatpush1.msra.mxu0 %v3195
        %3481 = vmatprep.subr.mxu0 0.0
        %3482 = vmatpush1.msra.mxu0 %v3197
        %3483 = vmatprep.subr.mxu0 0.0
        %3484 = vmatpush1.msra.mxu0 %v3199
        %3485 = vmatprep.subr.mxu0 0.0
        %3486 = vmatpush1.msra.mxu0 %v3201
        %3487 = vmatprep.subr.mxu0 0.0
        %3488 = vmatpush1.msra.mxu0 %v3469
        %3489 = vmatprep.subr.mxu0 0.0
        %3490 = vmatpush1.msra.mxu0 0.0
        %3491 = vmatprep.subr.mxu0 0.0
        %3492 = vmatpush1.msra.mxu0 0.0
        %3493 = vmatprep.subr.mxu0 0.0
        %3494 = vmatpush1.msra.mxu0 0.0
        %3495 = vmatprep.subr.mxu0 0.0
        %3496 = vmatpush1.msra.mxu0 0.0
        %3497 = vmatprep.subr.mxu0 0.0
        %3498 = vmatpush1.msra.mxu0 0.0
        %3499 = vmatprep.subr.mxu0 0.0
        %3500 = vmatpush1.msra.mxu0 0.0
        %3501 = vmatprep.subr.mxu0 0.0
        %3502 = vmatpush1.msra.mxu0 0.0
        %3503 = vmatprep.subr.mxu0 0.0
        %3504 = vmatpush1.msra.mxu0 0.0
        %3505 = vmatprep.subr.mxu0 0.0
        %3506 = vmatpush1.msra.mxu0 0.0
        %3507 = vmatprep.subr.mxu0 0.0
        %3508 = vmatpush1.msra.mxu0 0.0
        %3509 = vmatprep.subr.mxu0 0.0
        %3510 = vmatpush1.msra.mxu0 0.0
        %3511 = vmatprep.subr.mxu0 0.0
        %3512 = vmatpush1.msra.mxu0 0.0
        %3513 = vmatprep.subr.mxu0 0.0
        %3514 = vmatpush1.msra.mxu0 0.0
        %3515 = vmatprep.subr.mxu0 0.0
        %3516 = vmatpush1.msra.mxu0 0.0
        %3517 = vmatprep.subr.mxu0 0.0
        %3518 = vmatpush1.msra.mxu0 0.0
        %3519 = vmatprep.subr.mxu0 0.0
        %3520 = vmatpush1.msra.mxu0 0.0
        %3521 = vmatprep.subr.mxu0 0.0
        %3522 = vmatpush1.msra.mxu0 0.0
        %3523 = vmatprep.subr.mxu0 0.0
        %3524 = vmatpush1.msra.mxu0 0.0
        %3525 = vmatprep.subr.mxu0 0.0
        %3526 = vmatpush1.msra.mxu0 0.0
        %3527 = vmatprep.subr.mxu0 0.0
        %3528 = vmatpush1.msra.mxu0 0.0
        %3529 = vmatprep.subr.mxu0 0.0
        %3530 = vmatpush1.msra.mxu0 0.0
        %3531 = vmatprep.subr.mxu0 0.0
        %3532 = vmatpush1.msra.mxu0 0.0
        %3533 = vmatprep.subr.mxu0 0.0
        %3534 = vmatpush1.msra.mxu0 0.0
        %3535 = vmatprep.mubr.f32.mxu0 0.0
        %3536 = vmatmul.mubr.f32.gmra.mrb[0].mxu0 %v3457
        %v3537 = vpop.f32.mrb[0].mxu0
        %v3538 = vadd.f32 0.0, %v3537
        %v3539 = vpop.f32.mrb[0].mxu0
        %3540 = vmatprep.mubr.f32.mxu0 0.0
        %3541 = vmatmul.mubr.f32.gmra.mrb[0].mxu0 %v3460
        %v3542 = vpop.f32.mrb[0].mxu0
        %v3543 = vadd.f32 0.0, %v3542
        %v3544 = vpop.f32.mrb[0].mxu0
        %3545 = vmatprep.mubr.f32.mxu0 0.0
        %3546 = vmatmul.mubr.f32.gmra.mrb[0].mxu0 %v3463
        %v3547 = vpop.f32.mrb[0].mxu0
        %v3548 = vadd.f32 0.0, %v3547
        %v3549 = vpop.f32.mrb[0].mxu0
        %3550 = vmatprep.mubr.f32.mxu0 0.0
        %3551 = vmatmul.mubr.f32.gmra.mrb[0].mxu0 %v3466
        %v3552 = vpop.f32.mrb[0].mxu0
        %v3553 = vadd.f32 0.0, %v3552
        %v3554 = vpop.f32.mrb[0].mxu0
        %3555 = vdwg.mxu0
        %v3557 = vsel %vm2370, %v3187, 0
        %v3560 = vsel %vm2370, %v3189, 0
        %v3563 = vsel %vm2370, %v3191, 0
        %v3566 = vsel %vm2370, %v3193, 0
        %v3569 = vsel %vm2370, %v3195, 0
        %v3572 = vsel %vm2370, %v3197, 0
        %v3575 = vsel %vm2370, %v3199, 0
        %v3578 = vsel %vm2370, %v3201, 0
        %v3580 = vsel %vm2370, %v3203, 0
        %3582 = vmatprep.subr.mxu0 0.0
        %3583 = vmatpush1.msra.mxu0 %v3220
        %3584 = vmatprep.subr.mxu0 0.0
        %3585 = vmatpush1.msra.mxu0 %v3221
        %3586 = vmatprep.subr.mxu0 0.0
        %3587 = vmatpush1.msra.mxu0 %v3222
        %3588 = vmatprep.subr.mxu0 0.0
        %3589 = vmatpush1.msra.mxu0 %v3223
        %3590 = vmatprep.subr.mxu0 0.0
        %3591 = vmatpush1.msra.mxu0 0.0
        %3592 = vmatprep.subr.mxu0 0.0
        %3593 = vmatpush1.msra.mxu0 0.0
        %3594 = vmatprep.subr.mxu0 0.0
        %3595 = vmatpush1.msra.mxu0 0.0
        %3596 = vmatprep.subr.mxu0 0.0
        %3597 = vmatpush1.msra.mxu0 0.0
        %3598 = vmatprep.subr.mxu0 0.0
        %3599 = vmatpush1.msra.mxu0 0.0
        %3600 = vmatprep.subr.mxu0 0.0
        %3601 = vmatpush1.msra.mxu0 0.0
        %3602 = vmatprep.subr.mxu0 0.0
        %3603 = vmatpush1.msra.mxu0 0.0
        %3604 = vmatprep.subr.mxu0 0.0
        %3605 = vmatpush1.msra.mxu0 0.0
        %3606 = vmatprep.subr.mxu0 0.0
        %3607 = vmatpush1.msra.mxu0 0.0
        %3608 = vmatprep.subr.mxu0 0.0
        %3609 = vmatpush1.msra.mxu0 0.0
        %3610 = vmatprep.subr.mxu0 0.0
        %3611 = vmatpush1.msra.mxu0 0.0
        %3612 = vmatprep.subr.mxu0 0.0
        %3613 = vmatpush1.msra.mxu0 0.0
        %3614 = vmatprep.subr.mxu0 0.0
        %3615 = vmatpush1.msra.mxu0 0.0
        %3616 = vmatprep.subr.mxu0 0.0
        %3617 = vmatpush1.msra.mxu0 0.0
        %3618 = vmatprep.subr.mxu0 0.0
        %3619 = vmatpush1.msra.mxu0 0.0
        %3620 = vmatprep.subr.mxu0 0.0
        %3621 = vmatpush1.msra.mxu0 0.0
        %3622 = vmatprep.subr.mxu0 0.0
        %3623 = vmatpush1.msra.mxu0 0.0
        %3624 = vmatprep.subr.mxu0 0.0
        %3625 = vmatpush1.msra.mxu0 0.0
        %3626 = vmatprep.subr.mxu0 0.0
        %3627 = vmatpush1.msra.mxu0 0.0
        %3628 = vmatprep.subr.mxu0 0.0
        %3629 = vmatpush1.msra.mxu0 0.0
        %3630 = vmatprep.subr.mxu0 0.0
        %3631 = vmatpush1.msra.mxu0 0.0
        %3632 = vmatprep.subr.mxu0 0.0
        %3633 = vmatpush1.msra.mxu0 0.0
        %3634 = vmatprep.subr.mxu0 0.0
        %3635 = vmatpush1.msra.mxu0 0.0
        %3636 = vmatprep.subr.mxu0 0.0
        %3637 = vmatpush1.msra.mxu0 0.0
        %3638 = vmatprep.subr.mxu0 0.0
        %3639 = vmatpush1.msra.mxu0 0.0
        %3640 = vmatprep.subr.mxu0 0.0
        %3641 = vmatpush1.msra.mxu0 0.0
        %3642 = vmatprep.subr.mxu0 0.0
        %3643 = vmatpush1.msra.mxu0 0.0
        %3644 = vmatprep.subr.mxu0 0.0
        %3645 = vmatpush1.msra.mxu0 0.0
        %3646 = vmatprep.mubr.f32.mxu0 0.0
        %3647 = vmatmul.mubr.f32.gmra.mrb[0].mxu0 %v3557
        %v3648 = vpop.f32.mrb[0].mxu0
        %v3649 = vadd.f32 0.0, %v3648
        %v3650 = vpop.f32.mrb[0].mxu0
        %3651 = vmatprep.mubr.f32.mxu0 0.0
        %3652 = vmatmul.mubr.f32.gmra.mrb[0].mxu0 %v3560
        %v3653 = vpop.f32.mrb[0].mxu0
        %v3654 = vadd.f32 0.0, %v3653
        %v3655 = vpop.f32.mrb[0].mxu0
        %3656 = vmatprep.mubr.f32.mxu0 0.0
        %3657 = vmatmul.mubr.f32.gmra.mrb[0].mxu0 %v3563
        %v3658 = vpop.f32.mrb[0].mxu0
        %v3659 = vadd.f32 0.0, %v3658
        %v3660 = vpop.f32.mrb[0].mxu0
        %3661 = vmatprep.mubr.f32.mxu0 0.0
        %3662 = vmatmul.mubr.f32.gmra.mrb[0].mxu0 %v3566
        %v3663 = vpop.f32.mrb[0].mxu0
        %v3664 = vadd.f32 0.0, %v3663
        %v3665 = vpop.f32.mrb[0].mxu0
        %3666 = vmatprep.mubr.f32.mxu0 0.0
        %3667 = vmatmul.mubr.f32.gmra.mrb[0].mxu0 %v3569
        %v3668 = vpop.f32.mrb[0].mxu0
        %v3669 = vadd.f32 0.0, %v3668
        %v3670 = vpop.f32.mrb[0].mxu0
        %3671 = vmatprep.mubr.f32.mxu0 0.0
        %3672 = vmatmul.mubr.f32.gmra.mrb[0].mxu0 %v3572
        %v3673 = vpop.f32.mrb[0].mxu0
        %v3674 = vadd.f32 0.0, %v3673
        %v3675 = vpop.f32.mrb[0].mxu0
        %3676 = vmatprep.mubr.f32.mxu0 0.0
        %3677 = vmatmul.mubr.f32.gmra.mrb[0].mxu0 %v3575
        %v3678 = vpop.f32.mrb[0].mxu0
        %v3679 = vadd.f32 0.0, %v3678
        %v3680 = vpop.f32.mrb[0].mxu0
        %3681 = vmatprep.mubr.f32.mxu0 0.0
        %3682 = vmatmul.mubr.f32.gmra.mrb[0].mxu0 %v3578
        %v3683 = vpop.f32.mrb[0].mxu0
        %v3684 = vadd.f32 0.0, %v3683
        %v3685 = vpop.f32.mrb[0].mxu0
        %3686 = vmatprep.mubr.f32.mxu0 0.0
        %3687 = vmatmul.mubr.f32.gmra.mrb[0].mxu0 %v3580
        %v3688 = vpop.f32.mrb[0].mxu0
        %v3689 = vadd.f32 0.0, %v3688
        %v3690 = vpop.f32.mrb[0].mxu0
        %3691 = vdwg.mxu0
        %v3692 = vsub.f32 %v3086, %v3649
        %v3693 = vsub.f32 %v3087, %v3654
        %v3694 = vsub.f32 %v3088, %v3659
        %v3695 = vsub.f32 %v3089, %v3664
        %v3696 = vsub.f32 %v3090, %v3669
        %v3697 = vsub.f32 %v3091, %v3674
        %v3698 = vsub.f32 %v3092, %v3679
        %v3699 = vsub.f32 %v3093, %v3684
        %v3700 = vsub.f32 %v3094, %v3689
        %v3701 = vmul.f32 %v3692, %v3692
        %v3702 = vmul.f32 %v3693, %v3693
        %v3703 = vmul.f32 %v3694, %v3694
        %v3704 = vmul.f32 %v3695, %v3695
        %v3705 = vmul.f32 %v3696, %v3696
        %v3706 = vmul.f32 %v3697, %v3697
        %v3707 = vmul.f32 %v3698, %v3698
        %v3708 = vmul.f32 %v3699, %v3699
        %v3709 = vmul.f32 %v3700, %v3700
        %v3710 = vsel %vm2503, %v3701, 0.0
        %3711 = vadd.xlane.f32.xlu0 %v3710
        %v3712 = vpop.xlane.xlu0 %3711
        %v3713 = vsel %vm2503, %v3702, 0.0
        %3714 = vadd.xlane.f32.xlu0 %v3713
        %v3715 = vpop.xlane.xlu0 %3714
        %v3716 = vsel %vm2503, %v3703, 0.0
        %3717 = vadd.xlane.f32.xlu0 %v3716
        %v3718 = vpop.xlane.xlu0 %3717
        %v3719 = vsel %vm2503, %v3704, 0.0
        %3720 = vadd.xlane.f32.xlu0 %v3719
        %v3721 = vpop.xlane.xlu0 %3720
        %v3722 = vsel %vm2503, %v3705, 0.0
        %3723 = vadd.xlane.f32.xlu0 %v3722
        %v3724 = vpop.xlane.xlu0 %3723
        %v3725 = vsel %vm2503, %v3706, 0.0
        %3726 = vadd.xlane.f32.xlu0 %v3725
        %v3727 = vpop.xlane.xlu0 %3726
        %v3728 = vsel %vm2503, %v3707, 0.0
        %3729 = vadd.xlane.f32.xlu0 %v3728
        %v3730 = vpop.xlane.xlu0 %3729
        %v3731 = vsel %vm2503, %v3708, 0.0
        %3732 = vadd.xlane.f32.xlu0 %v3731
        %v3733 = vpop.xlane.xlu0 %3732
        %v3734 = vsel %vm2971, %v3709, 0.0
        %3735 = vadd.xlane.f32.xlu0 %v3734
        %v3736 = vpop.xlane.xlu0 %3735
        %v3737 = vadd.f32 %v3712, %v3715
        %v3738 = vadd.f32 %v3737, %v3718
        %v3739 = vadd.f32 %v3738, %v3721
        %v3740 = vadd.f32 %v3739, %v3724
        %v3741 = vadd.f32 %v3740, %v3727
        %v3742 = vadd.f32 %v3741, %v3730
        %v3743 = vadd.f32 %v3742, %v3733
        %v3744 = vsel %vm2516, %v3736, 0.0
        %v3745 = vadd.f32 %v3743, %v3744
        %v3746 = vrot.slane %v3745, 4
        %v3747 = vadd.f32 %v3745, %v3746
        %v3748 = vrot.slane %v3747, 2
        %v3749 = vadd.f32 %v3747, %v3748
        %v3750 = vrot.slane %v3749, 1
        %v3751 = vadd.f32 %v3749, %v3750
        %v3752 = vsub.f32 0.0, %v3187
        %v3753 = vsub.f32 0.0, %v3189
        %v3754 = vsub.f32 0.0, %v3191
        %v3755 = vsub.f32 0.0, %v3193
        %v3756 = vsub.f32 0.0, %v3195
        %v3757 = vsub.f32 0.0, %v3197
        %v3758 = vsub.f32 0.0, %v3199
        %v3759 = vsub.f32 0.0, %v3201
        %v3760 = vsub.f32 0.0, %v3203
        %v3761 = vadd.f32 %v3187, 1e-15
        %v3762 = vadd.f32 %v3189, 1e-15
        %v3763 = vadd.f32 %v3191, 1e-15
        %v3764 = vadd.f32 %v3193, 1e-15
        %v3765 = vadd.f32 %v3195, 1e-15
        %v3766 = vadd.f32 %v3197, 1e-15
        %v3767 = vadd.f32 %v3199, 1e-15
        %v3768 = vadd.f32 %v3201, 1e-15
        %v3769 = vadd.f32 %v3203, 1e-15
        %v3770 = vlog2.pop %v3761
        %v3771 = vmul.f32 %v3770, 0.6931472
        %v3772 = vlog2.pop %v3762
        %v3773 = vmul.f32 %v3772, 0.6931472
        %v3774 = vlog2.pop %v3763
        %v3775 = vmul.f32 %v3774, 0.6931472
        %v3776 = vlog2.pop %v3764
        %v3777 = vmul.f32 %v3776, 0.6931472
        %v3778 = vlog2.pop %v3765
        %v3779 = vmul.f32 %v3778, 0.6931472
        %v3780 = vlog2.pop %v3766
        %v3781 = vmul.f32 %v3780, 0.6931472
        %v3782 = vlog2.pop %v3767
        %v3783 = vmul.f32 %v3782, 0.6931472
        %v3784 = vlog2.pop %v3768
        %v3785 = vmul.f32 %v3784, 0.6931472
        %v3786 = vlog2.pop %v3769
        %v3787 = vmul.f32 %v3786, 0.6931472
        %v3788 = vmul.f32 %v3752, %v3771
        %v3789 = vmul.f32 %v3753, %v3773
        %v3790 = vmul.f32 %v3754, %v3775
        %v3791 = vmul.f32 %v3755, %v3777
        %v3792 = vmul.f32 %v3756, %v3779
        %v3793 = vmul.f32 %v3757, %v3781
        %v3794 = vmul.f32 %v3758, %v3783
        %v3795 = vmul.f32 %v3759, %v3785
        %v3796 = vmul.f32 %v3760, %v3787
        %v3797 = vsel %vm2370, %v3788, 0.0
        %3798 = vadd.xlane.f32.xlu0 %v3797
        %v3799 = vpop.xlane.xlu0 %3798
        %v3800 = vsel %vm2370, %v3789, 0.0
        %3801 = vadd.xlane.f32.xlu0 %v3800
        %v3802 = vpop.xlane.xlu0 %3801
        %v3803 = vsel %vm2370, %v3790, 0.0
        %3804 = vadd.xlane.f32.xlu0 %v3803
        %v3805 = vpop.xlane.xlu0 %3804
        %v3806 = vsel %vm2370, %v3791, 0.0
        %3807 = vadd.xlane.f32.xlu0 %v3806
        %v3808 = vpop.xlane.xlu0 %3807
        %v3809 = vsel %vm2370, %v3792, 0.0
        %3810 = vadd.xlane.f32.xlu0 %v3809
        %v3811 = vpop.xlane.xlu0 %3810
        %v3812 = vsel %vm2370, %v3793, 0.0
        %3813 = vadd.xlane.f32.xlu0 %v3812
        %v3814 = vpop.xlane.xlu0 %3813
        %v3815 = vsel %vm2370, %v3794, 0.0
        %3816 = vadd.xlane.f32.xlu0 %v3815
        %v3817 = vpop.xlane.xlu0 %3816
        %v3818 = vsel %vm2370, %v3795, 0.0
        %3819 = vadd.xlane.f32.xlu0 %v3818
        %v3820 = vpop.xlane.xlu0 %3819
        %v3821 = vsel %vm2395, %v3796, 0.0
        %3822 = vadd.xlane.f32.xlu0 %v3821
        %v3823 = vpop.xlane.xlu0 %3822
        %v3824 = vadd.f32 %v3799, %v3802
        %v3825 = vadd.f32 %v3824, %v3805
        %v3826 = vadd.f32 %v3825, %v3808
        %v3827 = vadd.f32 %v3826, %v3811
        %v3828 = vadd.f32 %v3827, %v3814
        %v3829 = vadd.f32 %v3828, %v3817
        %v3830 = vadd.f32 %v3829, %v3820
        %v3831 = vsel %vm2516, %v3823, 0.0
        %v3832 = vadd.f32 %v3830, %v3831
        %v3833 = vrot.slane %v3832, 4
        %v3834 = vadd.f32 %v3832, %v3833
        %v3835 = vrot.slane %v3834, 2
        %v3836 = vadd.f32 %v3834, %v3835
        %v3837 = vrot.slane %v3836, 1
        %v3838 = vadd.f32 %v3836, %v3837
        %s3839 = scalar_lea.vmem %s557, 32 [#allocation2]
        %3840 = vst [vmem:[%s3839] sm:$0xff] %v3350
        %3841 = vst [vmem:[%s3839 + $0x8] sm:$0xff] %v3355
        %3842 = vst [vmem:[%s3839 + $0x10] sm:$0xff] %v3360
        %3843 = vst [vmem:[%s3839 + $0x18] sm:$0xff] %v3365
        %s3844 = scalar_lea.vmem %s564, 32 [#allocation4]
        %3845 = vst.msk [vmem:[%s3844] sm:$0xff] %vm2370, %v3538
        %3846 = vst.msk [vmem:[%s3844 + $0x8] sm:$0xff] %vm2370, %v3543
        %3847 = vst.msk [vmem:[%s3844 + $0x10] sm:$0xff] %vm2370, %v3548
        %3848 = vst.msk [vmem:[%s3844 + $0x18] sm:$0xff] %vm2370, %v3553
        %vm3849 = vcmask 1040384
        %v3850 = vsel %vm3849, %v2989, %v3751
        %v3851 = vsel %vm3849, %v3076, %v3838
        %3853 = vset.pattern.permute.xlu0 0
        %3854 = vperm.xlu0 %3853, %v3850
        %v3855 = vpop.permute.xlu0 %3854
        %3857 = vst [vmem:[%s571] sm:$0x3] %v3855
        %3859 = vset.pattern.permute.xlu0 0
        %3860 = vperm.xlu0 %3859, %v3851
        %v3861 = vpop.permute.xlu0 %3860
        %3863 = vst [vmem:[%s578] sm:$0x3] %v3861
        %s3864 = sand.u32 %s333, 1
        %s3865 = scalar_lea.sflag [#allocation3], %s3864
        %s3866 = sand.u32 %s333, 1
        %s3867 = smul.addr %s3866, 64
        %s3868 = scalar_lea.vmem [#allocation2], %s3867
        %s3869 = sand.u32 %s37, 1
        %s3870 = scalar_lea.sflag [#allocation5], %s3869
        %s3871 = sand.u32 %s359, 1
        %s3872 = smul.addr %s3871, 64
        %s3873 = scalar_lea.vmem [#allocation4], %s3872
        %s3874 = sand.u32 %s37, 1
        %s3875 = scalar_lea.sflag [#allocation5], %s3874
        %s3876 = sand.u32 %s385, 1
        %s3877 = smul.addr %s3876, 2
        %s3878 = scalar_lea.vmem [#allocation6], %s3877
        %s3879 = sand.u32 %s411, 1
        %s3880 = scalar_lea.sflag [#allocation8], %s3879
        %s3881 = sand.u32 %s411, 1
        %s3882 = smul.addr %s3881, 2
        %s3883 = scalar_lea.vmem [#allocation7], %s3882
        // Predicated region
        $region73: #{tpu_custom_call.1} parent=71 // pred_check
          %p3884 = pneg %p343
        $region74: #{tpu_custom_call.1} parent=71 // pred_check_branch
          %3886 = sbr.rel (%p3884) target = $region76
        $region75: #{tpu_custom_call.1} parent=71 // pred_region
          %s3887 = smul.u32 2, %s37
          %s3889 = ssub.s32 1024, 1024
          %3890 = vsyncadd %s3865, %s3889
          %s3891 = smul.addr %s3887, 4
          %s3892 = smul.addr %s3891, 128
          %s3893 = scalar_lea.hbm %s13, %s3892
          %s3894 = sshll.u32 %s3868, 4
          %s3895 = int_to_ptr.vmem [resolvable:$true] %s3894
          %3900 = dma.vmem_to_hbm [thread:$0]  %s3895, 1024, %s3893, %s3865, 128, 128, 8
        $region76: #{tpu_custom_call.1} parent=71 // pred_fallthru
          _
        // Predicated region
        $region77: #{tpu_custom_call.1} parent=71 // pred_check
          %p3901 = pneg %p369
        $region78: #{tpu_custom_call.1} parent=71 // pred_check_branch
          %3903 = sbr.rel (%p3901) target = $region80
        $region79: #{tpu_custom_call.1} parent=71 // pred_region
          %s3904 = smul.u32 2, %s37
          %s3906 = ssub.s32 1024, 1024
          %3907 = vsyncadd %s3870, %s3906
          %s3908 = smul.addr %s3904, 4
          %s3909 = smul.addr %s3908, 128
          %s3910 = scalar_lea.hbm %s14, %s3909
          %s3911 = sshll.u32 %s3873, 4
          %s3912 = int_to_ptr.vmem [resolvable:$true] %s3911
          %3917 = dma.vmem_to_hbm [thread:$0]  %s3912, 1024, %s3910, %s3870, 128, 128, 8
        $region80: #{tpu_custom_call.1} parent=71 // pred_fallthru
          _
        // Predicated region
        $region81: #{tpu_custom_call.1} parent=71 // pred_check
          %p3918 = pneg %p395
        $region82: #{tpu_custom_call.1} parent=71 // pred_check_branch
          %3920 = sbr.rel (%p3918) target = $region84
        $region83: #{tpu_custom_call.1} parent=71 // pred_region
          %s3922 = ssub.s32 32, 32
          %3923 = vsyncadd %s3875, %s3922
          %s3924 = smul.addr %s37, 32
          %s3925 = scalar_lea.hbm %s15, %s3924
          %s3927 = sshll.u32 %s3878, 4
          %s3928 = int_to_ptr.vmem [resolvable:$true] %s3927
          %3930 = dma.vmem_to_hbm [thread:$0]  %s3928, 32, %s3925, %s3875
        $region84: #{tpu_custom_call.1} parent=71 // pred_fallthru
          _
        // Predicated region
        $region85: #{tpu_custom_call.1} parent=71 // pred_check
          %p3931 = pneg %p421
        $region86: #{tpu_custom_call.1} parent=71 // pred_check_branch
          %3933 = sbr.rel (%p3931) target = $region88
        $region87: #{tpu_custom_call.1} parent=71 // pred_region
          %s3935 = ssub.s32 32, 32
          %3936 = vsyncadd %s3880, %s3935
          %s3937 = smul.addr %s37, 32
          %s3938 = scalar_lea.hbm %s16, %s3937
          %s3940 = sshll.u32 %s3883, 4
          %s3941 = int_to_ptr.vmem [resolvable:$true] %s3940
          %3943 = dma.vmem_to_hbm [thread:$0]  %s3941, 32, %s3938, %s3880
        $region88: #{tpu_custom_call.1} parent=71 // pred_fallthru
          _
      $region72: #{tpu_custom_call.1} parent=5 // pred_fallthru
        _
      %p3944 = scmp.le.s32.totalorder 2, %s32
      // Predicated region
      $region89: #{tpu_custom_call.1} parent=5 // pred_check
        %p3945 = pneg %p3944
      $region90: #{tpu_custom_call.1} parent=5 // pred_check_branch
        %3947 = sbr.rel (%p3945) target = $region92
      $region91: #{tpu_custom_call.1} parent=5 // pred_region
        %s3948 = ssub.s32 %s32, 2
        // Predicated region
        $region93: #{tpu_custom_call.1} parent=91 // pred_check
          %p3949 = pneg %p349
        $region94: #{tpu_custom_call.1} parent=91 // pred_check_branch
          %3951 = sbr.rel (%p3949) target = $region96
        $region95: #{tpu_custom_call.1} parent=91 // pred_region
          %s3952 = sand.u32 %s334, 1
          %s3953 = scalar_lea.sflag [#allocation3], %s3952
          %s3954 = sand.u32 %s334, 1
          %s3955 = smul.addr %s3954, 64
          %s3956 = scalar_lea.vmem [#allocation2], %s3955
          %3957 = dma.done %s3953, 1024
        $region96: #{tpu_custom_call.1} parent=91 // pred_fallthru
          _
        // Predicated region
        $region97: #{tpu_custom_call.1} parent=91 // pred_check
          %p3958 = pneg %p375
        $region98: #{tpu_custom_call.1} parent=91 // pred_check_branch
          %3960 = sbr.rel (%p3958) target = $region100
        $region99: #{tpu_custom_call.1} parent=91 // pred_region
          %s3961 = sand.u32 %s38, 1
          %s3962 = scalar_lea.sflag [#allocation5], %s3961
          %s3963 = sand.u32 %s360, 1
          %s3964 = smul.addr %s3963, 64
          %s3965 = scalar_lea.vmem [#allocation4], %s3964
          %3966 = dma.done %s3962, 1024
        $region100: #{tpu_custom_call.1} parent=91 // pred_fallthru
          _
        // Predicated region
        $region101: #{tpu_custom_call.1} parent=91 // pred_check
          %p3967 = pneg %p401
        $region102: #{tpu_custom_call.1} parent=91 // pred_check_branch
          %3969 = sbr.rel (%p3967) target = $region104
        $region103: #{tpu_custom_call.1} parent=91 // pred_region
          %s3970 = sand.u32 %s38, 1
          %s3971 = scalar_lea.sflag [#allocation5], %s3970
          %s3972 = sand.u32 %s386, 1
          %s3973 = smul.addr %s3972, 2
          %s3974 = scalar_lea.vmem [#allocation6], %s3973
          %3975 = dma.done %s3971, 32
        $region104: #{tpu_custom_call.1} parent=91 // pred_fallthru
          _
        // Predicated region
        $region105: #{tpu_custom_call.1} parent=91 // pred_check
          %p3976 = pneg %p427
        $region106: #{tpu_custom_call.1} parent=91 // pred_check_branch
          %3978 = sbr.rel (%p3976) target = $region108
        $region107: #{tpu_custom_call.1} parent=91 // pred_region
          %s3979 = sand.u32 %s412, 1
          %s3980 = scalar_lea.sflag [#allocation8], %s3979
          %s3981 = sand.u32 %s412, 1
          %s3982 = smul.addr %s3981, 2
          %s3983 = scalar_lea.vmem [#allocation7], %s3982
          %3984 = dma.done %s3980, 32
        $region108: #{tpu_custom_call.1} parent=91 // pred_fallthru
          _
      $region92: #{tpu_custom_call.1} parent=5 // pred_fallthru
        _
    $region6: #{tpu_custom_call.1} parent=1 // loop_footer
      %s36 = sadd.s32 1, %s32
    $region7: #{tpu_custom_call.1} parent=1 // loop_footer_branch
      %31 = sbr.rel target = $region3
    $region8: #{tpu_custom_call.1} parent=1 // loop_exit
      _
    %3985 = vsyncpa [#allocation3], 1
    %s3986 = scalar_lea.sflag [#allocation3], 1
    %3987 = vsyncpa %s3986, 1
    %3988 = vsyncpa [#allocation5], 1
    %s3989 = scalar_lea.sflag [#allocation5], 1
    %3990 = vsyncpa %s3989, 1
    %3991 = vsyncpa [#allocation8], 1
    %s3992 = scalar_lea.sflag [#allocation8], 1
    %3993 = vsyncpa %s3992, 1

</llo_original>
